<compile_context>
chip_gen: v7x
topology: tpu7x:2x2x1
jax: 0.10.0
libtpu: 0.0.40
codegen_flags: <defaults>
</compile_context>

<pallas_src>
import functools

import numpy as np
import jax
import jax.numpy as jnp
from jax.experimental import pallas as pl
from jax.experimental.pallas import tpu as pltpu

# ----------------------------- configuration -------------------------------
X_DIM = 4                 # x_dim (latent / parameter dim of the flow)
Y_DIM = 6                 # y_dim == n_summaries (use_encoder=False)
HIDDEN = 32               # hidden_dim_decoder
N_COND_LAYERS = 3         # n_cond_layers (1 input layer + 2 hidden layers)
N_FLOWS = 4               # n_flows_decoder
ALPHA = 1.9               # scale soft-clamp
BATCH = 1024

D1 = X_DIM // 2           # conditioning half
D2 = X_DIM - D1           # transformed half
COND_IN = D1 + Y_DIM      # conditioner input dim (raw)
OUT_DIM = 2 * D2          # n_params=2 -> (scale, shift)
N_HIDDEN = N_COND_LAYERS - 1

FX_ROWS = 8               # sublane block holding the x rows (padded)
FY_ROWS = 8               # sublane block holding y rows + 1.0 row (padded)
F_ROWS = FX_ROWS + FY_ROWS
OUT_ROWS = 8              # output slab rows: z (4) + logdet (1) + pad
ONES_ROW = Y_DIM          # row index of the constant 1.0 *within* the fy block
NUM_BLOCKS = 2            # >=2 so the batch axis shards across v7x's 2 TensorCores


def _round_up(n, m):
    return ((n + m - 1) // m) * m


# ------------------------------ Pallas kernel ------------------------------
def _flow_kernel(f_ref, w0x_ref, w0y_ref, wh_ref, bh_ref, wo_ref, bo_ref, out_ref, *,
                 n_flows, n_hidden, alpha, x_dim):
    f32 = jnp.float32
    inv_alpha = f32(1.0 / alpha)

    # Batch on lanes, features on sublanes. Both slices sit on 8-sublane tile
    # boundaries, so no relayout copies.
    fx = f_ref[0:FX_ROWS, :].astype(f32)            # [8, tb] x rows (phys) + zero pad
    fy = f_ref[FX_ROWS:F_ROWS, :].astype(f32)       # [8, tb] y rows, 1.0 row, zero pad
    tb = fx.shape[1]

    s_acc = jnp.zeros((FX_ROWS, tb), f32)           # per-flow scale logits, summed once

    for k in range(n_flows):                         # static unroll
        # layer 0: [x1, y] gather, half-swap permutation and bias (via the 1.0 row)
        # are baked into the zero-padded transposed weights; no lane/sublane shuffles.
        h = (jnp.dot(w0x_ref[k], fx, preferred_element_type=f32) +
             jnp.dot(w0y_ref[k], fy, preferred_element_type=f32))     # [hidden, tb]
        h = jnp.maximum(h, 0.0)

        for l in range(n_hidden):
            idx = k * n_hidden + l
            h = jnp.dot(wh_ref[idx], h, preferred_element_type=f32) + bh_ref[idx]
            h = jnp.maximum(h, 0.0)

        # output layer: scale logits land on the target physical rows of o[0:8],
        # shifts on the same rows of o[8:16]; all other rows (weights AND bias) are 0.
        o = jnp.dot(wo_ref[k], h, preferred_element_type=f32) + bo_ref[k]   # [16, tb]
        s = alpha * jnp.tanh(o[0:FX_ROWS, :] * inv_alpha)   # [8, tb]; 0 off-target
        t = o[FX_ROWS:2 * FX_ROWS, :]                       # [8, tb]; 0 off-target

        # affine coupling as an 8-row FMA: exp(0)=1, +0 leaves conditioning rows intact
        fx = fx * jnp.exp(s) + t
        s_acc = s_acc + s

    # single cross-sublane reduce for the whole kernel (off-target rows are 0)
    logdet = jnp.sum(s_acc, axis=0, keepdims=True)          # [1, tb]

    # pack (z, logdet) into one [8, tb] lane-dense slab: z stays in rows [0, x_dim),
    # logdet goes to row x_dim.  Single unmasked store.
    row = jax.lax.broadcasted_iota(jnp.int32, (OUT_ROWS, tb), 0)
    out_ref[...] = jnp.where(row == x_dim, logdet, fx).astype(out_ref.dtype)


# ------------------------------ host wrapper --------------------------------
def flow_forward(x, y, packed, *, num_blocks=NUM_BLOCKS):
    """Conditional normalizing flow forward: returns (z, sum_log_abs_det)."""
    w0xT, w0yT, whT, bhc, wo2T, bo2c, final_perm = packed
    B = x.shape[0]

    # lane-padded batch; each grid step gets a lane extent that is a multiple of 128
    b_pad = _round_up(B, num_blocks * 128)
    tb = b_pad // num_blocks

    # host-side packing (layout plumbing only): one [16, B_pad] input stream,
    # batch on lanes, features on sublanes, constant 1.0 row for bias folding.
    xt = x.T.astype(jnp.float32)                                  # [4, B]
    yt = y.T.astype(jnp.float32)                                  # [6, B]
    f16 = jnp.concatenate(
        [xt,
         jnp.zeros((FX_ROWS - X_DIM, B), jnp.float32),
         yt,
         jnp.ones((1, B), jnp.float32),
         jnp.zeros((FY_ROWS - Y_DIM - 1, B), jnp.float32)], axis=0)   # [16, B]
    f16 = jnp.pad(f16, ((0, 0), (0, b_pad - B)))

    kernel = functools.partial(_flow_kernel, n_flows=N_FLOWS, n_hidden=N_HIDDEN,
                               alpha=ALPHA, x_dim=X_DIM)

    out = pl.pallas_call(
        kernel,
        out_shape=jax.ShapeDtypeStruct((OUT_ROWS, b_pad), jnp.float32),
        grid=(num_blocks,),
        in_specs=[
            pl.BlockSpec((F_ROWS, tb), lambda i: (0, i)),
            # weights/biases: constant index maps -> DMA'd once, resident across grid
            pl.BlockSpec(w0xT.shape, lambda i: (0, 0, 0)),
            pl.BlockSpec(w0yT.shape, lambda i: (0, 0, 0)),
            pl.BlockSpec(whT.shape, lambda i: (0, 0, 0)),
            pl.BlockSpec(bhc.shape, lambda i: (0, 0, 0)),
            pl.BlockSpec(wo2T.shape, lambda i: (0, 0, 0)),
            pl.BlockSpec(bo2c.shape, lambda i: (0, 0, 0)),
        ],
        out_specs=pl.BlockSpec((OUT_ROWS, tb), lambda i: (0, i)),
        compiler_params=pltpu.CompilerParams(
            dimension_semantics=("parallel",),          # shards across v7x megacore
            vmem_limit_bytes=32 * 1024 * 1024),         # far above actual need
    )(f16, w0xT, w0yT, whT, bhc, wo2T, bo2c)

    zt = out[:X_DIM, :B]                                 # [4, B] physical rows
    if list(final_perm) != list(range(X_DIM)):           # identity for even n_flows
        zt = zt[list(final_perm), :]
    z = zt.T                                             # [B, 4]
    sum_log_abs_det = out[X_DIM, :B]
    return z, sum_log_abs_det


def posterior_sampler_forward(x, y, packed):
    """NormalizingFlowPosteriorSampler.forward with use_encoder=False."""
    s = y                                                # summary pass-through
    z, sum_log_abs_det = flow_forward(x, s, packed)
    return s, z, sum_log_abs_det


# ------------------------- parameters (raw + packed) -------------------------
def init_raw_params(key):
    ks = jax.random.split(key, 6)

    def uni(k, shape, fan_in):
        bound = 1.0 / jnp.sqrt(jnp.float32(fan_in))
        return jax.random.uniform(k, shape, jnp.float32, -bound, bound)

    w0 = uni(ks[0], (N_FLOWS, COND_IN, HIDDEN), COND_IN)
    b0 = uni(ks[1], (N_FLOWS, 1, HIDDEN), COND_IN)
    wh = uni(ks[2], (N_FLOWS * N_HIDDEN, HIDDEN, HIDDEN), HIDDEN)
    bh = uni(ks[3], (N_FLOWS * N_HIDDEN, 1, HIDDEN), HIDDEN)
    wo = uni(ks[4], (N_FLOWS, HIDDEN, OUT_DIM), HIDDEN)
    bo = uni(ks[5], (N_FLOWS, 1, OUT_DIM), HIDDEN)
    return w0, b0, wh, bh, wo, bo


def pack_params(raw):
    """Bake gather / permutation / layer-0 bias into zero-padded transposed weights."""
    w0, b0, wh, bh, wo, bo = [np.asarray(p, np.float32) for p in raw]

    w0xT = np.zeros((N_FLOWS, HIDDEN, FX_ROWS), np.float32)
    w0yT = np.zeros((N_FLOWS, HIDDEN, FY_ROWS), np.float32)
    wo2T = np.zeros((N_FLOWS, 2 * FX_ROWS, HIDDEN), np.float32)
    bo2c = np.zeros((N_FLOWS, 2 * FX_ROWS, 1), np.float32)

    perm = list(range(X_DIM))          # perm[logical position] = physical slab row
    for k in range(N_FLOWS):
        cond_phys, tgt_phys = perm[:D1], perm[D1:]
        # layer 0: x1 columns scattered to their physical rows, y columns fixed,
        # bias folded into the 1.0 row of the fy block.
        for j, c in enumerate(cond_phys):
            w0xT[k, :, c] = w0[k, j, :]
        for m in range(Y_DIM):
            w0yT[k, :, m] = w0[k, D1 + m, :]
        w0yT[k, :, ONES_ROW] = b0[k, 0, :]
        # output layer: scale -> target physical rows, shift -> 8 + target rows;
        # all other rows (weights and bias) stay exactly 0.
        for j, c in enumerate(tgt_phys):
            wo2T[k, c, :] = wo[k, :, j]
            bo2c[k, c, 0] = bo[k, 0, j]
            wo2T[k, FX_ROWS + c, :] = wo[k, :, D2 + j]
            bo2c[k, FX_ROWS + c, 0] = bo[k, 0, D2 + j]
        # half-swap permutation: new logical x = [x2 (transformed in place), x1]
        perm = perm[D1:] + perm[:D1]

    whT = np.ascontiguousarray(np.transpose(wh, (0, 2, 1)))            # [N*L, 32, 32]
    bhc = np.ascontiguousarray(np.transpose(bh, (0, 2, 1)))            # [N*L, 32, 1]

    return (jnp.asarray(w0xT), jnp.asarray(w0yT), jnp.asarray(whT),
            jnp.asarray(bhc), jnp.asarray(wo2T), jnp.asarray(bo2c), tuple(perm))


# --------------------------- pure-JAX reference -----------------------------
def _ref_forward(x, y, raw):
    w0, b0, wh, bh, wo, bo = raw
    logdet = jnp.zeros((x.shape[0],), jnp.float32)
    for k in range(N_FLOWS):
        x1, x2 = x[:, :D1], x[:, D1:]
        h = jnp.concatenate([x1, y], axis=-1)
        h = jnp.maximum(h @ w0[k] + b0[k], 0.0)
        for l in range(N_HIDDEN):
            idx = k * N_HIDDEN + l
            h = jnp.maximum(h @ wh[idx] + bh[idx], 0.0)
        o = h @ wo[k] + bo[k]
        s = ALPHA * jnp.tanh(o[:, :D2] / ALPHA)
        t = o[:, D2:]
        z2 = x2 * jnp.exp(s) + t
        logdet = logdet + jnp.sum(s, axis=-1)
        x = jnp.concatenate([z2, x1], axis=-1)
    return x, logdet


# --------------------------------- main --------------------------------------
if __name__ == "__main__":
    key = jax.random.PRNGKey(0)
    kx, ky, kp = jax.random.split(key, 3)

    x = jax.random.normal(kx, (BATCH, X_DIM), jnp.float32)
    y = jax.random.normal(ky, (BATCH, Y_DIM), jnp.float32)
    raw = init_raw_params(kp)
    packed = pack_params(raw)

    fwd = jax.jit(functools.partial(posterior_sampler_forward, packed=packed))
    s, z, sum_log_abs_det = fwd(x, y)
    jax.block_until_ready((s, z, sum_log_abs_det))

    z_ref, ld_ref = _ref_forward(x, y, raw)
    assert jnp.allclose(s, y)
    assert jnp.allclose(z, z_ref, atol=1e-5, rtol=1e-5)
    assert jnp.allclose(sum_log_abs_det, ld_ref, atol=1e-5, rtol=1e-5)

    print("KERNEL_OK")
</pallas_src>

<mosaic_0001>
module attributes {stable_mosaic.version = 11 : i64} {
  func.func @_flow_kernel(%arg0: i32, %arg1: memref<16x512xf32, #tpu.memory_space<vmem>>, %arg2: memref<4x32x8xf32, #tpu.memory_space<vmem>>, %arg3: memref<4x32x8xf32, #tpu.memory_space<vmem>>, %arg4: memref<8x32x32xf32, #tpu.memory_space<vmem>>, %arg5: memref<8x32x1xf32, #tpu.memory_space<vmem>>, %arg6: memref<4x16x32xf32, #tpu.memory_space<vmem>>, %arg7: memref<4x16x1xf32, #tpu.memory_space<vmem>>, %arg8: memref<8x512xf32, #tpu.memory_space<vmem>>) attributes {dimension_semantics = [#tpu.dimension_semantics<parallel>], iteration_bounds = array<i64: 2>, scalar_prefetch = 0 : i64, scratch_operands = 0 : i64, tpu.core_type = #tpu.core_type<tc>, window_params = [{transform_indices = @transform_0, window_bounds = array<i64: 16, 512>}, {pipeline_mode = #tpu.pipeline_mode<synchronous>, transform_indices = @transform_1, window_bounds = array<i64: 4, 32, 8>}, {pipeline_mode = #tpu.pipeline_mode<synchronous>, transform_indices = @transform_2, window_bounds = array<i64: 4, 32, 8>}, {pipeline_mode = #tpu.pipeline_mode<synchronous>, transform_indices = @transform_3, window_bounds = array<i64: 8, 32, 32>}, {pipeline_mode = #tpu.pipeline_mode<synchronous>, transform_indices = @transform_4, window_bounds = array<i64: 8, 32, 1>}, {pipeline_mode = #tpu.pipeline_mode<synchronous>, transform_indices = @transform_5, window_bounds = array<i64: 4, 16, 32>}, {pipeline_mode = #tpu.pipeline_mode<synchronous>, transform_indices = @transform_6, window_bounds = array<i64: 4, 16, 1>}, {transform_indices = @transform_7, window_bounds = array<i64: 8, 512>}]} {
    %c0 = arith.constant 0 : index
    %c0_0 = arith.constant 0 : index
    %0 = vector.load %arg1[%c0, %c0_0] : memref<16x512xf32, #tpu.memory_space<vmem>>, vector<8x512xf32>
    %c8 = arith.constant 8 : index
    %c0_1 = arith.constant 0 : index
    %1 = vector.load %arg1[%c8, %c0_1] : memref<16x512xf32, #tpu.memory_space<vmem>>, vector<8x512xf32>
    %cst = arith.constant 0.000000e+00 : f32
    %2 = vector.broadcast %cst : f32 to vector<8x512xf32>
    %c0_2 = arith.constant 0 : index
    %c0_3 = arith.constant 0 : index
    %c0_4 = arith.constant 0 : index
    %3 = vector.load %arg2[%c0_2, %c0_3, %c0_4] : memref<4x32x8xf32, #tpu.memory_space<vmem>>, vector<1x32x8xf32>
    %4 = vector.shape_cast %3 : vector<1x32x8xf32> to vector<32x8xf32>
    %cst_5 = arith.constant dense<0.000000e+00> : vector<32x512xf32>
    %5 = tpu.matmul %4, %0, %cst_5 {dimension_numbers = #tpu.dot_dimension_numbers<[1], [0], [0], [1], [0, 0, 1, 1], [], []>} : vector<32x8xf32>, vector<8x512xf32>, vector<32x512xf32> -> vector<32x512xf32>
    %c0_6 = arith.constant 0 : index
    %c0_7 = arith.constant 0 : index
    %c0_8 = arith.constant 0 : index
    %6 = vector.load %arg3[%c0_6, %c0_7, %c0_8] : memref<4x32x8xf32, #tpu.memory_space<vmem>>, vector<1x32x8xf32>
    %7 = vector.shape_cast %6 : vector<1x32x8xf32> to vector<32x8xf32>
    %cst_9 = arith.constant dense<0.000000e+00> : vector<32x512xf32>
    %8 = tpu.matmul %7, %1, %cst_9 {dimension_numbers = #tpu.dot_dimension_numbers<[1], [0], [0], [1], [0, 0, 1, 1], [], []>} : vector<32x8xf32>, vector<8x512xf32>, vector<32x512xf32> -> vector<32x512xf32>
    %9 = arith.addf %5, %8 : vector<32x512xf32>
    %cst_10 = arith.constant 0.000000e+00 : f32
    %10 = vector.broadcast %cst_10 : f32 to vector<32x512xf32>
    %11 = arith.maximumf %9, %10 : vector<32x512xf32>
    %c0_11 = arith.constant 0 : index
    %c0_12 = arith.constant 0 : index
    %c0_13 = arith.constant 0 : index
    %12 = vector.load %arg4[%c0_11, %c0_12, %c0_13] : memref<8x32x32xf32, #tpu.memory_space<vmem>>, vector<1x32x32xf32>
    %13 = vector.shape_cast %12 : vector<1x32x32xf32> to vector<32x32xf32>
    %cst_14 = arith.constant dense<0.000000e+00> : vector<32x512xf32>
    %14 = tpu.matmul %13, %11, %cst_14 {dimension_numbers = #tpu.dot_dimension_numbers<[1], [0], [0], [1], [0, 0, 1, 1], [], []>} : vector<32x32xf32>, vector<32x512xf32>, vector<32x512xf32> -> vector<32x512xf32>
    %c0_15 = arith.constant 0 : index
    %c0_16 = arith.constant 0 : index
    %c0_17 = arith.constant 0 : index
    %15 = vector.load %arg5[%c0_15, %c0_16, %c0_17] : memref<8x32x1xf32, #tpu.memory_space<vmem>>, vector<1x32x1xf32>
    %16 = vector.shape_cast %15 : vector<1x32x1xf32> to vector<32x1xf32>
    %17 = vector.broadcast %16 : vector<32x1xf32> to vector<32x512xf32>
    %18 = arith.addf %14, %17 : vector<32x512xf32>
    %cst_18 = arith.constant 0.000000e+00 : f32
    %19 = vector.broadcast %cst_18 : f32 to vector<32x512xf32>
    %20 = arith.maximumf %18, %19 : vector<32x512xf32>
    %c1 = arith.constant 1 : index
    %c0_19 = arith.constant 0 : index
    %c0_20 = arith.constant 0 : index
    %21 = vector.load %arg4[%c1, %c0_19, %c0_20] : memref<8x32x32xf32, #tpu.memory_space<vmem>>, vector<1x32x32xf32>
    %22 = vector.shape_cast %21 : vector<1x32x32xf32> to vector<32x32xf32>
    %cst_21 = arith.constant dense<0.000000e+00> : vector<32x512xf32>
    %23 = tpu.matmul %22, %20, %cst_21 {dimension_numbers = #tpu.dot_dimension_numbers<[1], [0], [0], [1], [0, 0, 1, 1], [], []>} : vector<32x32xf32>, vector<32x512xf32>, vector<32x512xf32> -> vector<32x512xf32>
    %c1_22 = arith.constant 1 : index
    %c0_23 = arith.constant 0 : index
    %c0_24 = arith.constant 0 : index
    %24 = vector.load %arg5[%c1_22, %c0_23, %c0_24] : memref<8x32x1xf32, #tpu.memory_space<vmem>>, vector<1x32x1xf32>
    %25 = vector.shape_cast %24 : vector<1x32x1xf32> to vector<32x1xf32>
    %26 = vector.broadcast %25 : vector<32x1xf32> to vector<32x512xf32>
    %27 = arith.addf %23, %26 : vector<32x512xf32>
    %cst_25 = arith.constant 0.000000e+00 : f32
    %28 = vector.broadcast %cst_25 : f32 to vector<32x512xf32>
    %29 = arith.maximumf %27, %28 : vector<32x512xf32>
    %c0_26 = arith.constant 0 : index
    %c0_27 = arith.constant 0 : index
    %c0_28 = arith.constant 0 : index
    %30 = vector.load %arg6[%c0_26, %c0_27, %c0_28] : memref<4x16x32xf32, #tpu.memory_space<vmem>>, vector<1x16x32xf32>
    %31 = vector.shape_cast %30 : vector<1x16x32xf32> to vector<16x32xf32>
    %cst_29 = arith.constant dense<0.000000e+00> : vector<16x512xf32>
    %32 = tpu.matmul %31, %29, %cst_29 {dimension_numbers = #tpu.dot_dimension_numbers<[1], [0], [0], [1], [0, 0, 1, 1], [], []>} : vector<16x32xf32>, vector<32x512xf32>, vector<16x512xf32> -> vector<16x512xf32>
    %c0_30 = arith.constant 0 : index
    %c0_31 = arith.constant 0 : index
    %c0_32 = arith.constant 0 : index
    %33 = vector.load %arg7[%c0_30, %c0_31, %c0_32] : memref<4x16x1xf32, #tpu.memory_space<vmem>>, vector<1x16x1xf32>
    %34 = vector.shape_cast %33 : vector<1x16x1xf32> to vector<16x1xf32>
    %35 = vector.broadcast %34 : vector<16x1xf32> to vector<16x512xf32>
    %36 = arith.addf %32, %35 : vector<16x512xf32>
    %37 = vector.extract_strided_slice %36 {offsets = [0, 0], sizes = [8, 512], strides = [1, 1]} : vector<16x512xf32> to vector<8x512xf32>
    %cst_33 = arith.constant 0.526315808 : f32
    %38 = vector.broadcast %cst_33 : f32 to vector<8x512xf32>
    %39 = arith.mulf %37, %38 : vector<8x512xf32>
    %40 = math.tanh %39 : vector<8x512xf32>
    %cst_34 = arith.constant 1.900000e+00 : f32
    %41 = vector.broadcast %cst_34 : f32 to vector<8x512xf32>
    %42 = arith.mulf %41, %40 : vector<8x512xf32>
    %43 = vector.extract_strided_slice %36 {offsets = [8, 0], sizes = [8, 512], strides = [1, 1]} : vector<16x512xf32> to vector<8x512xf32>
    %44 = math.exp %42 : vector<8x512xf32>
    %45 = arith.mulf %0, %44 : vector<8x512xf32>
    %46 = arith.addf %45, %43 : vector<8x512xf32>
    %47 = arith.addf %2, %42 : vector<8x512xf32>
    %c1_35 = arith.constant 1 : index
    %c0_36 = arith.constant 0 : index
    %c0_37 = arith.constant 0 : index
    %48 = vector.load %arg2[%c1_35, %c0_36, %c0_37] : memref<4x32x8xf32, #tpu.memory_space<vmem>>, vector<1x32x8xf32>
    %49 = vector.shape_cast %48 : vector<1x32x8xf32> to vector<32x8xf32>
    %cst_38 = arith.constant dense<0.000000e+00> : vector<32x512xf32>
    %50 = tpu.matmul %49, %46, %cst_38 {dimension_numbers = #tpu.dot_dimension_numbers<[1], [0], [0], [1], [0, 0, 1, 1], [], []>} : vector<32x8xf32>, vector<8x512xf32>, vector<32x512xf32> -> vector<32x512xf32>
    %c1_39 = arith.constant 1 : index
    %c0_40 = arith.constant 0 : index
    %c0_41 = arith.constant 0 : index
    %51 = vector.load %arg3[%c1_39, %c0_40, %c0_41] : memref<4x32x8xf32, #tpu.memory_space<vmem>>, vector<1x32x8xf32>
    %52 = vector.shape_cast %51 : vector<1x32x8xf32> to vector<32x8xf32>
    %cst_42 = arith.constant dense<0.000000e+00> : vector<32x512xf32>
    %53 = tpu.matmul %52, %1, %cst_42 {dimension_numbers = #tpu.dot_dimension_numbers<[1], [0], [0], [1], [0, 0, 1, 1], [], []>} : vector<32x8xf32>, vector<8x512xf32>, vector<32x512xf32> -> vector<32x512xf32>
    %54 = arith.addf %50, %53 : vector<32x512xf32>
    %cst_43 = arith.constant 0.000000e+00 : f32
    %55 = vector.broadcast %cst_43 : f32 to vector<32x512xf32>
    %56 = arith.maximumf %54, %55 : vector<32x512xf32>
    %c2 = arith.constant 2 : index
    %c0_44 = arith.constant 0 : index
    %c0_45 = arith.constant 0 : index
    %57 = vector.load %arg4[%c2, %c0_44, %c0_45] : memref<8x32x32xf32, #tpu.memory_space<vmem>>, vector<1x32x32xf32>
    %58 = vector.shape_cast %57 : vector<1x32x32xf32> to vector<32x32xf32>
    %cst_46 = arith.constant dense<0.000000e+00> : vector<32x512xf32>
    %59 = tpu.matmul %58, %56, %cst_46 {dimension_numbers = #tpu.dot_dimension_numbers<[1], [0], [0], [1], [0, 0, 1, 1], [], []>} : vector<32x32xf32>, vector<32x512xf32>, vector<32x512xf32> -> vector<32x512xf32>
    %c2_47 = arith.constant 2 : index
    %c0_48 = arith.constant 0 : index
    %c0_49 = arith.constant 0 : index
    %60 = vector.load %arg5[%c2_47, %c0_48, %c0_49] : memref<8x32x1xf32, #tpu.memory_space<vmem>>, vector<1x32x1xf32>
    %61 = vector.shape_cast %60 : vector<1x32x1xf32> to vector<32x1xf32>
    %62 = vector.broadcast %61 : vector<32x1xf32> to vector<32x512xf32>
    %63 = arith.addf %59, %62 : vector<32x512xf32>
    %cst_50 = arith.constant 0.000000e+00 : f32
    %64 = vector.broadcast %cst_50 : f32 to vector<32x512xf32>
    %65 = arith.maximumf %63, %64 : vector<32x512xf32>
    %c3 = arith.constant 3 : index
    %c0_51 = arith.constant 0 : index
    %c0_52 = arith.constant 0 : index
    %66 = vector.load %arg4[%c3, %c0_51, %c0_52] : memref<8x32x32xf32, #tpu.memory_space<vmem>>, vector<1x32x32xf32>
    %67 = vector.shape_cast %66 : vector<1x32x32xf32> to vector<32x32xf32>
    %cst_53 = arith.constant dense<0.000000e+00> : vector<32x512xf32>
    %68 = tpu.matmul %67, %65, %cst_53 {dimension_numbers = #tpu.dot_dimension_numbers<[1], [0], [0], [1], [0, 0, 1, 1], [], []>} : vector<32x32xf32>, vector<32x512xf32>, vector<32x512xf32> -> vector<32x512xf32>
    %c3_54 = arith.constant 3 : index
    %c0_55 = arith.constant 0 : index
    %c0_56 = arith.constant 0 : index
    %69 = vector.load %arg5[%c3_54, %c0_55, %c0_56] : memref<8x32x1xf32, #tpu.memory_space<vmem>>, vector<1x32x1xf32>
    %70 = vector.shape_cast %69 : vector<1x32x1xf32> to vector<32x1xf32>
    %71 = vector.broadcast %70 : vector<32x1xf32> to vector<32x512xf32>
    %72 = arith.addf %68, %71 : vector<32x512xf32>
    %cst_57 = arith.constant 0.000000e+00 : f32
    %73 = vector.broadcast %cst_57 : f32 to vector<32x512xf32>
    %74 = arith.maximumf %72, %73 : vector<32x512xf32>
    %c1_58 = arith.constant 1 : index
    %c0_59 = arith.constant 0 : index
    %c0_60 = arith.constant 0 : index
    %75 = vector.load %arg6[%c1_58, %c0_59, %c0_60] : memref<4x16x32xf32, #tpu.memory_space<vmem>>, vector<1x16x32xf32>
    %76 = vector.shape_cast %75 : vector<1x16x32xf32> to vector<16x32xf32>
    %cst_61 = arith.constant dense<0.000000e+00> : vector<16x512xf32>
    %77 = tpu.matmul %76, %74, %cst_61 {dimension_numbers = #tpu.dot_dimension_numbers<[1], [0], [0], [1], [0, 0, 1, 1], [], []>} : vector<16x32xf32>, vector<32x512xf32>, vector<16x512xf32> -> vector<16x512xf32>
    %c1_62 = arith.constant 1 : index
    %c0_63 = arith.constant 0 : index
    %c0_64 = arith.constant 0 : index
    %78 = vector.load %arg7[%c1_62, %c0_63, %c0_64] : memref<4x16x1xf32, #tpu.memory_space<vmem>>, vector<1x16x1xf32>
    %79 = vector.shape_cast %78 : vector<1x16x1xf32> to vector<16x1xf32>
    %80 = vector.broadcast %79 : vector<16x1xf32> to vector<16x512xf32>
    %81 = arith.addf %77, %80 : vector<16x512xf32>
    %82 = vector.extract_strided_slice %81 {offsets = [0, 0], sizes = [8, 512], strides = [1, 1]} : vector<16x512xf32> to vector<8x512xf32>
    %cst_65 = arith.constant 0.526315808 : f32
    %83 = vector.broadcast %cst_65 : f32 to vector<8x512xf32>
    %84 = arith.mulf %82, %83 : vector<8x512xf32>
    %85 = math.tanh %84 : vector<8x512xf32>
    %cst_66 = arith.constant 1.900000e+00 : f32
    %86 = vector.broadcast %cst_66 : f32 to vector<8x512xf32>
    %87 = arith.mulf %86, %85 : vector<8x512xf32>
    %88 = vector.extract_strided_slice %81 {offsets = [8, 0], sizes = [8, 512], strides = [1, 1]} : vector<16x512xf32> to vector<8x512xf32>
    %89 = math.exp %87 : vector<8x512xf32>
    %90 = arith.mulf %46, %89 : vector<8x512xf32>
    %91 = arith.addf %90, %88 : vector<8x512xf32>
    %92 = arith.addf %47, %87 : vector<8x512xf32>
    %c2_67 = arith.constant 2 : index
    %c0_68 = arith.constant 0 : index
    %c0_69 = arith.constant 0 : index
    %93 = vector.load %arg2[%c2_67, %c0_68, %c0_69] : memref<4x32x8xf32, #tpu.memory_space<vmem>>, vector<1x32x8xf32>
    %94 = vector.shape_cast %93 : vector<1x32x8xf32> to vector<32x8xf32>
    %cst_70 = arith.constant dense<0.000000e+00> : vector<32x512xf32>
    %95 = tpu.matmul %94, %91, %cst_70 {dimension_numbers = #tpu.dot_dimension_numbers<[1], [0], [0], [1], [0, 0, 1, 1], [], []>} : vector<32x8xf32>, vector<8x512xf32>, vector<32x512xf32> -> vector<32x512xf32>
    %c2_71 = arith.constant 2 : index
    %c0_72 = arith.constant 0 : index
    %c0_73 = arith.constant 0 : index
    %96 = vector.load %arg3[%c2_71, %c0_72, %c0_73] : memref<4x32x8xf32, #tpu.memory_space<vmem>>, vector<1x32x8xf32>
    %97 = vector.shape_cast %96 : vector<1x32x8xf32> to vector<32x8xf32>
    %cst_74 = arith.constant dense<0.000000e+00> : vector<32x512xf32>
    %98 = tpu.matmul %97, %1, %cst_74 {dimension_numbers = #tpu.dot_dimension_numbers<[1], [0], [0], [1], [0, 0, 1, 1], [], []>} : vector<32x8xf32>, vector<8x512xf32>, vector<32x512xf32> -> vector<32x512xf32>
    %99 = arith.addf %95, %98 : vector<32x512xf32>
    %cst_75 = arith.constant 0.000000e+00 : f32
    %100 = vector.broadcast %cst_75 : f32 to vector<32x512xf32>
    %101 = arith.maximumf %99, %100 : vector<32x512xf32>
    %c4 = arith.constant 4 : index
    %c0_76 = arith.constant 0 : index
    %c0_77 = arith.constant 0 : index
    %102 = vector.load %arg4[%c4, %c0_76, %c0_77] : memref<8x32x32xf32, #tpu.memory_space<vmem>>, vector<1x32x32xf32>
    %103 = vector.shape_cast %102 : vector<1x32x32xf32> to vector<32x32xf32>
    %cst_78 = arith.constant dense<0.000000e+00> : vector<32x512xf32>
    %104 = tpu.matmul %103, %101, %cst_78 {dimension_numbers = #tpu.dot_dimension_numbers<[1], [0], [0], [1], [0, 0, 1, 1], [], []>} : vector<32x32xf32>, vector<32x512xf32>, vector<32x512xf32> -> vector<32x512xf32>
    %c4_79 = arith.constant 4 : index
    %c0_80 = arith.constant 0 : index
    %c0_81 = arith.constant 0 : index
    %105 = vector.load %arg5[%c4_79, %c0_80, %c0_81] : memref<8x32x1xf32, #tpu.memory_space<vmem>>, vector<1x32x1xf32>
    %106 = vector.shape_cast %105 : vector<1x32x1xf32> to vector<32x1xf32>
    %107 = vector.broadcast %106 : vector<32x1xf32> to vector<32x512xf32>
    %108 = arith.addf %104, %107 : vector<32x512xf32>
    %cst_82 = arith.constant 0.000000e+00 : f32
    %109 = vector.broadcast %cst_82 : f32 to vector<32x512xf32>
    %110 = arith.maximumf %108, %109 : vector<32x512xf32>
    %c5 = arith.constant 5 : index
    %c0_83 = arith.constant 0 : index
    %c0_84 = arith.constant 0 : index
    %111 = vector.load %arg4[%c5, %c0_83, %c0_84] : memref<8x32x32xf32, #tpu.memory_space<vmem>>, vector<1x32x32xf32>
    %112 = vector.shape_cast %111 : vector<1x32x32xf32> to vector<32x32xf32>
    %cst_85 = arith.constant dense<0.000000e+00> : vector<32x512xf32>
    %113 = tpu.matmul %112, %110, %cst_85 {dimension_numbers = #tpu.dot_dimension_numbers<[1], [0], [0], [1], [0, 0, 1, 1], [], []>} : vector<32x32xf32>, vector<32x512xf32>, vector<32x512xf32> -> vector<32x512xf32>
    %c5_86 = arith.constant 5 : index
    %c0_87 = arith.constant 0 : index
    %c0_88 = arith.constant 0 : index
    %114 = vector.load %arg5[%c5_86, %c0_87, %c0_88] : memref<8x32x1xf32, #tpu.memory_space<vmem>>, vector<1x32x1xf32>
    %115 = vector.shape_cast %114 : vector<1x32x1xf32> to vector<32x1xf32>
    %116 = vector.broadcast %115 : vector<32x1xf32> to vector<32x512xf32>
    %117 = arith.addf %113, %116 : vector<32x512xf32>
    %cst_89 = arith.constant 0.000000e+00 : f32
    %118 = vector.broadcast %cst_89 : f32 to vector<32x512xf32>
    %119 = arith.maximumf %117, %118 : vector<32x512xf32>
    %c2_90 = arith.constant 2 : index
    %c0_91 = arith.constant 0 : index
    %c0_92 = arith.constant 0 : index
    %120 = vector.load %arg6[%c2_90, %c0_91, %c0_92] : memref<4x16x32xf32, #tpu.memory_space<vmem>>, vector<1x16x32xf32>
    %121 = vector.shape_cast %120 : vector<1x16x32xf32> to vector<16x32xf32>
    %cst_93 = arith.constant dense<0.000000e+00> : vector<16x512xf32>
    %122 = tpu.matmul %121, %119, %cst_93 {dimension_numbers = #tpu.dot_dimension_numbers<[1], [0], [0], [1], [0, 0, 1, 1], [], []>} : vector<16x32xf32>, vector<32x512xf32>, vector<16x512xf32> -> vector<16x512xf32>
    %c2_94 = arith.constant 2 : index
    %c0_95 = arith.constant 0 : index
    %c0_96 = arith.constant 0 : index
    %123 = vector.load %arg7[%c2_94, %c0_95, %c0_96] : memref<4x16x1xf32, #tpu.memory_space<vmem>>, vector<1x16x1xf32>
    %124 = vector.shape_cast %123 : vector<1x16x1xf32> to vector<16x1xf32>
    %125 = vector.broadcast %124 : vector<16x1xf32> to vector<16x512xf32>
    %126 = arith.addf %122, %125 : vector<16x512xf32>
    %127 = vector.extract_strided_slice %126 {offsets = [0, 0], sizes = [8, 512], strides = [1, 1]} : vector<16x512xf32> to vector<8x512xf32>
    %cst_97 = arith.constant 0.526315808 : f32
    %128 = vector.broadcast %cst_97 : f32 to vector<8x512xf32>
    %129 = arith.mulf %127, %128 : vector<8x512xf32>
    %130 = math.tanh %129 : vector<8x512xf32>
    %cst_98 = arith.constant 1.900000e+00 : f32
    %131 = vector.broadcast %cst_98 : f32 to vector<8x512xf32>
    %132 = arith.mulf %131, %130 : vector<8x512xf32>
    %133 = vector.extract_strided_slice %126 {offsets = [8, 0], sizes = [8, 512], strides = [1, 1]} : vector<16x512xf32> to vector<8x512xf32>
    %134 = math.exp %132 : vector<8x512xf32>
    %135 = arith.mulf %91, %134 : vector<8x512xf32>
    %136 = arith.addf %135, %133 : vector<8x512xf32>
    %137 = arith.addf %92, %132 : vector<8x512xf32>
    %c3_99 = arith.constant 3 : index
    %c0_100 = arith.constant 0 : index
    %c0_101 = arith.constant 0 : index
    %138 = vector.load %arg2[%c3_99, %c0_100, %c0_101] : memref<4x32x8xf32, #tpu.memory_space<vmem>>, vector<1x32x8xf32>
    %139 = vector.shape_cast %138 : vector<1x32x8xf32> to vector<32x8xf32>
    %cst_102 = arith.constant dense<0.000000e+00> : vector<32x512xf32>
    %140 = tpu.matmul %139, %136, %cst_102 {dimension_numbers = #tpu.dot_dimension_numbers<[1], [0], [0], [1], [0, 0, 1, 1], [], []>} : vector<32x8xf32>, vector<8x512xf32>, vector<32x512xf32> -> vector<32x512xf32>
    %c3_103 = arith.constant 3 : index
    %c0_104 = arith.constant 0 : index
    %c0_105 = arith.constant 0 : index
    %141 = vector.load %arg3[%c3_103, %c0_104, %c0_105] : memref<4x32x8xf32, #tpu.memory_space<vmem>>, vector<1x32x8xf32>
    %142 = vector.shape_cast %141 : vector<1x32x8xf32> to vector<32x8xf32>
    %cst_106 = arith.constant dense<0.000000e+00> : vector<32x512xf32>
    %143 = tpu.matmul %142, %1, %cst_106 {dimension_numbers = #tpu.dot_dimension_numbers<[1], [0], [0], [1], [0, 0, 1, 1], [], []>} : vector<32x8xf32>, vector<8x512xf32>, vector<32x512xf32> -> vector<32x512xf32>
    %144 = arith.addf %140, %143 : vector<32x512xf32>
    %cst_107 = arith.constant 0.000000e+00 : f32
    %145 = vector.broadcast %cst_107 : f32 to vector<32x512xf32>
    %146 = arith.maximumf %144, %145 : vector<32x512xf32>
    %c6 = arith.constant 6 : index
    %c0_108 = arith.constant 0 : index
    %c0_109 = arith.constant 0 : index
    %147 = vector.load %arg4[%c6, %c0_108, %c0_109] : memref<8x32x32xf32, #tpu.memory_space<vmem>>, vector<1x32x32xf32>
    %148 = vector.shape_cast %147 : vector<1x32x32xf32> to vector<32x32xf32>
    %cst_110 = arith.constant dense<0.000000e+00> : vector<32x512xf32>
    %149 = tpu.matmul %148, %146, %cst_110 {dimension_numbers = #tpu.dot_dimension_numbers<[1], [0], [0], [1], [0, 0, 1, 1], [], []>} : vector<32x32xf32>, vector<32x512xf32>, vector<32x512xf32> -> vector<32x512xf32>
    %c6_111 = arith.constant 6 : index
    %c0_112 = arith.constant 0 : index
    %c0_113 = arith.constant 0 : index
    %150 = vector.load %arg5[%c6_111, %c0_112, %c0_113] : memref<8x32x1xf32, #tpu.memory_space<vmem>>, vector<1x32x1xf32>
    %151 = vector.shape_cast %150 : vector<1x32x1xf32> to vector<32x1xf32>
    %152 = vector.broadcast %151 : vector<32x1xf32> to vector<32x512xf32>
    %153 = arith.addf %149, %152 : vector<32x512xf32>
    %cst_114 = arith.constant 0.000000e+00 : f32
    %154 = vector.broadcast %cst_114 : f32 to vector<32x512xf32>
    %155 = arith.maximumf %153, %154 : vector<32x512xf32>
    %c7 = arith.constant 7 : index
    %c0_115 = arith.constant 0 : index
    %c0_116 = arith.constant 0 : index
    %156 = vector.load %arg4[%c7, %c0_115, %c0_116] : memref<8x32x32xf32, #tpu.memory_space<vmem>>, vector<1x32x32xf32>
    %157 = vector.shape_cast %156 : vector<1x32x32xf32> to vector<32x32xf32>
    %cst_117 = arith.constant dense<0.000000e+00> : vector<32x512xf32>
    %158 = tpu.matmul %157, %155, %cst_117 {dimension_numbers = #tpu.dot_dimension_numbers<[1], [0], [0], [1], [0, 0, 1, 1], [], []>} : vector<32x32xf32>, vector<32x512xf32>, vector<32x512xf32> -> vector<32x512xf32>
    %c7_118 = arith.constant 7 : index
    %c0_119 = arith.constant 0 : index
    %c0_120 = arith.constant 0 : index
    %159 = vector.load %arg5[%c7_118, %c0_119, %c0_120] : memref<8x32x1xf32, #tpu.memory_space<vmem>>, vector<1x32x1xf32>
    %160 = vector.shape_cast %159 : vector<1x32x1xf32> to vector<32x1xf32>
    %161 = vector.broadcast %160 : vector<32x1xf32> to vector<32x512xf32>
    %162 = arith.addf %158, %161 : vector<32x512xf32>
    %cst_121 = arith.constant 0.000000e+00 : f32
    %163 = vector.broadcast %cst_121 : f32 to vector<32x512xf32>
    %164 = arith.maximumf %162, %163 : vector<32x512xf32>
    %c3_122 = arith.constant 3 : index
    %c0_123 = arith.constant 0 : index
    %c0_124 = arith.constant 0 : index
    %165 = vector.load %arg6[%c3_122, %c0_123, %c0_124] : memref<4x16x32xf32, #tpu.memory_space<vmem>>, vector<1x16x32xf32>
    %166 = vector.shape_cast %165 : vector<1x16x32xf32> to vector<16x32xf32>
    %cst_125 = arith.constant dense<0.000000e+00> : vector<16x512xf32>
    %167 = tpu.matmul %166, %164, %cst_125 {dimension_numbers = #tpu.dot_dimension_numbers<[1], [0], [0], [1], [0, 0, 1, 1], [], []>} : vector<16x32xf32>, vector<32x512xf32>, vector<16x512xf32> -> vector<16x512xf32>
    %c3_126 = arith.constant 3 : index
    %c0_127 = arith.constant 0 : index
    %c0_128 = arith.constant 0 : index
    %168 = vector.load %arg7[%c3_126, %c0_127, %c0_128] : memref<4x16x1xf32, #tpu.memory_space<vmem>>, vector<1x16x1xf32>
    %169 = vector.shape_cast %168 : vector<1x16x1xf32> to vector<16x1xf32>
    %170 = vector.broadcast %169 : vector<16x1xf32> to vector<16x512xf32>
    %171 = arith.addf %167, %170 : vector<16x512xf32>
    %172 = vector.extract_strided_slice %171 {offsets = [0, 0], sizes = [8, 512], strides = [1, 1]} : vector<16x512xf32> to vector<8x512xf32>
    %cst_129 = arith.constant 0.526315808 : f32
    %173 = vector.broadcast %cst_129 : f32 to vector<8x512xf32>
    %174 = arith.mulf %172, %173 : vector<8x512xf32>
    %175 = math.tanh %174 : vector<8x512xf32>
    %cst_130 = arith.constant 1.900000e+00 : f32
    %176 = vector.broadcast %cst_130 : f32 to vector<8x512xf32>
    %177 = arith.mulf %176, %175 : vector<8x512xf32>
    %178 = vector.extract_strided_slice %171 {offsets = [8, 0], sizes = [8, 512], strides = [1, 1]} : vector<16x512xf32> to vector<8x512xf32>
    %179 = math.exp %177 : vector<8x512xf32>
    %180 = arith.mulf %136, %179 : vector<8x512xf32>
    %181 = arith.addf %180, %178 : vector<8x512xf32>
    %182 = arith.addf %137, %177 : vector<8x512xf32>
    %cst_131 = arith.constant dense<0.000000e+00> : vector<512xf32>
    %183 = vector.multi_reduction <add>, %182, %cst_131 [0] : vector<8x512xf32> to vector<512xf32>
    %184 = vector.shape_cast %183 : vector<512xf32> to vector<1x512xf32>
    %185 = tpu.iota {dimensions = array<i32: 0>} : vector<8x512xi32>
    %c4_i32 = arith.constant 4 : i32
    %186 = vector.broadcast %c4_i32 : i32 to vector<8x512xi32>
    %187 = arith.cmpi eq, %185, %186 : vector<8x512xi32>
    %188 = vector.shape_cast %184 : vector<1x512xf32> to vector<1x512xf32>
    %189 = vector.broadcast %188 : vector<1x512xf32> to vector<8x512xf32>
    %190 = arith.select %187, %189, %181 : vector<8x512xi1>, vector<8x512xf32>
    %c0_132 = arith.constant 0 : index
    %c0_133 = arith.constant 0 : index
    %191 = vector.load %arg8[%c0_132, %c0_133] : memref<8x512xf32, #tpu.memory_space<vmem>>, vector<8x512xf32>
    tpu.vector_store %arg8[%c0_132, %c0_133], %190 {strides = array<i32>} : memref<8x512xf32, #tpu.memory_space<vmem>>, vector<8x512xf32>,
    return
  }
  func.func @transform_0(%arg0: i32) -> (i32, i32) {
    %c0_i32 = arith.constant 0 : i32
    %c0_i32_0 = arith.constant 0 : i32
    return %c0_i32, %arg0 : i32, i32
  }
  func.func @transform_1(%arg0: i32) -> (i32, i32, i32) {
    %c0_i32 = arith.constant 0 : i32
    %c0_i32_0 = arith.constant 0 : i32
    %c0_i32_1 = arith.constant 0 : i32
    %c0_i32_2 = arith.constant 0 : i32
    return %c0_i32, %c0_i32_0, %c0_i32_1 : i32, i32, i32
  }
  func.func @transform_2(%arg0: i32) -> (i32, i32, i32) {
    %c0_i32 = arith.constant 0 : i32
    %c0_i32_0 = arith.constant 0 : i32
    %c0_i32_1 = arith.constant 0 : i32
    %c0_i32_2 = arith.constant 0 : i32
    return %c0_i32, %c0_i32_0, %c0_i32_1 : i32, i32, i32
  }
  func.func @transform_3(%arg0: i32) -> (i32, i32, i32) {
    %c0_i32 = arith.constant 0 : i32
    %c0_i32_0 = arith.constant 0 : i32
    %c0_i32_1 = arith.constant 0 : i32
    %c0_i32_2 = arith.constant 0 : i32
    return %c0_i32, %c0_i32_0, %c0_i32_1 : i32, i32, i32
  }
  func.func @transform_4(%arg0: i32) -> (i32, i32, i32) {
    %c0_i32 = arith.constant 0 : i32
    %c0_i32_0 = arith.constant 0 : i32
    %c0_i32_1 = arith.constant 0 : i32
    %c0_i32_2 = arith.constant 0 : i32
    return %c0_i32, %c0_i32_0, %c0_i32_1 : i32, i32, i32
  }
  func.func @transform_5(%arg0: i32) -> (i32, i32, i32) {
    %c0_i32 = arith.constant 0 : i32
    %c0_i32_0 = arith.constant 0 : i32
    %c0_i32_1 = arith.constant 0 : i32
    %c0_i32_2 = arith.constant 0 : i32
    return %c0_i32, %c0_i32_0, %c0_i32_1 : i32, i32, i32
  }
  func.func @transform_6(%arg0: i32) -> (i32, i32, i32) {
    %c0_i32 = arith.constant 0 : i32
    %c0_i32_0 = arith.constant 0 : i32
    %c0_i32_1 = arith.constant 0 : i32
    %c0_i32_2 = arith.constant 0 : i32
    return %c0_i32, %c0_i32_0, %c0_i32_1 : i32, i32, i32
  }
  func.func @transform_7(%arg0: i32) -> (i32, i32) {
    %c0_i32 = arith.constant 0 : i32
    %c0_i32_0 = arith.constant 0 : i32
    return %c0_i32, %arg0 : i32, i32
  }
}

</mosaic_0001>

<llo_original>
// kernel: posterior_sampler_forward.1
$region0: #{posterior_sampler_forward.1}
  #allocation0 [shape = 'u32[]', space=smem, size = 0x4, offset = 0x4, fixed_abs, tag = 'smem constant byte address 0x4 - core index']
  #allocation1 [shape = 'u32[144,128]{1,0:T(1,128)}', space=vmem, size = 0x12000, scoped, tag = 'internal scratch']
  %s0 = inlined_call_operand.vmem [shape: f32[16,1024], index: 0, kind: input, shape index: {}]
  %s1 = inlined_call_operand.hbm [shape: f32[4,32,8], index: 1, kind: input, shape index: {}]
  %s2 = inlined_call_operand.hbm [shape: f32[4,32,8], index: 2, kind: input, shape index: {}]
  %s3 = inlined_call_operand.vmem [shape: f32[8,32,32], index: 3, kind: input, shape index: {}]
  %s4 = inlined_call_operand.hbm [shape: f32[8,32,1], index: 4, kind: input, shape index: {}]
  %s5 = inlined_call_operand.vmem [shape: f32[4,16,32], index: 5, kind: input, shape index: {}]
  %s6 = inlined_call_operand.hbm [shape: f32[4,16,1], index: 6, kind: input, shape index: {}]
  %s7 = inlined_call_operand.vmem [shape: f32[8,1024], index: 7, kind: output, shape index: {}]
  %s8 = sld [smem:[#allocation0]]
  $region100: #{posterior_sampler_forward.1} parent=0
    _
  %s10 = ssub.s32 1, %s8
  %s11 = scalar_select 0, %s10, %s8
  $region1: #{posterior_sampler_forward.1} parent=0
    #allocation2 [shape = 'u8[65536]{0}', space=vmem, size = 0x10000, scoped, tag = 'input window, operand 0']
    #allocation3 [shape = 'u8[65536]{0}', space=vmem, size = 0x10000, scoped, tag = 'input window, operand 1, single buffered']
    #allocation4 [shape = 's32[2]{0}', space=sflag, size = 0x8, scoped, tag = 'scoped memory for posterior_sampler_forward.1']
    #allocation5 [shape = 'u8[65536]{0}', space=vmem, size = 0x10000, scoped, tag = 'input window, operand 2, single buffered']
    #allocation6 [shape = 's32[1]{0}', space=sflag, size = 0x4, scoped, tag = 'scoped memory for posterior_sampler_forward.1']
    #allocation7 [shape = 'u8[131072]{0}', space=vmem, size = 0x20000, scoped, tag = 'input window, operand 4, single buffered']
    #allocation8 [shape = 'u8[32768]{0}', space=vmem, size = 0x8000, scoped, tag = 'input window, operand 6, single buffered']
    #allocation9 [shape = 's32[1]{0}', space=sflag, size = 0x4, scoped, tag = 'scoped memory for posterior_sampler_forward.1']
    %12 = vsyncpa [#allocation4], 0
    %13 = vsyncpa [#allocation6], 0
    %14 = vsyncpa [#allocation9], 0
    loop: start=0, step=1, limit=4
    $region2: #{posterior_sampler_forward.1} parent=1 // loop_pre_header
      _
    $region3: #{posterior_sampler_forward.1} parent=1 // loop_header
      %s16 = sphi 0, %s20
      %p17 = scmp.ge.s32.totalorder %s16, 4
      %s26 = sphi 0, %s28
      %s29 = sphi 0, %s26
      %s30 = sphi 0, %s29
      %s46 = sphi 0, %s30
      %s50 = sphi 0, %s50
      %s52 = sphi 0, %s50
      %s53 = sphi 0, %s52
      %s67 = sphi 0, %s53
      %s71 = sphi 0, %s71
      %s73 = sphi 0, %s71
      %s74 = sphi 0, %s73
      %s88 = sphi 0, %s74
      %s92 = sphi 0, %s92
      %s94 = sphi 0, %s92
      %s95 = sphi 0, %s94
      %s109 = sphi 0, %s95
      %s113 = sphi 0, %s113
      %s115 = sphi 0, %s113
      %s116 = sphi 0, %s115
      %s130 = sphi 0, %s116
      %s134 = sphi 0, %s134
      %s136 = sphi 0, %s134
      %s137 = sphi 0, %s136
      %s151 = sphi 0, %s137
      %s155 = sphi 0, %s155
      %s157 = sphi 0, %s155
      %s158 = sphi 0, %s157
      %s172 = sphi 0, %s158
      %s178 = sphi 0, %s180
      %s181 = sphi 0, %s178
      %s182 = sphi 0, %s181
      %s198 = sphi 0, %s182
    $region4: #{posterior_sampler_forward.1} parent=1 // loop_header_branch
      %19 = sbr.rel (%p17) target = $region8
    $region5: #{posterior_sampler_forward.1} parent=1 // loop_body
      %s21 = ssub.s32 %s16, 1
      %s22 = ssub.s32 %s16, 2
      %s23 = sadd.s32 %s16, 1
      %s24 = ssub.s32 %s16, %s23
      %p25 = scmp.eq.s32.totalorder %s24, 0
      %s27 = sadd.s32 %s26, 1
      %s28 = scalar_select %p25, %s26, %s27
      %p31 = pneg %p25
      %p32 = scmp.eq.s32.totalorder %s16, 1
      %p33 = por %p31, %p32
      %p34 = scmp.ne.s32.totalorder %s26, %s29
      %p35 = scmp.eq.s32.totalorder %s16, 0
      %p36 = por %p34, %p35
      %p37 = scmp.ne.s32.totalorder %s26, %s29
      %p38 = scmp.eq.s32.totalorder %s21, 1
      %p39 = por %p37, %p38
      %p40 = scmp.ne.s32.totalorder %s29, %s30
      %p41 = scmp.eq.s32.totalorder %s21, 0
      %p42 = por %p40, %p41
      %p43 = scmp.ne.s32.totalorder %s29, %s30
      %p44 = scmp.eq.s32.totalorder %s22, 1
      %p45 = por %p43, %p44
      %p47 = scmp.ne.s32.totalorder %s30, %s46
      %p48 = scmp.eq.s32.totalorder %s22, 0
      %p49 = por %p47, %p48
      %s51 = sadd.s32 %s50, 1
      %p54 = scmp.eq.s32.totalorder %s16, 1
      %p55 = scmp.ne.s32.totalorder %s50, %s52
      %p56 = scmp.eq.s32.totalorder %s16, 0
      %p57 = por %p55, %p56
      %p58 = scmp.ne.s32.totalorder %s50, %s52
      %p59 = scmp.eq.s32.totalorder %s21, 1
      %p60 = por %p58, %p59
      %p61 = scmp.ne.s32.totalorder %s52, %s53
      %p62 = scmp.eq.s32.totalorder %s21, 0
      %p63 = por %p61, %p62
      %p64 = scmp.ne.s32.totalorder %s52, %s53
      %p65 = scmp.eq.s32.totalorder %s22, 1
      %p66 = por %p64, %p65
      %p68 = scmp.ne.s32.totalorder %s53, %s67
      %p69 = scmp.eq.s32.totalorder %s22, 0
      %p70 = por %p68, %p69
      %s72 = sadd.s32 %s71, 1
      %p75 = scmp.eq.s32.totalorder %s16, 1
      %p76 = scmp.ne.s32.totalorder %s71, %s73
      %p77 = scmp.eq.s32.totalorder %s16, 0
      %p78 = por %p76, %p77
      %p79 = scmp.ne.s32.totalorder %s71, %s73
      %p80 = scmp.eq.s32.totalorder %s21, 1
      %p81 = por %p79, %p80
      %p82 = scmp.ne.s32.totalorder %s73, %s74
      %p83 = scmp.eq.s32.totalorder %s21, 0
      %p84 = por %p82, %p83
      %p85 = scmp.ne.s32.totalorder %s73, %s74
      %p86 = scmp.eq.s32.totalorder %s22, 1
      %p87 = por %p85, %p86
      %p89 = scmp.ne.s32.totalorder %s74, %s88
      %p90 = scmp.eq.s32.totalorder %s22, 0
      %p91 = por %p89, %p90
      %s93 = sadd.s32 %s92, 1
      %p96 = scmp.eq.s32.totalorder %s16, 1
      %p97 = scmp.ne.s32.totalorder %s92, %s94
      %p98 = scmp.eq.s32.totalorder %s16, 0
      %p99 = por %p97, %p98
      %p100 = scmp.ne.s32.totalorder %s92, %s94
      %p101 = scmp.eq.s32.totalorder %s21, 1
      %p102 = por %p100, %p101
      %p103 = scmp.ne.s32.totalorder %s94, %s95
      %p104 = scmp.eq.s32.totalorder %s21, 0
      %p105 = por %p103, %p104
      %p106 = scmp.ne.s32.totalorder %s94, %s95
      %p107 = scmp.eq.s32.totalorder %s22, 1
      %p108 = por %p106, %p107
      %p110 = scmp.ne.s32.totalorder %s95, %s109
      %p111 = scmp.eq.s32.totalorder %s22, 0
      %p112 = por %p110, %p111
      %s114 = sadd.s32 %s113, 1
      %p117 = scmp.eq.s32.totalorder %s16, 1
      %p118 = scmp.ne.s32.totalorder %s113, %s115
      %p119 = scmp.eq.s32.totalorder %s16, 0
      %p120 = por %p118, %p119
      %p121 = scmp.ne.s32.totalorder %s113, %s115
      %p122 = scmp.eq.s32.totalorder %s21, 1
      %p123 = por %p121, %p122
      %p124 = scmp.ne.s32.totalorder %s115, %s116
      %p125 = scmp.eq.s32.totalorder %s21, 0
      %p126 = por %p124, %p125
      %p127 = scmp.ne.s32.totalorder %s115, %s116
      %p128 = scmp.eq.s32.totalorder %s22, 1
      %p129 = por %p127, %p128
      %p131 = scmp.ne.s32.totalorder %s116, %s130
      %p132 = scmp.eq.s32.totalorder %s22, 0
      %p133 = por %p131, %p132
      %s135 = sadd.s32 %s134, 1
      %p138 = scmp.eq.s32.totalorder %s16, 1
      %p139 = scmp.ne.s32.totalorder %s134, %s136
      %p140 = scmp.eq.s32.totalorder %s16, 0
      %p141 = por %p139, %p140
      %p142 = scmp.ne.s32.totalorder %s134, %s136
      %p143 = scmp.eq.s32.totalorder %s21, 1
      %p144 = por %p142, %p143
      %p145 = scmp.ne.s32.totalorder %s136, %s137
      %p146 = scmp.eq.s32.totalorder %s21, 0
      %p147 = por %p145, %p146
      %p148 = scmp.ne.s32.totalorder %s136, %s137
      %p149 = scmp.eq.s32.totalorder %s22, 1
      %p150 = por %p148, %p149
      %p152 = scmp.ne.s32.totalorder %s137, %s151
      %p153 = scmp.eq.s32.totalorder %s22, 0
      %p154 = por %p152, %p153
      %s156 = sadd.s32 %s155, 1
      %p159 = scmp.eq.s32.totalorder %s16, 1
      %p160 = scmp.ne.s32.totalorder %s155, %s157
      %p161 = scmp.eq.s32.totalorder %s16, 0
      %p162 = por %p160, %p161
      %p163 = scmp.ne.s32.totalorder %s155, %s157
      %p164 = scmp.eq.s32.totalorder %s21, 1
      %p165 = por %p163, %p164
      %p166 = scmp.ne.s32.totalorder %s157, %s158
      %p167 = scmp.eq.s32.totalorder %s21, 0
      %p168 = por %p166, %p167
      %p169 = scmp.ne.s32.totalorder %s157, %s158
      %p170 = scmp.eq.s32.totalorder %s22, 1
      %p171 = por %p169, %p170
      %p173 = scmp.ne.s32.totalorder %s158, %s172
      %p174 = scmp.eq.s32.totalorder %s22, 0
      %p175 = por %p173, %p174
      %s176 = ssub.s32 %s16, %s23
      %p177 = scmp.eq.s32.totalorder %s176, 0
      %s179 = sadd.s32 %s178, 1
      %s180 = scalar_select %p177, %s178, %s179
      %p183 = pneg %p177
      %p184 = scmp.eq.s32.totalorder %s16, 1
      %p185 = por %p183, %p184
      %p186 = scmp.ne.s32.totalorder %s178, %s181
      %p187 = scmp.eq.s32.totalorder %s16, 0
      %p188 = por %p186, %p187
      %p189 = scmp.ne.s32.totalorder %s178, %s181
      %p190 = scmp.eq.s32.totalorder %s21, 1
      %p191 = por %p189, %p190
      %p192 = scmp.ne.s32.totalorder %s181, %s182
      %p193 = scmp.eq.s32.totalorder %s21, 0
      %p194 = por %p192, %p193
      %p195 = scmp.ne.s32.totalorder %s181, %s182
      %p196 = scmp.eq.s32.totalorder %s22, 1
      %p197 = por %p195, %p196
      %p199 = scmp.ne.s32.totalorder %s182, %s198
      %p200 = scmp.eq.s32.totalorder %s22, 0
      %p201 = por %p199, %p200
      %p202 = scmp.le.s32.totalorder 1, %s16
      %p203 = scmp.lt.s32.totalorder %s16, 3
      %p204 = pnand %p202, %p203
      %p205 = pneg %p204
      // Predicated region
      $region9: #{posterior_sampler_forward.1} parent=5 // pred_check
        _
      $region10: #{posterior_sampler_forward.1} parent=5 // pred_check_branch
        %207 = sbr.rel (%p204) target = $region12
      $region11: #{posterior_sampler_forward.1} parent=5 // pred_region
        %s208 = ssub.s32 %s16, 1
        // Predicated region
        $region13: #{posterior_sampler_forward.1} parent=11 // pred_check
          %p209 = pneg %p63
        $region14: #{posterior_sampler_forward.1} parent=11 // pred_check_branch
          %211 = sbr.rel (%p209) target = $region16
        $region15: #{posterior_sampler_forward.1} parent=11 // pred_region
          %s213 = ssub.s32 2048, 2048
          %214 = vsyncadd [#allocation4], %s213
          %s215 = sshll.u32 [#allocation3], 4
          %s216 = int_to_ptr.vmem [resolvable:$true] %s215
          %221 = dma.hbm_to_vmem [thread:$0]  %s1, 2048, %s216, [#allocation4], 128, 128, 8
        $region16: #{posterior_sampler_forward.1} parent=11 // pred_fallthru
          _
        // Predicated region
        $region17: #{posterior_sampler_forward.1} parent=11 // pred_check
          %p222 = pneg %p84
        $region18: #{posterior_sampler_forward.1} parent=11 // pred_check_branch
          %224 = sbr.rel (%p222) target = $region20
        $region19: #{posterior_sampler_forward.1} parent=11 // pred_region
          %s226 = ssub.s32 2048, 2048
          %227 = vsyncadd [#allocation6], %s226
          %s228 = sshll.u32 [#allocation5], 4
          %s229 = int_to_ptr.vmem [resolvable:$true] %s228
          %234 = dma.hbm_to_vmem [thread:$0]  %s2, 2048, %s229, [#allocation6], 128, 128, 8
        $region20: #{posterior_sampler_forward.1} parent=11 // pred_fallthru
          _
        // Predicated region
        $region21: #{posterior_sampler_forward.1} parent=11 // pred_check
          %p235 = pneg %p105
        $region22: #{posterior_sampler_forward.1} parent=11 // pred_check_branch
          %237 = sbr.rel (%p235) target = $region24
        $region23: #{posterior_sampler_forward.1} parent=11 // pred_region
          _
        $region24: #{posterior_sampler_forward.1} parent=11 // pred_fallthru
          _
        // Predicated region
        $region25: #{posterior_sampler_forward.1} parent=11 // pred_check
          %p238 = pneg %p126
        $region26: #{posterior_sampler_forward.1} parent=11 // pred_check_branch
          %240 = sbr.rel (%p238) target = $region28
        $region27: #{posterior_sampler_forward.1} parent=11 // pred_region
          %s242 = ssub.s32 4096, 4096
          %243 = vsyncadd [#allocation6], %s242
          %s244 = sshll.u32 [#allocation7], 4
          %s245 = int_to_ptr.vmem [resolvable:$true] %s244
          %250 = dma.hbm_to_vmem [thread:$0]  %s4, 4096, %s245, [#allocation6], 128, 128, 8
        $region28: #{posterior_sampler_forward.1} parent=11 // pred_fallthru
          _
        // Predicated region
        $region29: #{posterior_sampler_forward.1} parent=11 // pred_check
          %p251 = pneg %p147
        $region30: #{posterior_sampler_forward.1} parent=11 // pred_check_branch
          %253 = sbr.rel (%p251) target = $region32
        $region31: #{posterior_sampler_forward.1} parent=11 // pred_region
          _
        $region32: #{posterior_sampler_forward.1} parent=11 // pred_fallthru
          _
        // Predicated region
        $region33: #{posterior_sampler_forward.1} parent=11 // pred_check
          %p254 = pneg %p168
        $region34: #{posterior_sampler_forward.1} parent=11 // pred_check_branch
          %256 = sbr.rel (%p254) target = $region36
        $region35: #{posterior_sampler_forward.1} parent=11 // pred_region
          %s258 = ssub.s32 1024, 1024
          %259 = vsyncadd [#allocation9], %s258
          %s260 = sshll.u32 [#allocation8], 4
          %s261 = int_to_ptr.vmem [resolvable:$true] %s260
          %266 = dma.hbm_to_vmem [thread:$0]  %s6, 1024, %s261, [#allocation9], 128, 128, 8
        $region36: #{posterior_sampler_forward.1} parent=11 // pred_fallthru
          _
      $region12: #{posterior_sampler_forward.1} parent=5 // pred_fallthru
        _
      %p267 = scmp.lt.s32.totalorder %s16, 2
      // Predicated region
      $region37: #{posterior_sampler_forward.1} parent=5 // pred_check
        %p268 = pneg %p267
      $region38: #{posterior_sampler_forward.1} parent=5 // pred_check_branch
        %270 = sbr.rel (%p268) target = $region40
      $region39: #{posterior_sampler_forward.1} parent=5 // pred_region
        // Predicated region
        $region41: #{posterior_sampler_forward.1} parent=39 // pred_check
          %p271 = pneg %p36
        $region42: #{posterior_sampler_forward.1} parent=39 // pred_check_branch
          %273 = sbr.rel (%p271) target = $region44
        $region43: #{posterior_sampler_forward.1} parent=39 // pred_region
          %s274 = sand.u32 %s26, 1
          %s275 = sand.u32 %s26, 1
          %s276 = smul.addr %s275, 64
          %s277 = scalar_lea.vmem [#allocation2], %s276
          %s278 = smul.u32 4, %s16
          %s279 = smul.addr %s278, 8
          %s280 = scalar_lea.vmem %s0, %s279
          // Predicated region
          $region45: #{posterior_sampler_forward.1} parent=43 // pred_check
            _
          $region46: #{posterior_sampler_forward.1} parent=43 // pred_check_branch
            %282 = sbr.rel (0) target = $region48
          $region47: #{posterior_sampler_forward.1} parent=43 // pred_region
            // Predicated region
            $region49: #{posterior_sampler_forward.1} parent=47 // pred_check
              _
            $region50: #{posterior_sampler_forward.1} parent=47 // pred_check_branch
              %284 = sbr.rel (0) target = $region52
            $region51: #{posterior_sampler_forward.1} parent=47 // pred_region
              loop: start=0, step=1, limit=1
              $region53: #{posterior_sampler_forward.1} parent=51 // loop_pre_header
                _
              $region54: #{posterior_sampler_forward.1} parent=51 // loop_header
                %s286 = sphi 0, %s290
                %p287 = scmp.ge.s32.totalorder %s286, 1
                %s291 = sphi %s280, %s280
                %s292 = sphi %s277, %s277
              $region55: #{posterior_sampler_forward.1} parent=51 // loop_header_branch
                %289 = sbr.rel (%p287) target = $region59
              $region56: #{posterior_sampler_forward.1} parent=51 // loop_body
                %v293 = vld [vmem:[%s291] sm:$0xff]
                %294 = vst [vmem:[%s292] sm:$0xff] %v293
                %v295 = vld [vmem:[%s291 + $0x8] sm:$0xff]
                %296 = vst [vmem:[%s292 + $0x8] sm:$0xff] %v295
                %v297 = vld [vmem:[%s291 + $0x10] sm:$0xff]
                %298 = vst [vmem:[%s292 + $0x10] sm:$0xff] %v297
                %v299 = vld [vmem:[%s291 + $0x18] sm:$0xff]
                %300 = vst [vmem:[%s292 + $0x18] sm:$0xff] %v299
                %v301 = vld [vmem:[%s291 + $0x40] sm:$0xff]
                %302 = vst [vmem:[%s292 + $0x20] sm:$0xff] %v301
                %v303 = vld [vmem:[%s291 + $0x48] sm:$0xff]
                %304 = vst [vmem:[%s292 + $0x28] sm:$0xff] %v303
                %v305 = vld [vmem:[%s291 + $0x50] sm:$0xff]
                %306 = vst [vmem:[%s292 + $0x30] sm:$0xff] %v305
                %v307 = vld [vmem:[%s291 + $0x58] sm:$0xff]
                %308 = vst [vmem:[%s292 + $0x38] sm:$0xff] %v307
              $region57: #{posterior_sampler_forward.1} parent=51 // loop_footer
                %s290 = sadd.s32 1, %s286
              $region58: #{posterior_sampler_forward.1} parent=51 // loop_footer_branch
                %285 = sbr.rel target = $region54
              $region59: #{posterior_sampler_forward.1} parent=51 // loop_exit
                _
            $region52: #{posterior_sampler_forward.1} parent=47 // pred_fallthru
              _
            // Predicated region
            $region60: #{posterior_sampler_forward.1} parent=47 // pred_check
              _
            $region61: #{posterior_sampler_forward.1} parent=47 // pred_check_branch
              %310 = sbr.rel target = $region63
            $region62: #{posterior_sampler_forward.1} parent=47 // pred_region
              _
            $region63: #{posterior_sampler_forward.1} parent=47 // pred_fallthru
              _
          $region48: #{posterior_sampler_forward.1} parent=43 // pred_fallthru
            _
          %311 = vnop
        $region44: #{posterior_sampler_forward.1} parent=39 // pred_fallthru
          _
      $region40: #{posterior_sampler_forward.1} parent=5 // pred_fallthru
        _
      %p312 = scmp.le.s32.totalorder 1, %s16
      %p313 = scmp.lt.s32.totalorder %s16, 3
      %p314 = pnand %p312, %p313
      %p315 = pneg %p314
      // Predicated region
      $region64: #{posterior_sampler_forward.1} parent=5 // pred_check
        _
      $region65: #{posterior_sampler_forward.1} parent=5 // pred_check_branch
        %317 = sbr.rel (%p314) target = $region67
      $region66: #{posterior_sampler_forward.1} parent=5 // pred_region
        %s318 = ssub.s32 %s16, 1
        %s319 = sand.u32 %s29, 1
        %s320 = sand.u32 %s29, 1
        %s321 = smul.addr %s320, 64
        %s322 = scalar_lea.vmem [#allocation2], %s321
        // Predicated region
        $region68: #{posterior_sampler_forward.1} parent=66 // pred_check
          %p323 = pneg %p42
        $region69: #{posterior_sampler_forward.1} parent=66 // pred_check_branch
          %325 = sbr.rel (%p323) target = $region71
        $region70: #{posterior_sampler_forward.1} parent=66 // pred_region
          _
        $region71: #{posterior_sampler_forward.1} parent=66 // pred_fallthru
          _
        // Predicated region
        $region72: #{posterior_sampler_forward.1} parent=66 // pred_check
          %p326 = pneg %p63
        $region73: #{posterior_sampler_forward.1} parent=66 // pred_check_branch
          %328 = sbr.rel (%p326) target = $region75
        $region74: #{posterior_sampler_forward.1} parent=66 // pred_region
          %329 = dma.done [#allocation4], 2048
        $region75: #{posterior_sampler_forward.1} parent=66 // pred_fallthru
          _
        // Predicated region
        $region76: #{posterior_sampler_forward.1} parent=66 // pred_check
          %p330 = pneg %p84
        $region77: #{posterior_sampler_forward.1} parent=66 // pred_check_branch
          %332 = sbr.rel (%p330) target = $region79
        $region78: #{posterior_sampler_forward.1} parent=66 // pred_region
          %333 = dma.done [#allocation6], 2048
        $region79: #{posterior_sampler_forward.1} parent=66 // pred_fallthru
          _
        // Predicated region
        $region80: #{posterior_sampler_forward.1} parent=66 // pred_check
          %p334 = pneg %p126
        $region81: #{posterior_sampler_forward.1} parent=66 // pred_check_branch
          %336 = sbr.rel (%p334) target = $region83
        $region82: #{posterior_sampler_forward.1} parent=66 // pred_region
          %337 = dma.done [#allocation6], 4096
        $region83: #{posterior_sampler_forward.1} parent=66 // pred_fallthru
          _
        // Predicated region
        $region84: #{posterior_sampler_forward.1} parent=66 // pred_check
          %p338 = pneg %p168
        $region85: #{posterior_sampler_forward.1} parent=66 // pred_check_branch
          %340 = sbr.rel (%p338) target = $region87
        $region86: #{posterior_sampler_forward.1} parent=66 // pred_region
          %341 = dma.done [#allocation9], 1024
        $region87: #{posterior_sampler_forward.1} parent=66 // pred_fallthru
          _
        %s342 = sand.u32 %s29, 1
        %s343 = sand.u32 %s29, 1
        %s344 = smul.addr %s343, 64
        %s345 = scalar_lea.vmem [#allocation2], %s344
        %p346 = pneg %p42
        %p347 = pneg %p39
        %p348 = pneg %p63
        %p349 = pneg %p60
        %p350 = pneg %p84
        %p351 = pneg %p81
        %p352 = pneg %p105
        %p353 = pneg %p102
        %p354 = pneg %p126
        %p355 = pneg %p123
        %p356 = pneg %p147
        %p357 = pneg %p144
        %p358 = pneg %p168
        %p359 = pneg %p165
        %p360 = pneg %p194
        %p361 = pneg %p191
        %s362 = smul.u32 4, %s21
        %p363 = scmp.lt.s32.totalorder %s362, 7
        %s364 = scalar_select %p363, %s362, 7
        %s365 = smul.addr %s364, 8
        %s366 = scalar_lea.vmem %s7, %s365
        %s367 = smul.u32 4, %s21
        %s368 = smul.u32 4, %s21
        %p369 = scmp.lt.s32.totalorder %s368, 7
        %s370 = scalar_select %p369, %s368, 7
        %s371 = smul.addr %s370, 8
        %s372 = scalar_lea.vmem %s7, %s371
        %s373 = smul.u32 4, %s21
        %v374 = vld [vmem:[%s322] sm:$0xff]
        %v375 = vld [vmem:[%s322 + $0x8] sm:$0xff]
        %v376 = vld [vmem:[%s322 + $0x10] sm:$0xff]
        %v377 = vld [vmem:[%s322 + $0x18] sm:$0xff]
        %v378 = vld [vmem:[%s322 + $0x20] sm:$0xff]
        %v379 = vld [vmem:[%s322 + $0x28] sm:$0xff]
        %v380 = vld [vmem:[%s322 + $0x30] sm:$0xff]
        %v381 = vld [vmem:[%s322 + $0x38] sm:$0xff]
        %v382 = vld [vmem:[#allocation3] sm:$0xff]
        %v383 = vld [vmem:[#allocation3 + $0x8] sm:$0xff]
        %v384 = vld [vmem:[#allocation3 + $0x10] sm:$0xff]
        %v385 = vld [vmem:[#allocation3 + $0x18] sm:$0xff]
        %v386 = vld [vmem:[#allocation5] sm:$0xff]
        %v387 = vld [vmem:[#allocation5 + $0x8] sm:$0xff]
        %v388 = vld [vmem:[#allocation5 + $0x10] sm:$0xff]
        %v389 = vld [vmem:[#allocation5 + $0x18] sm:$0xff]
        %vm390 = vcmask 64512
        %v392 = vsel %vm390, %v386, 0
        %v395 = vsel %vm390, %v387, 0
        %v398 = vsel %vm390, %v388, 0
        %v401 = vsel %vm390, %v389, 0
        %403 = vmatprep.subr.mxu0 %v379
        %404 = vmatpush1.msra.mxu0 %v378
        %405 = vmatprep.subr.mxu0 0.0
        %406 = vmatpush1.msra.mxu0 0.0
        %407 = vmatprep.subr.mxu0 0.0
        %408 = vmatpush1.msra.mxu0 0.0
        %409 = vmatprep.subr.mxu0 0.0
        %410 = vmatpush1.msra.mxu0 0.0
        %411 = vmatprep.subr.mxu0 0.0
        %412 = vmatpush1.msra.mxu0 0.0
        %413 = vmatprep.subr.mxu0 0.0
        %414 = vmatpush1.msra.mxu0 0.0
        %415 = vmatprep.subr.mxu0 0.0
        %416 = vmatpush1.msra.mxu0 0.0
        %417 = vmatprep.subr.mxu0 0.0
        %418 = vmatpush1.msra.mxu0 0.0
        %419 = vmatprep.subr.mxu0 0.0
        %420 = vmatpush1.msra.mxu0 0.0
        %421 = vmatprep.subr.mxu0 0.0
        %422 = vmatpush1.msra.mxu0 0.0
        %423 = vmatprep.subr.mxu0 0.0
        %424 = vmatpush1.msra.mxu0 0.0
        %425 = vmatprep.subr.mxu0 0.0
        %426 = vmatpush1.msra.mxu0 0.0
        %427 = vmatprep.subr.mxu0 0.0
        %428 = vmatpush1.msra.mxu0 0.0
        %429 = vmatprep.subr.mxu0 0.0
        %430 = vmatpush1.msra.mxu0 0.0
        %431 = vmatprep.subr.mxu0 0.0
        %432 = vmatpush1.msra.mxu0 0.0
        %433 = vmatprep.subr.mxu0 0.0
        %434 = vmatpush1.msra.mxu0 0.0
        %435 = vmatprep.subr.mxu0 0.0
        %436 = vmatpush1.msra.mxu0 0.0
        %437 = vmatprep.subr.mxu0 0.0
        %438 = vmatpush1.msra.mxu0 0.0
        %439 = vmatprep.subr.mxu0 0.0
        %440 = vmatpush1.msra.mxu0 0.0
        %441 = vmatprep.subr.mxu0 0.0
        %442 = vmatpush1.msra.mxu0 0.0
        %443 = vmatprep.subr.mxu0 0.0
        %444 = vmatpush1.msra.mxu0 0.0
        %445 = vmatprep.subr.mxu0 0.0
        %446 = vmatpush1.msra.mxu0 0.0
        %447 = vmatprep.subr.mxu0 0.0
        %448 = vmatpush1.msra.mxu0 0.0
        %449 = vmatprep.subr.mxu0 0.0
        %450 = vmatpush1.msra.mxu0 0.0
        %451 = vmatprep.subr.mxu0 0.0
        %452 = vmatpush1.msra.mxu0 0.0
        %453 = vmatprep.subr.mxu0 0.0
        %454 = vmatpush1.msra.mxu0 0.0
        %455 = vmatprep.subr.mxu0 0.0
        %456 = vmatpush1.msra.mxu0 0.0
        %457 = vmatprep.subr.mxu0 0.0
        %458 = vmatpush1.msra.mxu0 0.0
        %459 = vmatprep.subr.mxu0 0.0
        %460 = vmatpush1.msra.mxu0 0.0
        %461 = vmatprep.subr.mxu0 0.0
        %462 = vmatpush1.msra.mxu0 0.0
        %463 = vmatprep.subr.mxu0 0.0
        %464 = vmatpush1.msra.mxu0 0.0
        %465 = vmatprep.subr.mxu0 0.0
        %466 = vmatpush1.msra.mxu0 0.0
        %467 = vmatprep.mubr.f32.mxu0 0.0
        %468 = vmatmul.mubr.f32.gmra.mrb[0].mxu0 %v392
        %v469 = vpop.f32.mrb[0].mxu0
        %v470 = vadd.f32 0.0, %v469
        %v471 = vpop.f32.mrb[0].mxu0
        %v472 = vadd.f32 0.0, %v471
        %473 = vmatprep.mubr.f32.mxu0 0.0
        %474 = vmatmul.mubr.f32.gmra.mrb[0].mxu0 %v395
        %v475 = vpop.f32.mrb[0].mxu0
        %v476 = vadd.f32 0.0, %v475
        %v477 = vpop.f32.mrb[0].mxu0
        %v478 = vadd.f32 0.0, %v477
        %479 = vmatprep.mubr.f32.mxu0 0.0
        %480 = vmatmul.mubr.f32.gmra.mrb[0].mxu0 %v398
        %v481 = vpop.f32.mrb[0].mxu0
        %v482 = vadd.f32 0.0, %v481
        %v483 = vpop.f32.mrb[0].mxu0
        %v484 = vadd.f32 0.0, %v483
        %485 = vmatprep.mubr.f32.mxu0 0.0
        %486 = vmatmul.mubr.f32.gmra.mrb[0].mxu0 %v401
        %v487 = vpop.f32.mrb[0].mxu0
        %v488 = vadd.f32 0.0, %v487
        %v489 = vpop.f32.mrb[0].mxu0
        %v490 = vadd.f32 0.0, %v489
        %491 = vdwg.mxu0
        %492 = vmatprep.subr.mxu0 %v381
        %493 = vmatpush1.msra.mxu0 %v380
        %494 = vmatprep.subr.mxu0 0.0
        %495 = vmatpush1.msra.mxu0 0.0
        %496 = vmatprep.subr.mxu0 0.0
        %497 = vmatpush1.msra.mxu0 0.0
        %498 = vmatprep.subr.mxu0 0.0
        %499 = vmatpush1.msra.mxu0 0.0
        %500 = vmatprep.subr.mxu0 0.0
        %501 = vmatpush1.msra.mxu0 0.0
        %502 = vmatprep.subr.mxu0 0.0
        %503 = vmatpush1.msra.mxu0 0.0
        %504 = vmatprep.subr.mxu0 0.0
        %505 = vmatpush1.msra.mxu0 0.0
        %506 = vmatprep.subr.mxu0 0.0
        %507 = vmatpush1.msra.mxu0 0.0
        %508 = vmatprep.subr.mxu0 0.0
        %509 = vmatpush1.msra.mxu0 0.0
        %510 = vmatprep.subr.mxu0 0.0
        %511 = vmatpush1.msra.mxu0 0.0
        %512 = vmatprep.subr.mxu0 0.0
        %513 = vmatpush1.msra.mxu0 0.0
        %514 = vmatprep.subr.mxu0 0.0
        %515 = vmatpush1.msra.mxu0 0.0
        %516 = vmatprep.subr.mxu0 0.0
        %517 = vmatpush1.msra.mxu0 0.0
        %518 = vmatprep.subr.mxu0 0.0
        %519 = vmatpush1.msra.mxu0 0.0
        %520 = vmatprep.subr.mxu0 0.0
        %521 = vmatpush1.msra.mxu0 0.0
        %522 = vmatprep.subr.mxu0 0.0
        %523 = vmatpush1.msra.mxu0 0.0
        %524 = vmatprep.subr.mxu0 0.0
        %525 = vmatpush1.msra.mxu0 0.0
        %526 = vmatprep.subr.mxu0 0.0
        %527 = vmatpush1.msra.mxu0 0.0
        %528 = vmatprep.subr.mxu0 0.0
        %529 = vmatpush1.msra.mxu0 0.0
        %530 = vmatprep.subr.mxu0 0.0
        %531 = vmatpush1.msra.mxu0 0.0
        %532 = vmatprep.subr.mxu0 0.0
        %533 = vmatpush1.msra.mxu0 0.0
        %534 = vmatprep.subr.mxu0 0.0
        %535 = vmatpush1.msra.mxu0 0.0
        %536 = vmatprep.subr.mxu0 0.0
        %537 = vmatpush1.msra.mxu0 0.0
        %538 = vmatprep.subr.mxu0 0.0
        %539 = vmatpush1.msra.mxu0 0.0
        %540 = vmatprep.subr.mxu0 0.0
        %541 = vmatpush1.msra.mxu0 0.0
        %542 = vmatprep.subr.mxu0 0.0
        %543 = vmatpush1.msra.mxu0 0.0
        %544 = vmatprep.subr.mxu0 0.0
        %545 = vmatpush1.msra.mxu0 0.0
        %546 = vmatprep.subr.mxu0 0.0
        %547 = vmatpush1.msra.mxu0 0.0
        %548 = vmatprep.subr.mxu0 0.0
        %549 = vmatpush1.msra.mxu0 0.0
        %550 = vmatprep.subr.mxu0 0.0
        %551 = vmatpush1.msra.mxu0 0.0
        %552 = vmatprep.subr.mxu0 0.0
        %553 = vmatpush1.msra.mxu0 0.0
        %554 = vmatprep.subr.mxu0 0.0
        %555 = vmatpush1.msra.mxu0 0.0
        %556 = vmatprep.mubr.f32.mxu0 0.0
        %557 = vmatmul.mubr.f32.gmra.mrb[0].mxu0 %v392
        %v558 = vpop.f32.mrb[0].mxu0
        %v559 = vadd.f32 0.0, %v558
        %v560 = vpop.f32.mrb[0].mxu0
        %v561 = vadd.f32 0.0, %v560
        %562 = vmatprep.mubr.f32.mxu0 0.0
        %563 = vmatmul.mubr.f32.gmra.mrb[0].mxu0 %v395
        %v564 = vpop.f32.mrb[0].mxu0
        %v565 = vadd.f32 0.0, %v564
        %v566 = vpop.f32.mrb[0].mxu0
        %v567 = vadd.f32 0.0, %v566
        %568 = vmatprep.mubr.f32.mxu0 0.0
        %569 = vmatmul.mubr.f32.gmra.mrb[0].mxu0 %v398
        %v570 = vpop.f32.mrb[0].mxu0
        %v571 = vadd.f32 0.0, %v570
        %v572 = vpop.f32.mrb[0].mxu0
        %v573 = vadd.f32 0.0, %v572
        %574 = vmatprep.mubr.f32.mxu0 0.0
        %575 = vmatmul.mubr.f32.gmra.mrb[0].mxu0 %v401
        %v576 = vpop.f32.mrb[0].mxu0
        %v577 = vadd.f32 0.0, %v576
        %v578 = vpop.f32.mrb[0].mxu0
        %v579 = vadd.f32 0.0, %v578
        %580 = vdwg.mxu0
        %v582 = vsel %vm390, %v382, 0
        %v585 = vsel %vm390, %v383, 0
        %v588 = vsel %vm390, %v384, 0
        %v591 = vsel %vm390, %v385, 0
        %593 = vmatprep.subr.mxu0 %v375
        %594 = vmatpush1.msra.mxu0 %v374
        %595 = vmatprep.subr.mxu0 0.0
        %596 = vmatpush1.msra.mxu0 0.0
        %597 = vmatprep.subr.mxu0 0.0
        %598 = vmatpush1.msra.mxu0 0.0
        %599 = vmatprep.subr.mxu0 0.0
        %600 = vmatpush1.msra.mxu0 0.0
        %601 = vmatprep.subr.mxu0 0.0
        %602 = vmatpush1.msra.mxu0 0.0
        %603 = vmatprep.subr.mxu0 0.0
        %604 = vmatpush1.msra.mxu0 0.0
        %605 = vmatprep.subr.mxu0 0.0
        %606 = vmatpush1.msra.mxu0 0.0
        %607 = vmatprep.subr.mxu0 0.0
        %608 = vmatpush1.msra.mxu0 0.0
        %609 = vmatprep.subr.mxu0 0.0
        %610 = vmatpush1.msra.mxu0 0.0
        %611 = vmatprep.subr.mxu0 0.0
        %612 = vmatpush1.msra.mxu0 0.0
        %613 = vmatprep.subr.mxu0 0.0
        %614 = vmatpush1.msra.mxu0 0.0
        %615 = vmatprep.subr.mxu0 0.0
        %616 = vmatpush1.msra.mxu0 0.0
        %617 = vmatprep.subr.mxu0 0.0
        %618 = vmatpush1.msra.mxu0 0.0
        %619 = vmatprep.subr.mxu0 0.0
        %620 = vmatpush1.msra.mxu0 0.0
        %621 = vmatprep.subr.mxu0 0.0
        %622 = vmatpush1.msra.mxu0 0.0
        %623 = vmatprep.subr.mxu0 0.0
        %624 = vmatpush1.msra.mxu0 0.0
        %625 = vmatprep.subr.mxu0 0.0
        %626 = vmatpush1.msra.mxu0 0.0
        %627 = vmatprep.subr.mxu0 0.0
        %628 = vmatpush1.msra.mxu0 0.0
        %629 = vmatprep.subr.mxu0 0.0
        %630 = vmatpush1.msra.mxu0 0.0
        %631 = vmatprep.subr.mxu0 0.0
        %632 = vmatpush1.msra.mxu0 0.0
        %633 = vmatprep.subr.mxu0 0.0
        %634 = vmatpush1.msra.mxu0 0.0
        %635 = vmatprep.subr.mxu0 0.0
        %636 = vmatpush1.msra.mxu0 0.0
        %637 = vmatprep.subr.mxu0 0.0
        %638 = vmatpush1.msra.mxu0 0.0
        %639 = vmatprep.subr.mxu0 0.0
        %640 = vmatpush1.msra.mxu0 0.0
        %641 = vmatprep.subr.mxu0 0.0
        %642 = vmatpush1.msra.mxu0 0.0
        %643 = vmatprep.subr.mxu0 0.0
        %644 = vmatpush1.msra.mxu0 0.0
        %645 = vmatprep.subr.mxu0 0.0
        %646 = vmatpush1.msra.mxu0 0.0
        %647 = vmatprep.subr.mxu0 0.0
        %648 = vmatpush1.msra.mxu0 0.0
        %649 = vmatprep.subr.mxu0 0.0
        %650 = vmatpush1.msra.mxu0 0.0
        %651 = vmatprep.subr.mxu0 0.0
        %652 = vmatpush1.msra.mxu0 0.0
        %653 = vmatprep.subr.mxu0 0.0
        %654 = vmatpush1.msra.mxu0 0.0
        %655 = vmatprep.subr.mxu0 0.0
        %656 = vmatpush1.msra.mxu0 0.0
        %657 = vmatprep.mubr.f32.mxu0 0.0
        %658 = vmatmul.mubr.f32.gmra.mrb[0].mxu0 %v582
        %v659 = vpop.f32.mrb[0].mxu0
        %v660 = vadd.f32 %v470, %v659
        %v661 = vpop.f32.mrb[0].mxu0
        %v662 = vadd.f32 %v472, %v661
        %663 = vmatprep.mubr.f32.mxu0 0.0
        %664 = vmatmul.mubr.f32.gmra.mrb[0].mxu0 %v585
        %v665 = vpop.f32.mrb[0].mxu0
        %v666 = vadd.f32 %v476, %v665
        %v667 = vpop.f32.mrb[0].mxu0
        %v668 = vadd.f32 %v478, %v667
        %669 = vmatprep.mubr.f32.mxu0 0.0
        %670 = vmatmul.mubr.f32.gmra.mrb[0].mxu0 %v588
        %v671 = vpop.f32.mrb[0].mxu0
        %v672 = vadd.f32 %v482, %v671
        %v673 = vpop.f32.mrb[0].mxu0
        %v674 = vadd.f32 %v484, %v673
        %675 = vmatprep.mubr.f32.mxu0 0.0
        %676 = vmatmul.mubr.f32.gmra.mrb[0].mxu0 %v591
        %v677 = vpop.f32.mrb[0].mxu0
        %v678 = vadd.f32 %v488, %v677
        %v679 = vpop.f32.mrb[0].mxu0
        %v680 = vadd.f32 %v490, %v679
        %681 = vdwg.mxu0
        %682 = vmatprep.subr.mxu0 %v377
        %683 = vmatpush1.msra.mxu0 %v376
        %684 = vmatprep.subr.mxu0 0.0
        %685 = vmatpush1.msra.mxu0 0.0
        %686 = vmatprep.subr.mxu0 0.0
        %687 = vmatpush1.msra.mxu0 0.0
        %688 = vmatprep.subr.mxu0 0.0
        %689 = vmatpush1.msra.mxu0 0.0
        %690 = vmatprep.subr.mxu0 0.0
        %691 = vmatpush1.msra.mxu0 0.0
        %692 = vmatprep.subr.mxu0 0.0
        %693 = vmatpush1.msra.mxu0 0.0
        %694 = vmatprep.subr.mxu0 0.0
        %695 = vmatpush1.msra.mxu0 0.0
        %696 = vmatprep.subr.mxu0 0.0
        %697 = vmatpush1.msra.mxu0 0.0
        %698 = vmatprep.subr.mxu0 0.0
        %699 = vmatpush1.msra.mxu0 0.0
        %700 = vmatprep.subr.mxu0 0.0
        %701 = vmatpush1.msra.mxu0 0.0
        %702 = vmatprep.subr.mxu0 0.0
        %703 = vmatpush1.msra.mxu0 0.0
        %704 = vmatprep.subr.mxu0 0.0
        %705 = vmatpush1.msra.mxu0 0.0
        %706 = vmatprep.subr.mxu0 0.0
        %707 = vmatpush1.msra.mxu0 0.0
        %708 = vmatprep.subr.mxu0 0.0
        %709 = vmatpush1.msra.mxu0 0.0
        %710 = vmatprep.subr.mxu0 0.0
        %711 = vmatpush1.msra.mxu0 0.0
        %712 = vmatprep.subr.mxu0 0.0
        %713 = vmatpush1.msra.mxu0 0.0
        %714 = vmatprep.subr.mxu0 0.0
        %715 = vmatpush1.msra.mxu0 0.0
        %716 = vmatprep.subr.mxu0 0.0
        %717 = vmatpush1.msra.mxu0 0.0
        %718 = vmatprep.subr.mxu0 0.0
        %719 = vmatpush1.msra.mxu0 0.0
        %720 = vmatprep.subr.mxu0 0.0
        %721 = vmatpush1.msra.mxu0 0.0
        %722 = vmatprep.subr.mxu0 0.0
        %723 = vmatpush1.msra.mxu0 0.0
        %724 = vmatprep.subr.mxu0 0.0
        %725 = vmatpush1.msra.mxu0 0.0
        %726 = vmatprep.subr.mxu0 0.0
        %727 = vmatpush1.msra.mxu0 0.0
        %728 = vmatprep.subr.mxu0 0.0
        %729 = vmatpush1.msra.mxu0 0.0
        %730 = vmatprep.subr.mxu0 0.0
        %731 = vmatpush1.msra.mxu0 0.0
        %732 = vmatprep.subr.mxu0 0.0
        %733 = vmatpush1.msra.mxu0 0.0
        %734 = vmatprep.subr.mxu0 0.0
        %735 = vmatpush1.msra.mxu0 0.0
        %736 = vmatprep.subr.mxu0 0.0
        %737 = vmatpush1.msra.mxu0 0.0
        %738 = vmatprep.subr.mxu0 0.0
        %739 = vmatpush1.msra.mxu0 0.0
        %740 = vmatprep.subr.mxu0 0.0
        %741 = vmatpush1.msra.mxu0 0.0
        %742 = vmatprep.subr.mxu0 0.0
        %743 = vmatpush1.msra.mxu0 0.0
        %744 = vmatprep.subr.mxu0 0.0
        %745 = vmatpush1.msra.mxu0 0.0
        %746 = vmatprep.mubr.f32.mxu0 0.0
        %747 = vmatmul.mubr.f32.gmra.mrb[0].mxu0 %v582
        %v748 = vpop.f32.mrb[0].mxu0
        %v749 = vadd.f32 %v559, %v748
        %v750 = vpop.f32.mrb[0].mxu0
        %v751 = vadd.f32 %v561, %v750
        %752 = vmatprep.mubr.f32.mxu0 0.0
        %753 = vmatmul.mubr.f32.gmra.mrb[0].mxu0 %v585
        %v754 = vpop.f32.mrb[0].mxu0
        %v755 = vadd.f32 %v565, %v754
        %v756 = vpop.f32.mrb[0].mxu0
        %v757 = vadd.f32 %v567, %v756
        %758 = vmatprep.mubr.f32.mxu0 0.0
        %759 = vmatmul.mubr.f32.gmra.mrb[0].mxu0 %v588
        %v760 = vpop.f32.mrb[0].mxu0
        %v761 = vadd.f32 %v571, %v760
        %v762 = vpop.f32.mrb[0].mxu0
        %v763 = vadd.f32 %v573, %v762
        %764 = vmatprep.mubr.f32.mxu0 0.0
        %765 = vmatmul.mubr.f32.gmra.mrb[0].mxu0 %v591
        %v766 = vpop.f32.mrb[0].mxu0
        %v767 = vadd.f32 %v577, %v766
        %v768 = vpop.f32.mrb[0].mxu0
        %v769 = vadd.f32 %v579, %v768
        %770 = vdwg.mxu0
        %v771 = vmax.f32 %v660, 0.0
        %v772 = vmax.f32 %v662, 0.0
        %v773 = vmax.f32 %v749, 0.0
        %v774 = vmax.f32 %v751, 0.0
        %v775 = vmax.f32 %v666, 0.0
        %v776 = vmax.f32 %v668, 0.0
        %v777 = vmax.f32 %v755, 0.0
        %v778 = vmax.f32 %v757, 0.0
        %v779 = vmax.f32 %v672, 0.0
        %v780 = vmax.f32 %v674, 0.0
        %v781 = vmax.f32 %v761, 0.0
        %v782 = vmax.f32 %v763, 0.0
        %v783 = vmax.f32 %v678, 0.0
        %v784 = vmax.f32 %v680, 0.0
        %v785 = vmax.f32 %v767, 0.0
        %v786 = vmax.f32 %v769, 0.0
        %v787 = vld [vmem:[%s3] sm:$0xff]
        %v788 = vld [vmem:[%s3 + $0x8] sm:$0xff]
        %v789 = vld [vmem:[%s3 + $0x10] sm:$0xff]
        %v790 = vld [vmem:[%s3 + $0x18] sm:$0xff]
        %v791 = vld [vmem:[#allocation7] sm:$0xff]
        %v792 = vld [vmem:[#allocation7 + $0x8] sm:$0xff]
        %v793 = vld [vmem:[#allocation7 + $0x10] sm:$0xff]
        %v794 = vld [vmem:[#allocation7 + $0x18] sm:$0xff]
        %796 = vset.pattern.permute.xlu0 0
        %797 = vperm.xlu0 %796, %v791
        %v798 = vpop.permute.xlu0 %797
        %801 = vset.pattern.permute.xlu0 0
        %802 = vperm.xlu0 %801, %v792
        %v803 = vpop.permute.xlu0 %802
        %806 = vset.pattern.permute.xlu0 0
        %807 = vperm.xlu0 %806, %v793
        %v808 = vpop.permute.xlu0 %807
        %811 = vset.pattern.permute.xlu0 0
        %812 = vperm.xlu0 %811, %v794
        %v813 = vpop.permute.xlu0 %812
        %vm815 = vcmask 261120
        %v817 = vsel %vm815, %v787, 0
        %v820 = vsel %vm815, %v788, 0
        %v823 = vsel %vm815, %v789, 0
        %v826 = vsel %vm815, %v790, 0
        %828 = vmatprep.subr.mxu0 %v772
        %829 = vmatpush1.msra.mxu0 %v771
        %830 = vmatprep.subr.mxu0 %v776
        %831 = vmatpush1.msra.mxu0 %v775
        %832 = vmatprep.subr.mxu0 %v780
        %833 = vmatpush1.msra.mxu0 %v779
        %834 = vmatprep.subr.mxu0 %v784
        %835 = vmatpush1.msra.mxu0 %v783
        %836 = vmatprep.subr.mxu0 0.0
        %837 = vmatpush1.msra.mxu0 0.0
        %838 = vmatprep.subr.mxu0 0.0
        %839 = vmatpush1.msra.mxu0 0.0
        %840 = vmatprep.subr.mxu0 0.0
        %841 = vmatpush1.msra.mxu0 0.0
        %842 = vmatprep.subr.mxu0 0.0
        %843 = vmatpush1.msra.mxu0 0.0
        %844 = vmatprep.subr.mxu0 0.0
        %845 = vmatpush1.msra.mxu0 0.0
        %846 = vmatprep.subr.mxu0 0.0
        %847 = vmatpush1.msra.mxu0 0.0
        %848 = vmatprep.subr.mxu0 0.0
        %849 = vmatpush1.msra.mxu0 0.0
        %850 = vmatprep.subr.mxu0 0.0
        %851 = vmatpush1.msra.mxu0 0.0
        %852 = vmatprep.subr.mxu0 0.0
        %853 = vmatpush1.msra.mxu0 0.0
        %854 = vmatprep.subr.mxu0 0.0
        %855 = vmatpush1.msra.mxu0 0.0
        %856 = vmatprep.subr.mxu0 0.0
        %857 = vmatpush1.msra.mxu0 0.0
        %858 = vmatprep.subr.mxu0 0.0
        %859 = vmatpush1.msra.mxu0 0.0
        %860 = vmatprep.subr.mxu0 0.0
        %861 = vmatpush1.msra.mxu0 0.0
        %862 = vmatprep.subr.mxu0 0.0
        %863 = vmatpush1.msra.mxu0 0.0
        %864 = vmatprep.subr.mxu0 0.0
        %865 = vmatpush1.msra.mxu0 0.0
        %866 = vmatprep.subr.mxu0 0.0
        %867 = vmatpush1.msra.mxu0 0.0
        %868 = vmatprep.subr.mxu0 0.0
        %869 = vmatpush1.msra.mxu0 0.0
        %870 = vmatprep.subr.mxu0 0.0
        %871 = vmatpush1.msra.mxu0 0.0
        %872 = vmatprep.subr.mxu0 0.0
        %873 = vmatpush1.msra.mxu0 0.0
        %874 = vmatprep.subr.mxu0 0.0
        %875 = vmatpush1.msra.mxu0 0.0
        %876 = vmatprep.subr.mxu0 0.0
        %877 = vmatpush1.msra.mxu0 0.0
        %878 = vmatprep.subr.mxu0 0.0
        %879 = vmatpush1.msra.mxu0 0.0
        %880 = vmatprep.subr.mxu0 0.0
        %881 = vmatpush1.msra.mxu0 0.0
        %882 = vmatprep.subr.mxu0 0.0
        %883 = vmatpush1.msra.mxu0 0.0
        %884 = vmatprep.subr.mxu0 0.0
        %885 = vmatpush1.msra.mxu0 0.0
        %886 = vmatprep.subr.mxu0 0.0
        %887 = vmatpush1.msra.mxu0 0.0
        %888 = vmatprep.subr.mxu0 0.0
        %889 = vmatpush1.msra.mxu0 0.0
        %890 = vmatprep.subr.mxu0 0.0
        %891 = vmatpush1.msra.mxu0 0.0
        %892 = vmatprep.mubr.f32.mxu0 0.0
        %893 = vmatmul.mubr.f32.gmra.mrb[0].mxu0 %v817
        %v894 = vpop.f32.mrb[0].mxu0
        %v895 = vadd.f32 %v798, %v894
        %v896 = vpop.f32.mrb[0].mxu0
        %v897 = vadd.f32 %v798, %v896
        %898 = vmatprep.mubr.f32.mxu0 0.0
        %899 = vmatmul.mubr.f32.gmra.mrb[0].mxu0 %v820
        %v900 = vpop.f32.mrb[0].mxu0
        %v901 = vadd.f32 %v803, %v900
        %v902 = vpop.f32.mrb[0].mxu0
        %v903 = vadd.f32 %v803, %v902
        %904 = vmatprep.mubr.f32.mxu0 0.0
        %905 = vmatmul.mubr.f32.gmra.mrb[0].mxu0 %v823
        %v906 = vpop.f32.mrb[0].mxu0
        %v907 = vadd.f32 %v808, %v906
        %v908 = vpop.f32.mrb[0].mxu0
        %v909 = vadd.f32 %v808, %v908
        %910 = vmatprep.mubr.f32.mxu0 0.0
        %911 = vmatmul.mubr.f32.gmra.mrb[0].mxu0 %v826
        %v912 = vpop.f32.mrb[0].mxu0
        %v913 = vadd.f32 %v813, %v912
        %v914 = vpop.f32.mrb[0].mxu0
        %v915 = vadd.f32 %v813, %v914
        %916 = vdwg.mxu0
        %917 = vmatprep.subr.mxu0 %v774
        %918 = vmatpush1.msra.mxu0 %v773
        %919 = vmatprep.subr.mxu0 %v778
        %920 = vmatpush1.msra.mxu0 %v777
        %921 = vmatprep.subr.mxu0 %v782
        %922 = vmatpush1.msra.mxu0 %v781
        %923 = vmatprep.subr.mxu0 %v786
        %924 = vmatpush1.msra.mxu0 %v785
        %925 = vmatprep.subr.mxu0 0.0
        %926 = vmatpush1.msra.mxu0 0.0
        %927 = vmatprep.subr.mxu0 0.0
        %928 = vmatpush1.msra.mxu0 0.0
        %929 = vmatprep.subr.mxu0 0.0
        %930 = vmatpush1.msra.mxu0 0.0
        %931 = vmatprep.subr.mxu0 0.0
        %932 = vmatpush1.msra.mxu0 0.0
        %933 = vmatprep.subr.mxu0 0.0
        %934 = vmatpush1.msra.mxu0 0.0
        %935 = vmatprep.subr.mxu0 0.0
        %936 = vmatpush1.msra.mxu0 0.0
        %937 = vmatprep.subr.mxu0 0.0
        %938 = vmatpush1.msra.mxu0 0.0
        %939 = vmatprep.subr.mxu0 0.0
        %940 = vmatpush1.msra.mxu0 0.0
        %941 = vmatprep.subr.mxu0 0.0
        %942 = vmatpush1.msra.mxu0 0.0
        %943 = vmatprep.subr.mxu0 0.0
        %944 = vmatpush1.msra.mxu0 0.0
        %945 = vmatprep.subr.mxu0 0.0
        %946 = vmatpush1.msra.mxu0 0.0
        %947 = vmatprep.subr.mxu0 0.0
        %948 = vmatpush1.msra.mxu0 0.0
        %949 = vmatprep.subr.mxu0 0.0
        %950 = vmatpush1.msra.mxu0 0.0
        %951 = vmatprep.subr.mxu0 0.0
        %952 = vmatpush1.msra.mxu0 0.0
        %953 = vmatprep.subr.mxu0 0.0
        %954 = vmatpush1.msra.mxu0 0.0
        %955 = vmatprep.subr.mxu0 0.0
        %956 = vmatpush1.msra.mxu0 0.0
        %957 = vmatprep.subr.mxu0 0.0
        %958 = vmatpush1.msra.mxu0 0.0
        %959 = vmatprep.subr.mxu0 0.0
        %960 = vmatpush1.msra.mxu0 0.0
        %961 = vmatprep.subr.mxu0 0.0
        %962 = vmatpush1.msra.mxu0 0.0
        %963 = vmatprep.subr.mxu0 0.0
        %964 = vmatpush1.msra.mxu0 0.0
        %965 = vmatprep.subr.mxu0 0.0
        %966 = vmatpush1.msra.mxu0 0.0
        %967 = vmatprep.subr.mxu0 0.0
        %968 = vmatpush1.msra.mxu0 0.0
        %969 = vmatprep.subr.mxu0 0.0
        %970 = vmatpush1.msra.mxu0 0.0
        %971 = vmatprep.subr.mxu0 0.0
        %972 = vmatpush1.msra.mxu0 0.0
        %973 = vmatprep.subr.mxu0 0.0
        %974 = vmatpush1.msra.mxu0 0.0
        %975 = vmatprep.subr.mxu0 0.0
        %976 = vmatpush1.msra.mxu0 0.0
        %977 = vmatprep.subr.mxu0 0.0
        %978 = vmatpush1.msra.mxu0 0.0
        %979 = vmatprep.subr.mxu0 0.0
        %980 = vmatpush1.msra.mxu0 0.0
        %981 = vmatprep.mubr.f32.mxu0 0.0
        %982 = vmatmul.mubr.f32.gmra.mrb[0].mxu0 %v817
        %v983 = vpop.f32.mrb[0].mxu0
        %v984 = vadd.f32 %v798, %v983
        %v985 = vpop.f32.mrb[0].mxu0
        %v986 = vadd.f32 %v798, %v985
        %987 = vmatprep.mubr.f32.mxu0 0.0
        %988 = vmatmul.mubr.f32.gmra.mrb[0].mxu0 %v820
        %v989 = vpop.f32.mrb[0].mxu0
        %v990 = vadd.f32 %v803, %v989
        %v991 = vpop.f32.mrb[0].mxu0
        %v992 = vadd.f32 %v803, %v991
        %993 = vmatprep.mubr.f32.mxu0 0.0
        %994 = vmatmul.mubr.f32.gmra.mrb[0].mxu0 %v823
        %v995 = vpop.f32.mrb[0].mxu0
        %v996 = vadd.f32 %v808, %v995
        %v997 = vpop.f32.mrb[0].mxu0
        %v998 = vadd.f32 %v808, %v997
        %999 = vmatprep.mubr.f32.mxu0 0.0
        %1000 = vmatmul.mubr.f32.gmra.mrb[0].mxu0 %v826
        %v1001 = vpop.f32.mrb[0].mxu0
        %v1002 = vadd.f32 %v813, %v1001
        %v1003 = vpop.f32.mrb[0].mxu0
        %v1004 = vadd.f32 %v813, %v1003
        %1005 = vdwg.mxu0
        %v1006 = vmax.f32 %v895, 0.0
        %v1007 = vmax.f32 %v897, 0.0
        %v1008 = vmax.f32 %v984, 0.0
        %v1009 = vmax.f32 %v986, 0.0
        %v1010 = vmax.f32 %v901, 0.0
        %v1011 = vmax.f32 %v903, 0.0
        %v1012 = vmax.f32 %v990, 0.0
        %v1013 = vmax.f32 %v992, 0.0
        %v1014 = vmax.f32 %v907, 0.0
        %v1015 = vmax.f32 %v909, 0.0
        %v1016 = vmax.f32 %v996, 0.0
        %v1017 = vmax.f32 %v998, 0.0
        %v1018 = vmax.f32 %v913, 0.0
        %v1019 = vmax.f32 %v915, 0.0
        %v1020 = vmax.f32 %v1002, 0.0
        %v1021 = vmax.f32 %v1004, 0.0
        %s1022 = scalar_lea.vmem %s3, 32
        %v1023 = vld [vmem:[%s1022] sm:$0xff]
        %v1024 = vld [vmem:[%s1022 + $0x8] sm:$0xff]
        %v1025 = vld [vmem:[%s1022 + $0x10] sm:$0xff]
        %v1026 = vld [vmem:[%s1022 + $0x18] sm:$0xff]
        %s1027 = scalar_lea.vmem [#allocation7], 32
        %v1028 = vld [vmem:[%s1027] sm:$0xff]
        %v1029 = vld [vmem:[%s1027 + $0x8] sm:$0xff]
        %v1030 = vld [vmem:[%s1027 + $0x10] sm:$0xff]
        %v1031 = vld [vmem:[%s1027 + $0x18] sm:$0xff]
        %1033 = vset.pattern.permute.xlu0 0
        %1034 = vperm.xlu0 %1033, %v1028
        %v1035 = vpop.permute.xlu0 %1034
        %1038 = vset.pattern.permute.xlu0 0
        %1039 = vperm.xlu0 %1038, %v1029
        %v1040 = vpop.permute.xlu0 %1039
        %1043 = vset.pattern.permute.xlu0 0
        %1044 = vperm.xlu0 %1043, %v1030
        %v1045 = vpop.permute.xlu0 %1044
        %1048 = vset.pattern.permute.xlu0 0
        %1049 = vperm.xlu0 %1048, %v1031
        %v1050 = vpop.permute.xlu0 %1049
        %v1053 = vsel %vm815, %v1023, 0
        %v1056 = vsel %vm815, %v1024, 0
        %v1059 = vsel %vm815, %v1025, 0
        %v1062 = vsel %vm815, %v1026, 0
        %1064 = vmatprep.subr.mxu0 %v1007
        %1065 = vmatpush1.msra.mxu0 %v1006
        %1066 = vmatprep.subr.mxu0 %v1011
        %1067 = vmatpush1.msra.mxu0 %v1010
        %1068 = vmatprep.subr.mxu0 %v1015
        %1069 = vmatpush1.msra.mxu0 %v1014
        %1070 = vmatprep.subr.mxu0 %v1019
        %1071 = vmatpush1.msra.mxu0 %v1018
        %1072 = vmatprep.subr.mxu0 0.0
        %1073 = vmatpush1.msra.mxu0 0.0
        %1074 = vmatprep.subr.mxu0 0.0
        %1075 = vmatpush1.msra.mxu0 0.0
        %1076 = vmatprep.subr.mxu0 0.0
        %1077 = vmatpush1.msra.mxu0 0.0
        %1078 = vmatprep.subr.mxu0 0.0
        %1079 = vmatpush1.msra.mxu0 0.0
        %1080 = vmatprep.subr.mxu0 0.0
        %1081 = vmatpush1.msra.mxu0 0.0
        %1082 = vmatprep.subr.mxu0 0.0
        %1083 = vmatpush1.msra.mxu0 0.0
        %1084 = vmatprep.subr.mxu0 0.0
        %1085 = vmatpush1.msra.mxu0 0.0
        %1086 = vmatprep.subr.mxu0 0.0
        %1087 = vmatpush1.msra.mxu0 0.0
        %1088 = vmatprep.subr.mxu0 0.0
        %1089 = vmatpush1.msra.mxu0 0.0
        %1090 = vmatprep.subr.mxu0 0.0
        %1091 = vmatpush1.msra.mxu0 0.0
        %1092 = vmatprep.subr.mxu0 0.0
        %1093 = vmatpush1.msra.mxu0 0.0
        %1094 = vmatprep.subr.mxu0 0.0
        %1095 = vmatpush1.msra.mxu0 0.0
        %1096 = vmatprep.subr.mxu0 0.0
        %1097 = vmatpush1.msra.mxu0 0.0
        %1098 = vmatprep.subr.mxu0 0.0
        %1099 = vmatpush1.msra.mxu0 0.0
        %1100 = vmatprep.subr.mxu0 0.0
        %1101 = vmatpush1.msra.mxu0 0.0
        %1102 = vmatprep.subr.mxu0 0.0
        %1103 = vmatpush1.msra.mxu0 0.0
        %1104 = vmatprep.subr.mxu0 0.0
        %1105 = vmatpush1.msra.mxu0 0.0
        %1106 = vmatprep.subr.mxu0 0.0
        %1107 = vmatpush1.msra.mxu0 0.0
        %1108 = vmatprep.subr.mxu0 0.0
        %1109 = vmatpush1.msra.mxu0 0.0
        %1110 = vmatprep.subr.mxu0 0.0
        %1111 = vmatpush1.msra.mxu0 0.0
        %1112 = vmatprep.subr.mxu0 0.0
        %1113 = vmatpush1.msra.mxu0 0.0
        %1114 = vmatprep.subr.mxu0 0.0
        %1115 = vmatpush1.msra.mxu0 0.0
        %1116 = vmatprep.subr.mxu0 0.0
        %1117 = vmatpush1.msra.mxu0 0.0
        %1118 = vmatprep.subr.mxu0 0.0
        %1119 = vmatpush1.msra.mxu0 0.0
        %1120 = vmatprep.subr.mxu0 0.0
        %1121 = vmatpush1.msra.mxu0 0.0
        %1122 = vmatprep.subr.mxu0 0.0
        %1123 = vmatpush1.msra.mxu0 0.0
        %1124 = vmatprep.subr.mxu0 0.0
        %1125 = vmatpush1.msra.mxu0 0.0
        %1126 = vmatprep.subr.mxu0 0.0
        %1127 = vmatpush1.msra.mxu0 0.0
        %1128 = vmatprep.mubr.f32.mxu0 0.0
        %1129 = vmatmul.mubr.f32.gmra.mrb[0].mxu0 %v1053
        %v1130 = vpop.f32.mrb[0].mxu0
        %v1131 = vadd.f32 %v1035, %v1130
        %v1132 = vpop.f32.mrb[0].mxu0
        %v1133 = vadd.f32 %v1035, %v1132
        %1134 = vmatprep.mubr.f32.mxu0 0.0
        %1135 = vmatmul.mubr.f32.gmra.mrb[0].mxu0 %v1056
        %v1136 = vpop.f32.mrb[0].mxu0
        %v1137 = vadd.f32 %v1040, %v1136
        %v1138 = vpop.f32.mrb[0].mxu0
        %v1139 = vadd.f32 %v1040, %v1138
        %1140 = vmatprep.mubr.f32.mxu0 0.0
        %1141 = vmatmul.mubr.f32.gmra.mrb[0].mxu0 %v1059
        %v1142 = vpop.f32.mrb[0].mxu0
        %v1143 = vadd.f32 %v1045, %v1142
        %v1144 = vpop.f32.mrb[0].mxu0
        %v1145 = vadd.f32 %v1045, %v1144
        %1146 = vmatprep.mubr.f32.mxu0 0.0
        %1147 = vmatmul.mubr.f32.gmra.mrb[0].mxu0 %v1062
        %v1148 = vpop.f32.mrb[0].mxu0
        %v1149 = vadd.f32 %v1050, %v1148
        %v1150 = vpop.f32.mrb[0].mxu0
        %v1151 = vadd.f32 %v1050, %v1150
        %1152 = vdwg.mxu0
        %1153 = vmatprep.subr.mxu0 %v1009
        %1154 = vmatpush1.msra.mxu0 %v1008
        %1155 = vmatprep.subr.mxu0 %v1013
        %1156 = vmatpush1.msra.mxu0 %v1012
        %1157 = vmatprep.subr.mxu0 %v1017
        %1158 = vmatpush1.msra.mxu0 %v1016
        %1159 = vmatprep.subr.mxu0 %v1021
        %1160 = vmatpush1.msra.mxu0 %v1020
        %1161 = vmatprep.subr.mxu0 0.0
        %1162 = vmatpush1.msra.mxu0 0.0
        %1163 = vmatprep.subr.mxu0 0.0
        %1164 = vmatpush1.msra.mxu0 0.0
        %1165 = vmatprep.subr.mxu0 0.0
        %1166 = vmatpush1.msra.mxu0 0.0
        %1167 = vmatprep.subr.mxu0 0.0
        %1168 = vmatpush1.msra.mxu0 0.0
        %1169 = vmatprep.subr.mxu0 0.0
        %1170 = vmatpush1.msra.mxu0 0.0
        %1171 = vmatprep.subr.mxu0 0.0
        %1172 = vmatpush1.msra.mxu0 0.0
        %1173 = vmatprep.subr.mxu0 0.0
        %1174 = vmatpush1.msra.mxu0 0.0
        %1175 = vmatprep.subr.mxu0 0.0
        %1176 = vmatpush1.msra.mxu0 0.0
        %1177 = vmatprep.subr.mxu0 0.0
        %1178 = vmatpush1.msra.mxu0 0.0
        %1179 = vmatprep.subr.mxu0 0.0
        %1180 = vmatpush1.msra.mxu0 0.0
        %1181 = vmatprep.subr.mxu0 0.0
        %1182 = vmatpush1.msra.mxu0 0.0
        %1183 = vmatprep.subr.mxu0 0.0
        %1184 = vmatpush1.msra.mxu0 0.0
        %1185 = vmatprep.subr.mxu0 0.0
        %1186 = vmatpush1.msra.mxu0 0.0
        %1187 = vmatprep.subr.mxu0 0.0
        %1188 = vmatpush1.msra.mxu0 0.0
        %1189 = vmatprep.subr.mxu0 0.0
        %1190 = vmatpush1.msra.mxu0 0.0
        %1191 = vmatprep.subr.mxu0 0.0
        %1192 = vmatpush1.msra.mxu0 0.0
        %1193 = vmatprep.subr.mxu0 0.0
        %1194 = vmatpush1.msra.mxu0 0.0
        %1195 = vmatprep.subr.mxu0 0.0
        %1196 = vmatpush1.msra.mxu0 0.0
        %1197 = vmatprep.subr.mxu0 0.0
        %1198 = vmatpush1.msra.mxu0 0.0
        %1199 = vmatprep.subr.mxu0 0.0
        %1200 = vmatpush1.msra.mxu0 0.0
        %1201 = vmatprep.subr.mxu0 0.0
        %1202 = vmatpush1.msra.mxu0 0.0
        %1203 = vmatprep.subr.mxu0 0.0
        %1204 = vmatpush1.msra.mxu0 0.0
        %1205 = vmatprep.subr.mxu0 0.0
        %1206 = vmatpush1.msra.mxu0 0.0
        %1207 = vmatprep.subr.mxu0 0.0
        %1208 = vmatpush1.msra.mxu0 0.0
        %1209 = vmatprep.subr.mxu0 0.0
        %1210 = vmatpush1.msra.mxu0 0.0
        %1211 = vmatprep.subr.mxu0 0.0
        %1212 = vmatpush1.msra.mxu0 0.0
        %1213 = vmatprep.subr.mxu0 0.0
        %1214 = vmatpush1.msra.mxu0 0.0
        %1215 = vmatprep.subr.mxu0 0.0
        %1216 = vmatpush1.msra.mxu0 0.0
        %1217 = vmatprep.mubr.f32.mxu0 0.0
        %1218 = vmatmul.mubr.f32.gmra.mrb[0].mxu0 %v1053
        %v1219 = vpop.f32.mrb[0].mxu0
        %v1220 = vadd.f32 %v1035, %v1219
        %v1221 = vpop.f32.mrb[0].mxu0
        %v1222 = vadd.f32 %v1035, %v1221
        %1223 = vmatprep.mubr.f32.mxu0 0.0
        %1224 = vmatmul.mubr.f32.gmra.mrb[0].mxu0 %v1056
        %v1225 = vpop.f32.mrb[0].mxu0
        %v1226 = vadd.f32 %v1040, %v1225
        %v1227 = vpop.f32.mrb[0].mxu0
        %v1228 = vadd.f32 %v1040, %v1227
        %1229 = vmatprep.mubr.f32.mxu0 0.0
        %1230 = vmatmul.mubr.f32.gmra.mrb[0].mxu0 %v1059
        %v1231 = vpop.f32.mrb[0].mxu0
        %v1232 = vadd.f32 %v1045, %v1231
        %v1233 = vpop.f32.mrb[0].mxu0
        %v1234 = vadd.f32 %v1045, %v1233
        %1235 = vmatprep.mubr.f32.mxu0 0.0
        %1236 = vmatmul.mubr.f32.gmra.mrb[0].mxu0 %v1062
        %v1237 = vpop.f32.mrb[0].mxu0
        %v1238 = vadd.f32 %v1050, %v1237
        %v1239 = vpop.f32.mrb[0].mxu0
        %v1240 = vadd.f32 %v1050, %v1239
        %1241 = vdwg.mxu0
        %v1242 = vmax.f32 %v1131, 0.0
        %v1243 = vmax.f32 %v1133, 0.0
        %v1244 = vmax.f32 %v1220, 0.0
        %v1245 = vmax.f32 %v1222, 0.0
        %v1246 = vmax.f32 %v1137, 0.0
        %v1247 = vmax.f32 %v1139, 0.0
        %v1248 = vmax.f32 %v1226, 0.0
        %v1249 = vmax.f32 %v1228, 0.0
        %v1250 = vmax.f32 %v1143, 0.0
        %v1251 = vmax.f32 %v1145, 0.0
        %v1252 = vmax.f32 %v1232, 0.0
        %v1253 = vmax.f32 %v1234, 0.0
        %v1254 = vmax.f32 %v1149, 0.0
        %v1255 = vmax.f32 %v1151, 0.0
        %v1256 = vmax.f32 %v1238, 0.0
        %v1257 = vmax.f32 %v1240, 0.0
        %v1258 = vld [vmem:[%s5] sm:$0xff]
        %v1259 = vld [vmem:[%s5 + $0x8] sm:$0xff]
        %v1260 = vld [vmem:[#allocation8] sm:$0xff]
        %v1261 = vld [vmem:[#allocation8 + $0x8] sm:$0xff]
        %1263 = vset.pattern.permute.xlu0 0
        %1264 = vperm.xlu0 %1263, %v1260
        %v1265 = vpop.permute.xlu0 %1264
        %1268 = vset.pattern.permute.xlu0 0
        %1269 = vperm.xlu0 %1268, %v1261
        %v1270 = vpop.permute.xlu0 %1269
        %v1273 = vsel %vm815, %v1258, 0
        %v1276 = vsel %vm815, %v1259, 0
        %1278 = vmatprep.subr.mxu0 %v1243
        %1279 = vmatpush1.msra.mxu0 %v1242
        %1280 = vmatprep.subr.mxu0 %v1247
        %1281 = vmatpush1.msra.mxu0 %v1246
        %1282 = vmatprep.subr.mxu0 %v1251
        %1283 = vmatpush1.msra.mxu0 %v1250
        %1284 = vmatprep.subr.mxu0 %v1255
        %1285 = vmatpush1.msra.mxu0 %v1254
        %1286 = vmatprep.subr.mxu0 0.0
        %1287 = vmatpush1.msra.mxu0 0.0
        %1288 = vmatprep.subr.mxu0 0.0
        %1289 = vmatpush1.msra.mxu0 0.0
        %1290 = vmatprep.subr.mxu0 0.0
        %1291 = vmatpush1.msra.mxu0 0.0
        %1292 = vmatprep.subr.mxu0 0.0
        %1293 = vmatpush1.msra.mxu0 0.0
        %1294 = vmatprep.subr.mxu0 0.0
        %1295 = vmatpush1.msra.mxu0 0.0
        %1296 = vmatprep.subr.mxu0 0.0
        %1297 = vmatpush1.msra.mxu0 0.0
        %1298 = vmatprep.subr.mxu0 0.0
        %1299 = vmatpush1.msra.mxu0 0.0
        %1300 = vmatprep.subr.mxu0 0.0
        %1301 = vmatpush1.msra.mxu0 0.0
        %1302 = vmatprep.subr.mxu0 0.0
        %1303 = vmatpush1.msra.mxu0 0.0
        %1304 = vmatprep.subr.mxu0 0.0
        %1305 = vmatpush1.msra.mxu0 0.0
        %1306 = vmatprep.subr.mxu0 0.0
        %1307 = vmatpush1.msra.mxu0 0.0
        %1308 = vmatprep.subr.mxu0 0.0
        %1309 = vmatpush1.msra.mxu0 0.0
        %1310 = vmatprep.subr.mxu0 0.0
        %1311 = vmatpush1.msra.mxu0 0.0
        %1312 = vmatprep.subr.mxu0 0.0
        %1313 = vmatpush1.msra.mxu0 0.0
        %1314 = vmatprep.subr.mxu0 0.0
        %1315 = vmatpush1.msra.mxu0 0.0
        %1316 = vmatprep.subr.mxu0 0.0
        %1317 = vmatpush1.msra.mxu0 0.0
        %1318 = vmatprep.subr.mxu0 0.0
        %1319 = vmatpush1.msra.mxu0 0.0
        %1320 = vmatprep.subr.mxu0 0.0
        %1321 = vmatpush1.msra.mxu0 0.0
        %1322 = vmatprep.subr.mxu0 0.0
        %1323 = vmatpush1.msra.mxu0 0.0
        %1324 = vmatprep.subr.mxu0 0.0
        %1325 = vmatpush1.msra.mxu0 0.0
        %1326 = vmatprep.subr.mxu0 0.0
        %1327 = vmatpush1.msra.mxu0 0.0
        %1328 = vmatprep.subr.mxu0 0.0
        %1329 = vmatpush1.msra.mxu0 0.0
        %1330 = vmatprep.subr.mxu0 0.0
        %1331 = vmatpush1.msra.mxu0 0.0
        %1332 = vmatprep.subr.mxu0 0.0
        %1333 = vmatpush1.msra.mxu0 0.0
        %1334 = vmatprep.subr.mxu0 0.0
        %1335 = vmatpush1.msra.mxu0 0.0
        %1336 = vmatprep.subr.mxu0 0.0
        %1337 = vmatpush1.msra.mxu0 0.0
        %1338 = vmatprep.subr.mxu0 0.0
        %1339 = vmatpush1.msra.mxu0 0.0
        %1340 = vmatprep.subr.mxu0 0.0
        %1341 = vmatpush1.msra.mxu0 0.0
        %1342 = vmatprep.mubr.f32.mxu0 0.0
        %1343 = vmatmul.mubr.f32.gmra.mrb[0].mxu0 %v1273
        %v1344 = vpop.f32.mrb[0].mxu0
        %v1345 = vadd.f32 %v1265, %v1344
        %v1346 = vpop.f32.mrb[0].mxu0
        %v1347 = vadd.f32 %v1265, %v1346
        %1348 = vmatprep.mubr.f32.mxu0 0.0
        %1349 = vmatmul.mubr.f32.gmra.mrb[0].mxu0 %v1276
        %v1350 = vpop.f32.mrb[0].mxu0
        %v1351 = vadd.f32 %v1270, %v1350
        %v1352 = vpop.f32.mrb[0].mxu0
        %v1353 = vadd.f32 %v1270, %v1352
        %1354 = vdwg.mxu0
        %1355 = vmatprep.subr.mxu0 %v1245
        %1356 = vmatpush1.msra.mxu0 %v1244
        %1357 = vmatprep.subr.mxu0 %v1249
        %1358 = vmatpush1.msra.mxu0 %v1248
        %1359 = vmatprep.subr.mxu0 %v1253
        %1360 = vmatpush1.msra.mxu0 %v1252
        %1361 = vmatprep.subr.mxu0 %v1257
        %1362 = vmatpush1.msra.mxu0 %v1256
        %1363 = vmatprep.subr.mxu0 0.0
        %1364 = vmatpush1.msra.mxu0 0.0
        %1365 = vmatprep.subr.mxu0 0.0
        %1366 = vmatpush1.msra.mxu0 0.0
        %1367 = vmatprep.subr.mxu0 0.0
        %1368 = vmatpush1.msra.mxu0 0.0
        %1369 = vmatprep.subr.mxu0 0.0
        %1370 = vmatpush1.msra.mxu0 0.0
        %1371 = vmatprep.subr.mxu0 0.0
        %1372 = vmatpush1.msra.mxu0 0.0
        %1373 = vmatprep.subr.mxu0 0.0
        %1374 = vmatpush1.msra.mxu0 0.0
        %1375 = vmatprep.subr.mxu0 0.0
        %1376 = vmatpush1.msra.mxu0 0.0
        %1377 = vmatprep.subr.mxu0 0.0
        %1378 = vmatpush1.msra.mxu0 0.0
        %1379 = vmatprep.subr.mxu0 0.0
        %1380 = vmatpush1.msra.mxu0 0.0
        %1381 = vmatprep.subr.mxu0 0.0
        %1382 = vmatpush1.msra.mxu0 0.0
        %1383 = vmatprep.subr.mxu0 0.0
        %1384 = vmatpush1.msra.mxu0 0.0
        %1385 = vmatprep.subr.mxu0 0.0
        %1386 = vmatpush1.msra.mxu0 0.0
        %1387 = vmatprep.subr.mxu0 0.0
        %1388 = vmatpush1.msra.mxu0 0.0
        %1389 = vmatprep.subr.mxu0 0.0
        %1390 = vmatpush1.msra.mxu0 0.0
        %1391 = vmatprep.subr.mxu0 0.0
        %1392 = vmatpush1.msra.mxu0 0.0
        %1393 = vmatprep.subr.mxu0 0.0
        %1394 = vmatpush1.msra.mxu0 0.0
        %1395 = vmatprep.subr.mxu0 0.0
        %1396 = vmatpush1.msra.mxu0 0.0
        %1397 = vmatprep.subr.mxu0 0.0
        %1398 = vmatpush1.msra.mxu0 0.0
        %1399 = vmatprep.subr.mxu0 0.0
        %1400 = vmatpush1.msra.mxu0 0.0
        %1401 = vmatprep.subr.mxu0 0.0
        %1402 = vmatpush1.msra.mxu0 0.0
        %1403 = vmatprep.subr.mxu0 0.0
        %1404 = vmatpush1.msra.mxu0 0.0
        %1405 = vmatprep.subr.mxu0 0.0
        %1406 = vmatpush1.msra.mxu0 0.0
        %1407 = vmatprep.subr.mxu0 0.0
        %1408 = vmatpush1.msra.mxu0 0.0
        %1409 = vmatprep.subr.mxu0 0.0
        %1410 = vmatpush1.msra.mxu0 0.0
        %1411 = vmatprep.subr.mxu0 0.0
        %1412 = vmatpush1.msra.mxu0 0.0
        %1413 = vmatprep.subr.mxu0 0.0
        %1414 = vmatpush1.msra.mxu0 0.0
        %1415 = vmatprep.subr.mxu0 0.0
        %1416 = vmatpush1.msra.mxu0 0.0
        %1417 = vmatprep.subr.mxu0 0.0
        %1418 = vmatpush1.msra.mxu0 0.0
        %1419 = vmatprep.mubr.f32.mxu0 0.0
        %1420 = vmatmul.mubr.f32.gmra.mrb[0].mxu0 %v1273
        %v1421 = vpop.f32.mrb[0].mxu0
        %v1422 = vadd.f32 %v1265, %v1421
        %v1423 = vpop.f32.mrb[0].mxu0
        %v1424 = vadd.f32 %v1265, %v1423
        %1425 = vmatprep.mubr.f32.mxu0 0.0
        %1426 = vmatmul.mubr.f32.gmra.mrb[0].mxu0 %v1276
        %v1427 = vpop.f32.mrb[0].mxu0
        %v1428 = vadd.f32 %v1270, %v1427
        %v1429 = vpop.f32.mrb[0].mxu0
        %v1430 = vadd.f32 %v1270, %v1429
        %1431 = vdwg.mxu0
        %v1432 = vmul.f32 %v1345, 0.5263158
        %v1433 = vmul.f32 %v1347, 0.5263158
        %v1434 = vmul.f32 %v1422, 0.5263158
        %v1435 = vmul.f32 %v1424, 0.5263158
        %v1436 = vtanh.pop %v1432
        %v1437 = vtanh.pop %v1433
        %v1438 = vtanh.pop %v1434
        %v1439 = vtanh.pop %v1435
        %v1440 = vmul.f32 %v1436, 1.9
        %v1441 = vmul.f32 %v1437, 1.9
        %v1442 = vmul.f32 %v1438, 1.9
        %v1443 = vmul.f32 %v1439, 1.9
        %v1444 = vmul.f32 %v1440, 1.442695
        %v1445 = vpow.pop %v1444
        %v1446 = vmul.f32 %v1441, 1.442695
        %v1447 = vpow.pop %v1446
        %v1448 = vmul.f32 %v1442, 1.442695
        %v1449 = vpow.pop %v1448
        %v1450 = vmul.f32 %v1443, 1.442695
        %v1451 = vpow.pop %v1450
        %v1452 = vmul.f32 %v374, %v1445
        %v1453 = vmul.f32 %v375, %v1447
        %v1454 = vmul.f32 %v376, %v1449
        %v1455 = vmul.f32 %v377, %v1451
        %v1456 = vadd.f32 %v1452, %v1351
        %v1457 = vadd.f32 %v1453, %v1353
        %v1458 = vadd.f32 %v1454, %v1428
        %v1459 = vadd.f32 %v1455, %v1430
        %v1460 = vadd.f32 %v1440, 0.0
        %v1461 = vadd.f32 %v1441, 0.0
        %v1462 = vadd.f32 %v1442, 0.0
        %v1463 = vadd.f32 %v1443, 0.0
        %s1464 = scalar_lea.vmem [#allocation3], 32
        %v1465 = vld [vmem:[%s1464] sm:$0xff]
        %v1466 = vld [vmem:[%s1464 + $0x8] sm:$0xff]
        %v1467 = vld [vmem:[%s1464 + $0x10] sm:$0xff]
        %v1468 = vld [vmem:[%s1464 + $0x18] sm:$0xff]
        %s1469 = scalar_lea.vmem [#allocation5], 32
        %v1470 = vld [vmem:[%s1469] sm:$0xff]
        %v1471 = vld [vmem:[%s1469 + $0x8] sm:$0xff]
        %v1472 = vld [vmem:[%s1469 + $0x10] sm:$0xff]
        %v1473 = vld [vmem:[%s1469 + $0x18] sm:$0xff]
        %v1475 = vsel %vm390, %v1470, 0
        %v1478 = vsel %vm390, %v1471, 0
        %v1481 = vsel %vm390, %v1472, 0
        %v1484 = vsel %vm390, %v1473, 0
        %1486 = vmatprep.subr.mxu0 %v379
        %1487 = vmatpush1.msra.mxu0 %v378
        %1488 = vmatprep.subr.mxu0 0.0
        %1489 = vmatpush1.msra.mxu0 0.0
        %1490 = vmatprep.subr.mxu0 0.0
        %1491 = vmatpush1.msra.mxu0 0.0
        %1492 = vmatprep.subr.mxu0 0.0
        %1493 = vmatpush1.msra.mxu0 0.0
        %1494 = vmatprep.subr.mxu0 0.0
        %1495 = vmatpush1.msra.mxu0 0.0
        %1496 = vmatprep.subr.mxu0 0.0
        %1497 = vmatpush1.msra.mxu0 0.0
        %1498 = vmatprep.subr.mxu0 0.0
        %1499 = vmatpush1.msra.mxu0 0.0
        %1500 = vmatprep.subr.mxu0 0.0
        %1501 = vmatpush1.msra.mxu0 0.0
        %1502 = vmatprep.subr.mxu0 0.0
        %1503 = vmatpush1.msra.mxu0 0.0
        %1504 = vmatprep.subr.mxu0 0.0
        %1505 = vmatpush1.msra.mxu0 0.0
        %1506 = vmatprep.subr.mxu0 0.0
        %1507 = vmatpush1.msra.mxu0 0.0
        %1508 = vmatprep.subr.mxu0 0.0
        %1509 = vmatpush1.msra.mxu0 0.0
        %1510 = vmatprep.subr.mxu0 0.0
        %1511 = vmatpush1.msra.mxu0 0.0
        %1512 = vmatprep.subr.mxu0 0.0
        %1513 = vmatpush1.msra.mxu0 0.0
        %1514 = vmatprep.subr.mxu0 0.0
        %1515 = vmatpush1.msra.mxu0 0.0
        %1516 = vmatprep.subr.mxu0 0.0
        %1517 = vmatpush1.msra.mxu0 0.0
        %1518 = vmatprep.subr.mxu0 0.0
        %1519 = vmatpush1.msra.mxu0 0.0
        %1520 = vmatprep.subr.mxu0 0.0
        %1521 = vmatpush1.msra.mxu0 0.0
        %1522 = vmatprep.subr.mxu0 0.0
        %1523 = vmatpush1.msra.mxu0 0.0
        %1524 = vmatprep.subr.mxu0 0.0
        %1525 = vmatpush1.msra.mxu0 0.0
        %1526 = vmatprep.subr.mxu0 0.0
        %1527 = vmatpush1.msra.mxu0 0.0
        %1528 = vmatprep.subr.mxu0 0.0
        %1529 = vmatpush1.msra.mxu0 0.0
        %1530 = vmatprep.subr.mxu0 0.0
        %1531 = vmatpush1.msra.mxu0 0.0
        %1532 = vmatprep.subr.mxu0 0.0
        %1533 = vmatpush1.msra.mxu0 0.0
        %1534 = vmatprep.subr.mxu0 0.0
        %1535 = vmatpush1.msra.mxu0 0.0
        %1536 = vmatprep.subr.mxu0 0.0
        %1537 = vmatpush1.msra.mxu0 0.0
        %1538 = vmatprep.subr.mxu0 0.0
        %1539 = vmatpush1.msra.mxu0 0.0
        %1540 = vmatprep.subr.mxu0 0.0
        %1541 = vmatpush1.msra.mxu0 0.0
        %1542 = vmatprep.subr.mxu0 0.0
        %1543 = vmatpush1.msra.mxu0 0.0
        %1544 = vmatprep.subr.mxu0 0.0
        %1545 = vmatpush1.msra.mxu0 0.0
        %1546 = vmatprep.subr.mxu0 0.0
        %1547 = vmatpush1.msra.mxu0 0.0
        %1548 = vmatprep.subr.mxu0 0.0
        %1549 = vmatpush1.msra.mxu0 0.0
        %1550 = vmatprep.mubr.f32.mxu0 0.0
        %1551 = vmatmul.mubr.f32.gmra.mrb[0].mxu0 %v1475
        %v1552 = vpop.f32.mrb[0].mxu0
        %v1553 = vadd.f32 0.0, %v1552
        %v1554 = vpop.f32.mrb[0].mxu0
        %v1555 = vadd.f32 0.0, %v1554
        %1556 = vmatprep.mubr.f32.mxu0 0.0
        %1557 = vmatmul.mubr.f32.gmra.mrb[0].mxu0 %v1478
        %v1558 = vpop.f32.mrb[0].mxu0
        %v1559 = vadd.f32 0.0, %v1558
        %v1560 = vpop.f32.mrb[0].mxu0
        %v1561 = vadd.f32 0.0, %v1560
        %1562 = vmatprep.mubr.f32.mxu0 0.0
        %1563 = vmatmul.mubr.f32.gmra.mrb[0].mxu0 %v1481
        %v1564 = vpop.f32.mrb[0].mxu0
        %v1565 = vadd.f32 0.0, %v1564
        %v1566 = vpop.f32.mrb[0].mxu0
        %v1567 = vadd.f32 0.0, %v1566
        %1568 = vmatprep.mubr.f32.mxu0 0.0
        %1569 = vmatmul.mubr.f32.gmra.mrb[0].mxu0 %v1484
        %v1570 = vpop.f32.mrb[0].mxu0
        %v1571 = vadd.f32 0.0, %v1570
        %v1572 = vpop.f32.mrb[0].mxu0
        %v1573 = vadd.f32 0.0, %v1572
        %1574 = vdwg.mxu0
        %1575 = vmatprep.subr.mxu0 %v381
        %1576 = vmatpush1.msra.mxu0 %v380
        %1577 = vmatprep.subr.mxu0 0.0
        %1578 = vmatpush1.msra.mxu0 0.0
        %1579 = vmatprep.subr.mxu0 0.0
        %1580 = vmatpush1.msra.mxu0 0.0
        %1581 = vmatprep.subr.mxu0 0.0
        %1582 = vmatpush1.msra.mxu0 0.0
        %1583 = vmatprep.subr.mxu0 0.0
        %1584 = vmatpush1.msra.mxu0 0.0
        %1585 = vmatprep.subr.mxu0 0.0
        %1586 = vmatpush1.msra.mxu0 0.0
        %1587 = vmatprep.subr.mxu0 0.0
        %1588 = vmatpush1.msra.mxu0 0.0
        %1589 = vmatprep.subr.mxu0 0.0
        %1590 = vmatpush1.msra.mxu0 0.0
        %1591 = vmatprep.subr.mxu0 0.0
        %1592 = vmatpush1.msra.mxu0 0.0
        %1593 = vmatprep.subr.mxu0 0.0
        %1594 = vmatpush1.msra.mxu0 0.0
        %1595 = vmatprep.subr.mxu0 0.0
        %1596 = vmatpush1.msra.mxu0 0.0
        %1597 = vmatprep.subr.mxu0 0.0
        %1598 = vmatpush1.msra.mxu0 0.0
        %1599 = vmatprep.subr.mxu0 0.0
        %1600 = vmatpush1.msra.mxu0 0.0
        %1601 = vmatprep.subr.mxu0 0.0
        %1602 = vmatpush1.msra.mxu0 0.0
        %1603 = vmatprep.subr.mxu0 0.0
        %1604 = vmatpush1.msra.mxu0 0.0
        %1605 = vmatprep.subr.mxu0 0.0
        %1606 = vmatpush1.msra.mxu0 0.0
        %1607 = vmatprep.subr.mxu0 0.0
        %1608 = vmatpush1.msra.mxu0 0.0
        %1609 = vmatprep.subr.mxu0 0.0
        %1610 = vmatpush1.msra.mxu0 0.0
        %1611 = vmatprep.subr.mxu0 0.0
        %1612 = vmatpush1.msra.mxu0 0.0
        %1613 = vmatprep.subr.mxu0 0.0
        %1614 = vmatpush1.msra.mxu0 0.0
        %1615 = vmatprep.subr.mxu0 0.0
        %1616 = vmatpush1.msra.mxu0 0.0
        %1617 = vmatprep.subr.mxu0 0.0
        %1618 = vmatpush1.msra.mxu0 0.0
        %1619 = vmatprep.subr.mxu0 0.0
        %1620 = vmatpush1.msra.mxu0 0.0
        %1621 = vmatprep.subr.mxu0 0.0
        %1622 = vmatpush1.msra.mxu0 0.0
        %1623 = vmatprep.subr.mxu0 0.0
        %1624 = vmatpush1.msra.mxu0 0.0
        %1625 = vmatprep.subr.mxu0 0.0
        %1626 = vmatpush1.msra.mxu0 0.0
        %1627 = vmatprep.subr.mxu0 0.0
        %1628 = vmatpush1.msra.mxu0 0.0
        %1629 = vmatprep.subr.mxu0 0.0
        %1630 = vmatpush1.msra.mxu0 0.0
        %1631 = vmatprep.subr.mxu0 0.0
        %1632 = vmatpush1.msra.mxu0 0.0
        %1633 = vmatprep.subr.mxu0 0.0
        %1634 = vmatpush1.msra.mxu0 0.0
        %1635 = vmatprep.subr.mxu0 0.0
        %1636 = vmatpush1.msra.mxu0 0.0
        %1637 = vmatprep.subr.mxu0 0.0
        %1638 = vmatpush1.msra.mxu0 0.0
        %1639 = vmatprep.mubr.f32.mxu0 0.0
        %1640 = vmatmul.mubr.f32.gmra.mrb[0].mxu0 %v1475
        %v1641 = vpop.f32.mrb[0].mxu0
        %v1642 = vadd.f32 0.0, %v1641
        %v1643 = vpop.f32.mrb[0].mxu0
        %v1644 = vadd.f32 0.0, %v1643
        %1645 = vmatprep.mubr.f32.mxu0 0.0
        %1646 = vmatmul.mubr.f32.gmra.mrb[0].mxu0 %v1478
        %v1647 = vpop.f32.mrb[0].mxu0
        %v1648 = vadd.f32 0.0, %v1647
        %v1649 = vpop.f32.mrb[0].mxu0
        %v1650 = vadd.f32 0.0, %v1649
        %1651 = vmatprep.mubr.f32.mxu0 0.0
        %1652 = vmatmul.mubr.f32.gmra.mrb[0].mxu0 %v1481
        %v1653 = vpop.f32.mrb[0].mxu0
        %v1654 = vadd.f32 0.0, %v1653
        %v1655 = vpop.f32.mrb[0].mxu0
        %v1656 = vadd.f32 0.0, %v1655
        %1657 = vmatprep.mubr.f32.mxu0 0.0
        %1658 = vmatmul.mubr.f32.gmra.mrb[0].mxu0 %v1484
        %v1659 = vpop.f32.mrb[0].mxu0
        %v1660 = vadd.f32 0.0, %v1659
        %v1661 = vpop.f32.mrb[0].mxu0
        %v1662 = vadd.f32 0.0, %v1661
        %1663 = vdwg.mxu0
        %v1665 = vsel %vm390, %v1465, 0
        %v1668 = vsel %vm390, %v1466, 0
        %v1671 = vsel %vm390, %v1467, 0
        %v1674 = vsel %vm390, %v1468, 0
        %1676 = vmatprep.subr.mxu0 %v1457
        %1677 = vmatpush1.msra.mxu0 %v1456
        %1678 = vmatprep.subr.mxu0 0.0
        %1679 = vmatpush1.msra.mxu0 0.0
        %1680 = vmatprep.subr.mxu0 0.0
        %1681 = vmatpush1.msra.mxu0 0.0
        %1682 = vmatprep.subr.mxu0 0.0
        %1683 = vmatpush1.msra.mxu0 0.0
        %1684 = vmatprep.subr.mxu0 0.0
        %1685 = vmatpush1.msra.mxu0 0.0
        %1686 = vmatprep.subr.mxu0 0.0
        %1687 = vmatpush1.msra.mxu0 0.0
        %1688 = vmatprep.subr.mxu0 0.0
        %1689 = vmatpush1.msra.mxu0 0.0
        %1690 = vmatprep.subr.mxu0 0.0
        %1691 = vmatpush1.msra.mxu0 0.0
        %1692 = vmatprep.subr.mxu0 0.0
        %1693 = vmatpush1.msra.mxu0 0.0
        %1694 = vmatprep.subr.mxu0 0.0
        %1695 = vmatpush1.msra.mxu0 0.0
        %1696 = vmatprep.subr.mxu0 0.0
        %1697 = vmatpush1.msra.mxu0 0.0
        %1698 = vmatprep.subr.mxu0 0.0
        %1699 = vmatpush1.msra.mxu0 0.0
        %1700 = vmatprep.subr.mxu0 0.0
        %1701 = vmatpush1.msra.mxu0 0.0
        %1702 = vmatprep.subr.mxu0 0.0
        %1703 = vmatpush1.msra.mxu0 0.0
        %1704 = vmatprep.subr.mxu0 0.0
        %1705 = vmatpush1.msra.mxu0 0.0
        %1706 = vmatprep.subr.mxu0 0.0
        %1707 = vmatpush1.msra.mxu0 0.0
        %1708 = vmatprep.subr.mxu0 0.0
        %1709 = vmatpush1.msra.mxu0 0.0
        %1710 = vmatprep.subr.mxu0 0.0
        %1711 = vmatpush1.msra.mxu0 0.0
        %1712 = vmatprep.subr.mxu0 0.0
        %1713 = vmatpush1.msra.mxu0 0.0
        %1714 = vmatprep.subr.mxu0 0.0
        %1715 = vmatpush1.msra.mxu0 0.0
        %1716 = vmatprep.subr.mxu0 0.0
        %1717 = vmatpush1.msra.mxu0 0.0
        %1718 = vmatprep.subr.mxu0 0.0
        %1719 = vmatpush1.msra.mxu0 0.0
        %1720 = vmatprep.subr.mxu0 0.0
        %1721 = vmatpush1.msra.mxu0 0.0
        %1722 = vmatprep.subr.mxu0 0.0
        %1723 = vmatpush1.msra.mxu0 0.0
        %1724 = vmatprep.subr.mxu0 0.0
        %1725 = vmatpush1.msra.mxu0 0.0
        %1726 = vmatprep.subr.mxu0 0.0
        %1727 = vmatpush1.msra.mxu0 0.0
        %1728 = vmatprep.subr.mxu0 0.0
        %1729 = vmatpush1.msra.mxu0 0.0
        %1730 = vmatprep.subr.mxu0 0.0
        %1731 = vmatpush1.msra.mxu0 0.0
        %1732 = vmatprep.subr.mxu0 0.0
        %1733 = vmatpush1.msra.mxu0 0.0
        %1734 = vmatprep.subr.mxu0 0.0
        %1735 = vmatpush1.msra.mxu0 0.0
        %1736 = vmatprep.subr.mxu0 0.0
        %1737 = vmatpush1.msra.mxu0 0.0
        %1738 = vmatprep.subr.mxu0 0.0
        %1739 = vmatpush1.msra.mxu0 0.0
        %1740 = vmatprep.mubr.f32.mxu0 0.0
        %1741 = vmatmul.mubr.f32.gmra.mrb[0].mxu0 %v1665
        %v1742 = vpop.f32.mrb[0].mxu0
        %v1743 = vadd.f32 %v1553, %v1742
        %v1744 = vpop.f32.mrb[0].mxu0
        %v1745 = vadd.f32 %v1555, %v1744
        %1746 = vmatprep.mubr.f32.mxu0 0.0
        %1747 = vmatmul.mubr.f32.gmra.mrb[0].mxu0 %v1668
        %v1748 = vpop.f32.mrb[0].mxu0
        %v1749 = vadd.f32 %v1559, %v1748
        %v1750 = vpop.f32.mrb[0].mxu0
        %v1751 = vadd.f32 %v1561, %v1750
        %1752 = vmatprep.mubr.f32.mxu0 0.0
        %1753 = vmatmul.mubr.f32.gmra.mrb[0].mxu0 %v1671
        %v1754 = vpop.f32.mrb[0].mxu0
        %v1755 = vadd.f32 %v1565, %v1754
        %v1756 = vpop.f32.mrb[0].mxu0
        %v1757 = vadd.f32 %v1567, %v1756
        %1758 = vmatprep.mubr.f32.mxu0 0.0
        %1759 = vmatmul.mubr.f32.gmra.mrb[0].mxu0 %v1674
        %v1760 = vpop.f32.mrb[0].mxu0
        %v1761 = vadd.f32 %v1571, %v1760
        %v1762 = vpop.f32.mrb[0].mxu0
        %v1763 = vadd.f32 %v1573, %v1762
        %1764 = vdwg.mxu0
        %1765 = vmatprep.subr.mxu0 %v1459
        %1766 = vmatpush1.msra.mxu0 %v1458
        %1767 = vmatprep.subr.mxu0 0.0
        %1768 = vmatpush1.msra.mxu0 0.0
        %1769 = vmatprep.subr.mxu0 0.0
        %1770 = vmatpush1.msra.mxu0 0.0
        %1771 = vmatprep.subr.mxu0 0.0
        %1772 = vmatpush1.msra.mxu0 0.0
        %1773 = vmatprep.subr.mxu0 0.0
        %1774 = vmatpush1.msra.mxu0 0.0
        %1775 = vmatprep.subr.mxu0 0.0
        %1776 = vmatpush1.msra.mxu0 0.0
        %1777 = vmatprep.subr.mxu0 0.0
        %1778 = vmatpush1.msra.mxu0 0.0
        %1779 = vmatprep.subr.mxu0 0.0
        %1780 = vmatpush1.msra.mxu0 0.0
        %1781 = vmatprep.subr.mxu0 0.0
        %1782 = vmatpush1.msra.mxu0 0.0
        %1783 = vmatprep.subr.mxu0 0.0
        %1784 = vmatpush1.msra.mxu0 0.0
        %1785 = vmatprep.subr.mxu0 0.0
        %1786 = vmatpush1.msra.mxu0 0.0
        %1787 = vmatprep.subr.mxu0 0.0
        %1788 = vmatpush1.msra.mxu0 0.0
        %1789 = vmatprep.subr.mxu0 0.0
        %1790 = vmatpush1.msra.mxu0 0.0
        %1791 = vmatprep.subr.mxu0 0.0
        %1792 = vmatpush1.msra.mxu0 0.0
        %1793 = vmatprep.subr.mxu0 0.0
        %1794 = vmatpush1.msra.mxu0 0.0
        %1795 = vmatprep.subr.mxu0 0.0
        %1796 = vmatpush1.msra.mxu0 0.0
        %1797 = vmatprep.subr.mxu0 0.0
        %1798 = vmatpush1.msra.mxu0 0.0
        %1799 = vmatprep.subr.mxu0 0.0
        %1800 = vmatpush1.msra.mxu0 0.0
        %1801 = vmatprep.subr.mxu0 0.0
        %1802 = vmatpush1.msra.mxu0 0.0
        %1803 = vmatprep.subr.mxu0 0.0
        %1804 = vmatpush1.msra.mxu0 0.0
        %1805 = vmatprep.subr.mxu0 0.0
        %1806 = vmatpush1.msra.mxu0 0.0
        %1807 = vmatprep.subr.mxu0 0.0
        %1808 = vmatpush1.msra.mxu0 0.0
        %1809 = vmatprep.subr.mxu0 0.0
        %1810 = vmatpush1.msra.mxu0 0.0
        %1811 = vmatprep.subr.mxu0 0.0
        %1812 = vmatpush1.msra.mxu0 0.0
        %1813 = vmatprep.subr.mxu0 0.0
        %1814 = vmatpush1.msra.mxu0 0.0
        %1815 = vmatprep.subr.mxu0 0.0
        %1816 = vmatpush1.msra.mxu0 0.0
        %1817 = vmatprep.subr.mxu0 0.0
        %1818 = vmatpush1.msra.mxu0 0.0
        %1819 = vmatprep.subr.mxu0 0.0
        %1820 = vmatpush1.msra.mxu0 0.0
        %1821 = vmatprep.subr.mxu0 0.0
        %1822 = vmatpush1.msra.mxu0 0.0
        %1823 = vmatprep.subr.mxu0 0.0
        %1824 = vmatpush1.msra.mxu0 0.0
        %1825 = vmatprep.subr.mxu0 0.0
        %1826 = vmatpush1.msra.mxu0 0.0
        %1827 = vmatprep.subr.mxu0 0.0
        %1828 = vmatpush1.msra.mxu0 0.0
        %1829 = vmatprep.mubr.f32.mxu0 0.0
        %1830 = vmatmul.mubr.f32.gmra.mrb[0].mxu0 %v1665
        %v1831 = vpop.f32.mrb[0].mxu0
        %v1832 = vadd.f32 %v1642, %v1831
        %v1833 = vpop.f32.mrb[0].mxu0
        %v1834 = vadd.f32 %v1644, %v1833
        %1835 = vmatprep.mubr.f32.mxu0 0.0
        %1836 = vmatmul.mubr.f32.gmra.mrb[0].mxu0 %v1668
        %v1837 = vpop.f32.mrb[0].mxu0
        %v1838 = vadd.f32 %v1648, %v1837
        %v1839 = vpop.f32.mrb[0].mxu0
        %v1840 = vadd.f32 %v1650, %v1839
        %1841 = vmatprep.mubr.f32.mxu0 0.0
        %1842 = vmatmul.mubr.f32.gmra.mrb[0].mxu0 %v1671
        %v1843 = vpop.f32.mrb[0].mxu0
        %v1844 = vadd.f32 %v1654, %v1843
        %v1845 = vpop.f32.mrb[0].mxu0
        %v1846 = vadd.f32 %v1656, %v1845
        %1847 = vmatprep.mubr.f32.mxu0 0.0
        %1848 = vmatmul.mubr.f32.gmra.mrb[0].mxu0 %v1674
        %v1849 = vpop.f32.mrb[0].mxu0
        %v1850 = vadd.f32 %v1660, %v1849
        %v1851 = vpop.f32.mrb[0].mxu0
        %v1852 = vadd.f32 %v1662, %v1851
        %1853 = vdwg.mxu0
        %v1854 = vmax.f32 %v1743, 0.0
        %v1855 = vmax.f32 %v1745, 0.0
        %v1856 = vmax.f32 %v1832, 0.0
        %v1857 = vmax.f32 %v1834, 0.0
        %v1858 = vmax.f32 %v1749, 0.0
        %v1859 = vmax.f32 %v1751, 0.0
        %v1860 = vmax.f32 %v1838, 0.0
        %v1861 = vmax.f32 %v1840, 0.0
        %v1862 = vmax.f32 %v1755, 0.0
        %v1863 = vmax.f32 %v1757, 0.0
        %v1864 = vmax.f32 %v1844, 0.0
        %v1865 = vmax.f32 %v1846, 0.0
        %v1866 = vmax.f32 %v1761, 0.0
        %v1867 = vmax.f32 %v1763, 0.0
        %v1868 = vmax.f32 %v1850, 0.0
        %v1869 = vmax.f32 %v1852, 0.0
        %s1870 = scalar_lea.vmem %s3, 64
        %v1871 = vld [vmem:[%s1870] sm:$0xff]
        %v1872 = vld [vmem:[%s1870 + $0x8] sm:$0xff]
        %v1873 = vld [vmem:[%s1870 + $0x10] sm:$0xff]
        %v1874 = vld [vmem:[%s1870 + $0x18] sm:$0xff]
        %s1875 = scalar_lea.vmem [#allocation7], 64
        %v1876 = vld [vmem:[%s1875] sm:$0xff]
        %v1877 = vld [vmem:[%s1875 + $0x8] sm:$0xff]
        %v1878 = vld [vmem:[%s1875 + $0x10] sm:$0xff]
        %v1879 = vld [vmem:[%s1875 + $0x18] sm:$0xff]
        %1881 = vset.pattern.permute.xlu0 0
        %1882 = vperm.xlu0 %1881, %v1876
        %v1883 = vpop.permute.xlu0 %1882
        %1886 = vset.pattern.permute.xlu0 0
        %1887 = vperm.xlu0 %1886, %v1877
        %v1888 = vpop.permute.xlu0 %1887
        %1891 = vset.pattern.permute.xlu0 0
        %1892 = vperm.xlu0 %1891, %v1878
        %v1893 = vpop.permute.xlu0 %1892
        %1896 = vset.pattern.permute.xlu0 0
        %1897 = vperm.xlu0 %1896, %v1879
        %v1898 = vpop.permute.xlu0 %1897
        %v1901 = vsel %vm815, %v1871, 0
        %v1904 = vsel %vm815, %v1872, 0
        %v1907 = vsel %vm815, %v1873, 0
        %v1910 = vsel %vm815, %v1874, 0
        %1912 = vmatprep.subr.mxu0 %v1855
        %1913 = vmatpush1.msra.mxu0 %v1854
        %1914 = vmatprep.subr.mxu0 %v1859
        %1915 = vmatpush1.msra.mxu0 %v1858
        %1916 = vmatprep.subr.mxu0 %v1863
        %1917 = vmatpush1.msra.mxu0 %v1862
        %1918 = vmatprep.subr.mxu0 %v1867
        %1919 = vmatpush1.msra.mxu0 %v1866
        %1920 = vmatprep.subr.mxu0 0.0
        %1921 = vmatpush1.msra.mxu0 0.0
        %1922 = vmatprep.subr.mxu0 0.0
        %1923 = vmatpush1.msra.mxu0 0.0
        %1924 = vmatprep.subr.mxu0 0.0
        %1925 = vmatpush1.msra.mxu0 0.0
        %1926 = vmatprep.subr.mxu0 0.0
        %1927 = vmatpush1.msra.mxu0 0.0
        %1928 = vmatprep.subr.mxu0 0.0
        %1929 = vmatpush1.msra.mxu0 0.0
        %1930 = vmatprep.subr.mxu0 0.0
        %1931 = vmatpush1.msra.mxu0 0.0
        %1932 = vmatprep.subr.mxu0 0.0
        %1933 = vmatpush1.msra.mxu0 0.0
        %1934 = vmatprep.subr.mxu0 0.0
        %1935 = vmatpush1.msra.mxu0 0.0
        %1936 = vmatprep.subr.mxu0 0.0
        %1937 = vmatpush1.msra.mxu0 0.0
        %1938 = vmatprep.subr.mxu0 0.0
        %1939 = vmatpush1.msra.mxu0 0.0
        %1940 = vmatprep.subr.mxu0 0.0
        %1941 = vmatpush1.msra.mxu0 0.0
        %1942 = vmatprep.subr.mxu0 0.0
        %1943 = vmatpush1.msra.mxu0 0.0
        %1944 = vmatprep.subr.mxu0 0.0
        %1945 = vmatpush1.msra.mxu0 0.0
        %1946 = vmatprep.subr.mxu0 0.0
        %1947 = vmatpush1.msra.mxu0 0.0
        %1948 = vmatprep.subr.mxu0 0.0
        %1949 = vmatpush1.msra.mxu0 0.0
        %1950 = vmatprep.subr.mxu0 0.0
        %1951 = vmatpush1.msra.mxu0 0.0
        %1952 = vmatprep.subr.mxu0 0.0
        %1953 = vmatpush1.msra.mxu0 0.0
        %1954 = vmatprep.subr.mxu0 0.0
        %1955 = vmatpush1.msra.mxu0 0.0
        %1956 = vmatprep.subr.mxu0 0.0
        %1957 = vmatpush1.msra.mxu0 0.0
        %1958 = vmatprep.subr.mxu0 0.0
        %1959 = vmatpush1.msra.mxu0 0.0
        %1960 = vmatprep.subr.mxu0 0.0
        %1961 = vmatpush1.msra.mxu0 0.0
        %1962 = vmatprep.subr.mxu0 0.0
        %1963 = vmatpush1.msra.mxu0 0.0
        %1964 = vmatprep.subr.mxu0 0.0
        %1965 = vmatpush1.msra.mxu0 0.0
        %1966 = vmatprep.subr.mxu0 0.0
        %1967 = vmatpush1.msra.mxu0 0.0
        %1968 = vmatprep.subr.mxu0 0.0
        %1969 = vmatpush1.msra.mxu0 0.0
        %1970 = vmatprep.subr.mxu0 0.0
        %1971 = vmatpush1.msra.mxu0 0.0
        %1972 = vmatprep.subr.mxu0 0.0
        %1973 = vmatpush1.msra.mxu0 0.0
        %1974 = vmatprep.subr.mxu0 0.0
        %1975 = vmatpush1.msra.mxu0 0.0
        %1976 = vmatprep.mubr.f32.mxu0 0.0
        %1977 = vmatmul.mubr.f32.gmra.mrb[0].mxu0 %v1901
        %v1978 = vpop.f32.mrb[0].mxu0
        %v1979 = vadd.f32 %v1883, %v1978
        %v1980 = vpop.f32.mrb[0].mxu0
        %v1981 = vadd.f32 %v1883, %v1980
        %1982 = vmatprep.mubr.f32.mxu0 0.0
        %1983 = vmatmul.mubr.f32.gmra.mrb[0].mxu0 %v1904
        %v1984 = vpop.f32.mrb[0].mxu0
        %v1985 = vadd.f32 %v1888, %v1984
        %v1986 = vpop.f32.mrb[0].mxu0
        %v1987 = vadd.f32 %v1888, %v1986
        %1988 = vmatprep.mubr.f32.mxu0 0.0
        %1989 = vmatmul.mubr.f32.gmra.mrb[0].mxu0 %v1907
        %v1990 = vpop.f32.mrb[0].mxu0
        %v1991 = vadd.f32 %v1893, %v1990
        %v1992 = vpop.f32.mrb[0].mxu0
        %v1993 = vadd.f32 %v1893, %v1992
        %1994 = vmatprep.mubr.f32.mxu0 0.0
        %1995 = vmatmul.mubr.f32.gmra.mrb[0].mxu0 %v1910
        %v1996 = vpop.f32.mrb[0].mxu0
        %v1997 = vadd.f32 %v1898, %v1996
        %v1998 = vpop.f32.mrb[0].mxu0
        %v1999 = vadd.f32 %v1898, %v1998
        %2000 = vdwg.mxu0
        %2001 = vmatprep.subr.mxu0 %v1857
        %2002 = vmatpush1.msra.mxu0 %v1856
        %2003 = vmatprep.subr.mxu0 %v1861
        %2004 = vmatpush1.msra.mxu0 %v1860
        %2005 = vmatprep.subr.mxu0 %v1865
        %2006 = vmatpush1.msra.mxu0 %v1864
        %2007 = vmatprep.subr.mxu0 %v1869
        %2008 = vmatpush1.msra.mxu0 %v1868
        %2009 = vmatprep.subr.mxu0 0.0
        %2010 = vmatpush1.msra.mxu0 0.0
        %2011 = vmatprep.subr.mxu0 0.0
        %2012 = vmatpush1.msra.mxu0 0.0
        %2013 = vmatprep.subr.mxu0 0.0
        %2014 = vmatpush1.msra.mxu0 0.0
        %2015 = vmatprep.subr.mxu0 0.0
        %2016 = vmatpush1.msra.mxu0 0.0
        %2017 = vmatprep.subr.mxu0 0.0
        %2018 = vmatpush1.msra.mxu0 0.0
        %2019 = vmatprep.subr.mxu0 0.0
        %2020 = vmatpush1.msra.mxu0 0.0
        %2021 = vmatprep.subr.mxu0 0.0
        %2022 = vmatpush1.msra.mxu0 0.0
        %2023 = vmatprep.subr.mxu0 0.0
        %2024 = vmatpush1.msra.mxu0 0.0
        %2025 = vmatprep.subr.mxu0 0.0
        %2026 = vmatpush1.msra.mxu0 0.0
        %2027 = vmatprep.subr.mxu0 0.0
        %2028 = vmatpush1.msra.mxu0 0.0
        %2029 = vmatprep.subr.mxu0 0.0
        %2030 = vmatpush1.msra.mxu0 0.0
        %2031 = vmatprep.subr.mxu0 0.0
        %2032 = vmatpush1.msra.mxu0 0.0
        %2033 = vmatprep.subr.mxu0 0.0
        %2034 = vmatpush1.msra.mxu0 0.0
        %2035 = vmatprep.subr.mxu0 0.0
        %2036 = vmatpush1.msra.mxu0 0.0
        %2037 = vmatprep.subr.mxu0 0.0
        %2038 = vmatpush1.msra.mxu0 0.0
        %2039 = vmatprep.subr.mxu0 0.0
        %2040 = vmatpush1.msra.mxu0 0.0
        %2041 = vmatprep.subr.mxu0 0.0
        %2042 = vmatpush1.msra.mxu0 0.0
        %2043 = vmatprep.subr.mxu0 0.0
        %2044 = vmatpush1.msra.mxu0 0.0
        %2045 = vmatprep.subr.mxu0 0.0
        %2046 = vmatpush1.msra.mxu0 0.0
        %2047 = vmatprep.subr.mxu0 0.0
        %2048 = vmatpush1.msra.mxu0 0.0
        %2049 = vmatprep.subr.mxu0 0.0
        %2050 = vmatpush1.msra.mxu0 0.0
        %2051 = vmatprep.subr.mxu0 0.0
        %2052 = vmatpush1.msra.mxu0 0.0
        %2053 = vmatprep.subr.mxu0 0.0
        %2054 = vmatpush1.msra.mxu0 0.0
        %2055 = vmatprep.subr.mxu0 0.0
        %2056 = vmatpush1.msra.mxu0 0.0
        %2057 = vmatprep.subr.mxu0 0.0
        %2058 = vmatpush1.msra.mxu0 0.0
        %2059 = vmatprep.subr.mxu0 0.0
        %2060 = vmatpush1.msra.mxu0 0.0
        %2061 = vmatprep.subr.mxu0 0.0
        %2062 = vmatpush1.msra.mxu0 0.0
        %2063 = vmatprep.subr.mxu0 0.0
        %2064 = vmatpush1.msra.mxu0 0.0
        %2065 = vmatprep.mubr.f32.mxu0 0.0
        %2066 = vmatmul.mubr.f32.gmra.mrb[0].mxu0 %v1901
        %v2067 = vpop.f32.mrb[0].mxu0
        %v2068 = vadd.f32 %v1883, %v2067
        %v2069 = vpop.f32.mrb[0].mxu0
        %v2070 = vadd.f32 %v1883, %v2069
        %2071 = vmatprep.mubr.f32.mxu0 0.0
        %2072 = vmatmul.mubr.f32.gmra.mrb[0].mxu0 %v1904
        %v2073 = vpop.f32.mrb[0].mxu0
        %v2074 = vadd.f32 %v1888, %v2073
        %v2075 = vpop.f32.mrb[0].mxu0
        %v2076 = vadd.f32 %v1888, %v2075
        %2077 = vmatprep.mubr.f32.mxu0 0.0
        %2078 = vmatmul.mubr.f32.gmra.mrb[0].mxu0 %v1907
        %v2079 = vpop.f32.mrb[0].mxu0
        %v2080 = vadd.f32 %v1893, %v2079
        %v2081 = vpop.f32.mrb[0].mxu0
        %v2082 = vadd.f32 %v1893, %v2081
        %2083 = vmatprep.mubr.f32.mxu0 0.0
        %2084 = vmatmul.mubr.f32.gmra.mrb[0].mxu0 %v1910
        %v2085 = vpop.f32.mrb[0].mxu0
        %v2086 = vadd.f32 %v1898, %v2085
        %v2087 = vpop.f32.mrb[0].mxu0
        %v2088 = vadd.f32 %v1898, %v2087
        %2089 = vdwg.mxu0
        %v2090 = vmax.f32 %v1979, 0.0
        %v2091 = vmax.f32 %v1981, 0.0
        %v2092 = vmax.f32 %v2068, 0.0
        %v2093 = vmax.f32 %v2070, 0.0
        %v2094 = vmax.f32 %v1985, 0.0
        %v2095 = vmax.f32 %v1987, 0.0
        %v2096 = vmax.f32 %v2074, 0.0
        %v2097 = vmax.f32 %v2076, 0.0
        %v2098 = vmax.f32 %v1991, 0.0
        %v2099 = vmax.f32 %v1993, 0.0
        %v2100 = vmax.f32 %v2080, 0.0
        %v2101 = vmax.f32 %v2082, 0.0
        %v2102 = vmax.f32 %v1997, 0.0
        %v2103 = vmax.f32 %v1999, 0.0
        %v2104 = vmax.f32 %v2086, 0.0
        %v2105 = vmax.f32 %v2088, 0.0
        %s2106 = scalar_lea.vmem %s3, 96
        %v2107 = vld [vmem:[%s2106] sm:$0xff]
        %v2108 = vld [vmem:[%s2106 + $0x8] sm:$0xff]
        %v2109 = vld [vmem:[%s2106 + $0x10] sm:$0xff]
        %v2110 = vld [vmem:[%s2106 + $0x18] sm:$0xff]
        %s2111 = scalar_lea.vmem [#allocation7], 96
        %v2112 = vld [vmem:[%s2111] sm:$0xff]
        %v2113 = vld [vmem:[%s2111 + $0x8] sm:$0xff]
        %v2114 = vld [vmem:[%s2111 + $0x10] sm:$0xff]
        %v2115 = vld [vmem:[%s2111 + $0x18] sm:$0xff]
        %2117 = vset.pattern.permute.xlu0 0
        %2118 = vperm.xlu0 %2117, %v2112
        %v2119 = vpop.permute.xlu0 %2118
        %2122 = vset.pattern.permute.xlu0 0
        %2123 = vperm.xlu0 %2122, %v2113
        %v2124 = vpop.permute.xlu0 %2123
        %2127 = vset.pattern.permute.xlu0 0
        %2128 = vperm.xlu0 %2127, %v2114
        %v2129 = vpop.permute.xlu0 %2128
        %2132 = vset.pattern.permute.xlu0 0
        %2133 = vperm.xlu0 %2132, %v2115
        %v2134 = vpop.permute.xlu0 %2133
        %v2137 = vsel %vm815, %v2107, 0
        %v2140 = vsel %vm815, %v2108, 0
        %v2143 = vsel %vm815, %v2109, 0
        %v2146 = vsel %vm815, %v2110, 0
        %2148 = vmatprep.subr.mxu0 %v2091
        %2149 = vmatpush1.msra.mxu0 %v2090
        %2150 = vmatprep.subr.mxu0 %v2095
        %2151 = vmatpush1.msra.mxu0 %v2094
        %2152 = vmatprep.subr.mxu0 %v2099
        %2153 = vmatpush1.msra.mxu0 %v2098
        %2154 = vmatprep.subr.mxu0 %v2103
        %2155 = vmatpush1.msra.mxu0 %v2102
        %2156 = vmatprep.subr.mxu0 0.0
        %2157 = vmatpush1.msra.mxu0 0.0
        %2158 = vmatprep.subr.mxu0 0.0
        %2159 = vmatpush1.msra.mxu0 0.0
        %2160 = vmatprep.subr.mxu0 0.0
        %2161 = vmatpush1.msra.mxu0 0.0
        %2162 = vmatprep.subr.mxu0 0.0
        %2163 = vmatpush1.msra.mxu0 0.0
        %2164 = vmatprep.subr.mxu0 0.0
        %2165 = vmatpush1.msra.mxu0 0.0
        %2166 = vmatprep.subr.mxu0 0.0
        %2167 = vmatpush1.msra.mxu0 0.0
        %2168 = vmatprep.subr.mxu0 0.0
        %2169 = vmatpush1.msra.mxu0 0.0
        %2170 = vmatprep.subr.mxu0 0.0
        %2171 = vmatpush1.msra.mxu0 0.0
        %2172 = vmatprep.subr.mxu0 0.0
        %2173 = vmatpush1.msra.mxu0 0.0
        %2174 = vmatprep.subr.mxu0 0.0
        %2175 = vmatpush1.msra.mxu0 0.0
        %2176 = vmatprep.subr.mxu0 0.0
        %2177 = vmatpush1.msra.mxu0 0.0
        %2178 = vmatprep.subr.mxu0 0.0
        %2179 = vmatpush1.msra.mxu0 0.0
        %2180 = vmatprep.subr.mxu0 0.0
        %2181 = vmatpush1.msra.mxu0 0.0
        %2182 = vmatprep.subr.mxu0 0.0
        %2183 = vmatpush1.msra.mxu0 0.0
        %2184 = vmatprep.subr.mxu0 0.0
        %2185 = vmatpush1.msra.mxu0 0.0
        %2186 = vmatprep.subr.mxu0 0.0
        %2187 = vmatpush1.msra.mxu0 0.0
        %2188 = vmatprep.subr.mxu0 0.0
        %2189 = vmatpush1.msra.mxu0 0.0
        %2190 = vmatprep.subr.mxu0 0.0
        %2191 = vmatpush1.msra.mxu0 0.0
        %2192 = vmatprep.subr.mxu0 0.0
        %2193 = vmatpush1.msra.mxu0 0.0
        %2194 = vmatprep.subr.mxu0 0.0
        %2195 = vmatpush1.msra.mxu0 0.0
        %2196 = vmatprep.subr.mxu0 0.0
        %2197 = vmatpush1.msra.mxu0 0.0
        %2198 = vmatprep.subr.mxu0 0.0
        %2199 = vmatpush1.msra.mxu0 0.0
        %2200 = vmatprep.subr.mxu0 0.0
        %2201 = vmatpush1.msra.mxu0 0.0
        %2202 = vmatprep.subr.mxu0 0.0
        %2203 = vmatpush1.msra.mxu0 0.0
        %2204 = vmatprep.subr.mxu0 0.0
        %2205 = vmatpush1.msra.mxu0 0.0
        %2206 = vmatprep.subr.mxu0 0.0
        %2207 = vmatpush1.msra.mxu0 0.0
        %2208 = vmatprep.subr.mxu0 0.0
        %2209 = vmatpush1.msra.mxu0 0.0
        %2210 = vmatprep.subr.mxu0 0.0
        %2211 = vmatpush1.msra.mxu0 0.0
        %2212 = vmatprep.mubr.f32.mxu0 0.0
        %2213 = vmatmul.mubr.f32.gmra.mrb[0].mxu0 %v2137
        %v2214 = vpop.f32.mrb[0].mxu0
        %v2215 = vadd.f32 %v2119, %v2214
        %v2216 = vpop.f32.mrb[0].mxu0
        %v2217 = vadd.f32 %v2119, %v2216
        %2218 = vmatprep.mubr.f32.mxu0 0.0
        %2219 = vmatmul.mubr.f32.gmra.mrb[0].mxu0 %v2140
        %v2220 = vpop.f32.mrb[0].mxu0
        %v2221 = vadd.f32 %v2124, %v2220
        %v2222 = vpop.f32.mrb[0].mxu0
        %v2223 = vadd.f32 %v2124, %v2222
        %2224 = vmatprep.mubr.f32.mxu0 0.0
        %2225 = vmatmul.mubr.f32.gmra.mrb[0].mxu0 %v2143
        %v2226 = vpop.f32.mrb[0].mxu0
        %v2227 = vadd.f32 %v2129, %v2226
        %v2228 = vpop.f32.mrb[0].mxu0
        %v2229 = vadd.f32 %v2129, %v2228
        %2230 = vmatprep.mubr.f32.mxu0 0.0
        %2231 = vmatmul.mubr.f32.gmra.mrb[0].mxu0 %v2146
        %v2232 = vpop.f32.mrb[0].mxu0
        %v2233 = vadd.f32 %v2134, %v2232
        %v2234 = vpop.f32.mrb[0].mxu0
        %v2235 = vadd.f32 %v2134, %v2234
        %2236 = vdwg.mxu0
        %2237 = vmatprep.subr.mxu0 %v2093
        %2238 = vmatpush1.msra.mxu0 %v2092
        %2239 = vmatprep.subr.mxu0 %v2097
        %2240 = vmatpush1.msra.mxu0 %v2096
        %2241 = vmatprep.subr.mxu0 %v2101
        %2242 = vmatpush1.msra.mxu0 %v2100
        %2243 = vmatprep.subr.mxu0 %v2105
        %2244 = vmatpush1.msra.mxu0 %v2104
        %2245 = vmatprep.subr.mxu0 0.0
        %2246 = vmatpush1.msra.mxu0 0.0
        %2247 = vmatprep.subr.mxu0 0.0
        %2248 = vmatpush1.msra.mxu0 0.0
        %2249 = vmatprep.subr.mxu0 0.0
        %2250 = vmatpush1.msra.mxu0 0.0
        %2251 = vmatprep.subr.mxu0 0.0
        %2252 = vmatpush1.msra.mxu0 0.0
        %2253 = vmatprep.subr.mxu0 0.0
        %2254 = vmatpush1.msra.mxu0 0.0
        %2255 = vmatprep.subr.mxu0 0.0
        %2256 = vmatpush1.msra.mxu0 0.0
        %2257 = vmatprep.subr.mxu0 0.0
        %2258 = vmatpush1.msra.mxu0 0.0
        %2259 = vmatprep.subr.mxu0 0.0
        %2260 = vmatpush1.msra.mxu0 0.0
        %2261 = vmatprep.subr.mxu0 0.0
        %2262 = vmatpush1.msra.mxu0 0.0
        %2263 = vmatprep.subr.mxu0 0.0
        %2264 = vmatpush1.msra.mxu0 0.0
        %2265 = vmatprep.subr.mxu0 0.0
        %2266 = vmatpush1.msra.mxu0 0.0
        %2267 = vmatprep.subr.mxu0 0.0
        %2268 = vmatpush1.msra.mxu0 0.0
        %2269 = vmatprep.subr.mxu0 0.0
        %2270 = vmatpush1.msra.mxu0 0.0
        %2271 = vmatprep.subr.mxu0 0.0
        %2272 = vmatpush1.msra.mxu0 0.0
        %2273 = vmatprep.subr.mxu0 0.0
        %2274 = vmatpush1.msra.mxu0 0.0
        %2275 = vmatprep.subr.mxu0 0.0
        %2276 = vmatpush1.msra.mxu0 0.0
        %2277 = vmatprep.subr.mxu0 0.0
        %2278 = vmatpush1.msra.mxu0 0.0
        %2279 = vmatprep.subr.mxu0 0.0
        %2280 = vmatpush1.msra.mxu0 0.0
        %2281 = vmatprep.subr.mxu0 0.0
        %2282 = vmatpush1.msra.mxu0 0.0
        %2283 = vmatprep.subr.mxu0 0.0
        %2284 = vmatpush1.msra.mxu0 0.0
        %2285 = vmatprep.subr.mxu0 0.0
        %2286 = vmatpush1.msra.mxu0 0.0
        %2287 = vmatprep.subr.mxu0 0.0
        %2288 = vmatpush1.msra.mxu0 0.0
        %2289 = vmatprep.subr.mxu0 0.0
        %2290 = vmatpush1.msra.mxu0 0.0
        %2291 = vmatprep.subr.mxu0 0.0
        %2292 = vmatpush1.msra.mxu0 0.0
        %2293 = vmatprep.subr.mxu0 0.0
        %2294 = vmatpush1.msra.mxu0 0.0
        %2295 = vmatprep.subr.mxu0 0.0
        %2296 = vmatpush1.msra.mxu0 0.0
        %2297 = vmatprep.subr.mxu0 0.0
        %2298 = vmatpush1.msra.mxu0 0.0
        %2299 = vmatprep.subr.mxu0 0.0
        %2300 = vmatpush1.msra.mxu0 0.0
        %2301 = vmatprep.mubr.f32.mxu0 0.0
        %2302 = vmatmul.mubr.f32.gmra.mrb[0].mxu0 %v2137
        %v2303 = vpop.f32.mrb[0].mxu0
        %v2304 = vadd.f32 %v2119, %v2303
        %v2305 = vpop.f32.mrb[0].mxu0
        %v2306 = vadd.f32 %v2119, %v2305
        %2307 = vmatprep.mubr.f32.mxu0 0.0
        %2308 = vmatmul.mubr.f32.gmra.mrb[0].mxu0 %v2140
        %v2309 = vpop.f32.mrb[0].mxu0
        %v2310 = vadd.f32 %v2124, %v2309
        %v2311 = vpop.f32.mrb[0].mxu0
        %v2312 = vadd.f32 %v2124, %v2311
        %2313 = vmatprep.mubr.f32.mxu0 0.0
        %2314 = vmatmul.mubr.f32.gmra.mrb[0].mxu0 %v2143
        %v2315 = vpop.f32.mrb[0].mxu0
        %v2316 = vadd.f32 %v2129, %v2315
        %v2317 = vpop.f32.mrb[0].mxu0
        %v2318 = vadd.f32 %v2129, %v2317
        %2319 = vmatprep.mubr.f32.mxu0 0.0
        %2320 = vmatmul.mubr.f32.gmra.mrb[0].mxu0 %v2146
        %v2321 = vpop.f32.mrb[0].mxu0
        %v2322 = vadd.f32 %v2134, %v2321
        %v2323 = vpop.f32.mrb[0].mxu0
        %v2324 = vadd.f32 %v2134, %v2323
        %2325 = vdwg.mxu0
        %v2326 = vmax.f32 %v2215, 0.0
        %v2327 = vmax.f32 %v2217, 0.0
        %v2328 = vmax.f32 %v2304, 0.0
        %v2329 = vmax.f32 %v2306, 0.0
        %v2330 = vmax.f32 %v2221, 0.0
        %v2331 = vmax.f32 %v2223, 0.0
        %v2332 = vmax.f32 %v2310, 0.0
        %v2333 = vmax.f32 %v2312, 0.0
        %v2334 = vmax.f32 %v2227, 0.0
        %v2335 = vmax.f32 %v2229, 0.0
        %v2336 = vmax.f32 %v2316, 0.0
        %v2337 = vmax.f32 %v2318, 0.0
        %v2338 = vmax.f32 %v2233, 0.0
        %v2339 = vmax.f32 %v2235, 0.0
        %v2340 = vmax.f32 %v2322, 0.0
        %v2341 = vmax.f32 %v2324, 0.0
        %s2342 = scalar_lea.vmem %s5, 16
        %v2343 = vld [vmem:[%s2342] sm:$0xff]
        %v2344 = vld [vmem:[%s2342 + $0x8] sm:$0xff]
        %s2345 = scalar_lea.vmem [#allocation8], 16
        %v2346 = vld [vmem:[%s2345] sm:$0xff]
        %v2347 = vld [vmem:[%s2345 + $0x8] sm:$0xff]
        %2349 = vset.pattern.permute.xlu0 0
        %2350 = vperm.xlu0 %2349, %v2346
        %v2351 = vpop.permute.xlu0 %2350
        %2354 = vset.pattern.permute.xlu0 0
        %2355 = vperm.xlu0 %2354, %v2347
        %v2356 = vpop.permute.xlu0 %2355
        %v2359 = vsel %vm815, %v2343, 0
        %v2362 = vsel %vm815, %v2344, 0
        %2364 = vmatprep.subr.mxu0 %v2327
        %2365 = vmatpush1.msra.mxu0 %v2326
        %2366 = vmatprep.subr.mxu0 %v2331
        %2367 = vmatpush1.msra.mxu0 %v2330
        %2368 = vmatprep.subr.mxu0 %v2335
        %2369 = vmatpush1.msra.mxu0 %v2334
        %2370 = vmatprep.subr.mxu0 %v2339
        %2371 = vmatpush1.msra.mxu0 %v2338
        %2372 = vmatprep.subr.mxu0 0.0
        %2373 = vmatpush1.msra.mxu0 0.0
        %2374 = vmatprep.subr.mxu0 0.0
        %2375 = vmatpush1.msra.mxu0 0.0
        %2376 = vmatprep.subr.mxu0 0.0
        %2377 = vmatpush1.msra.mxu0 0.0
        %2378 = vmatprep.subr.mxu0 0.0
        %2379 = vmatpush1.msra.mxu0 0.0
        %2380 = vmatprep.subr.mxu0 0.0
        %2381 = vmatpush1.msra.mxu0 0.0
        %2382 = vmatprep.subr.mxu0 0.0
        %2383 = vmatpush1.msra.mxu0 0.0
        %2384 = vmatprep.subr.mxu0 0.0
        %2385 = vmatpush1.msra.mxu0 0.0
        %2386 = vmatprep.subr.mxu0 0.0
        %2387 = vmatpush1.msra.mxu0 0.0
        %2388 = vmatprep.subr.mxu0 0.0
        %2389 = vmatpush1.msra.mxu0 0.0
        %2390 = vmatprep.subr.mxu0 0.0
        %2391 = vmatpush1.msra.mxu0 0.0
        %2392 = vmatprep.subr.mxu0 0.0
        %2393 = vmatpush1.msra.mxu0 0.0
        %2394 = vmatprep.subr.mxu0 0.0
        %2395 = vmatpush1.msra.mxu0 0.0
        %2396 = vmatprep.subr.mxu0 0.0
        %2397 = vmatpush1.msra.mxu0 0.0
        %2398 = vmatprep.subr.mxu0 0.0
        %2399 = vmatpush1.msra.mxu0 0.0
        %2400 = vmatprep.subr.mxu0 0.0
        %2401 = vmatpush1.msra.mxu0 0.0
        %2402 = vmatprep.subr.mxu0 0.0
        %2403 = vmatpush1.msra.mxu0 0.0
        %2404 = vmatprep.subr.mxu0 0.0
        %2405 = vmatpush1.msra.mxu0 0.0
        %2406 = vmatprep.subr.mxu0 0.0
        %2407 = vmatpush1.msra.mxu0 0.0
        %2408 = vmatprep.subr.mxu0 0.0
        %2409 = vmatpush1.msra.mxu0 0.0
        %2410 = vmatprep.subr.mxu0 0.0
        %2411 = vmatpush1.msra.mxu0 0.0
        %2412 = vmatprep.subr.mxu0 0.0
        %2413 = vmatpush1.msra.mxu0 0.0
        %2414 = vmatprep.subr.mxu0 0.0
        %2415 = vmatpush1.msra.mxu0 0.0
        %2416 = vmatprep.subr.mxu0 0.0
        %2417 = vmatpush1.msra.mxu0 0.0
        %2418 = vmatprep.subr.mxu0 0.0
        %2419 = vmatpush1.msra.mxu0 0.0
        %2420 = vmatprep.subr.mxu0 0.0
        %2421 = vmatpush1.msra.mxu0 0.0
        %2422 = vmatprep.subr.mxu0 0.0
        %2423 = vmatpush1.msra.mxu0 0.0
        %2424 = vmatprep.subr.mxu0 0.0
        %2425 = vmatpush1.msra.mxu0 0.0
        %2426 = vmatprep.subr.mxu0 0.0
        %2427 = vmatpush1.msra.mxu0 0.0
        %2428 = vmatprep.mubr.f32.mxu0 0.0
        %2429 = vmatmul.mubr.f32.gmra.mrb[0].mxu0 %v2359
        %v2430 = vpop.f32.mrb[0].mxu0
        %v2431 = vadd.f32 %v2351, %v2430
        %v2432 = vpop.f32.mrb[0].mxu0
        %v2433 = vadd.f32 %v2351, %v2432
        %2434 = vmatprep.mubr.f32.mxu0 0.0
        %2435 = vmatmul.mubr.f32.gmra.mrb[0].mxu0 %v2362
        %v2436 = vpop.f32.mrb[0].mxu0
        %v2437 = vadd.f32 %v2356, %v2436
        %v2438 = vpop.f32.mrb[0].mxu0
        %v2439 = vadd.f32 %v2356, %v2438
        %2440 = vdwg.mxu0
        %2441 = vmatprep.subr.mxu0 %v2329
        %2442 = vmatpush1.msra.mxu0 %v2328
        %2443 = vmatprep.subr.mxu0 %v2333
        %2444 = vmatpush1.msra.mxu0 %v2332
        %2445 = vmatprep.subr.mxu0 %v2337
        %2446 = vmatpush1.msra.mxu0 %v2336
        %2447 = vmatprep.subr.mxu0 %v2341
        %2448 = vmatpush1.msra.mxu0 %v2340
        %2449 = vmatprep.subr.mxu0 0.0
        %2450 = vmatpush1.msra.mxu0 0.0
        %2451 = vmatprep.subr.mxu0 0.0
        %2452 = vmatpush1.msra.mxu0 0.0
        %2453 = vmatprep.subr.mxu0 0.0
        %2454 = vmatpush1.msra.mxu0 0.0
        %2455 = vmatprep.subr.mxu0 0.0
        %2456 = vmatpush1.msra.mxu0 0.0
        %2457 = vmatprep.subr.mxu0 0.0
        %2458 = vmatpush1.msra.mxu0 0.0
        %2459 = vmatprep.subr.mxu0 0.0
        %2460 = vmatpush1.msra.mxu0 0.0
        %2461 = vmatprep.subr.mxu0 0.0
        %2462 = vmatpush1.msra.mxu0 0.0
        %2463 = vmatprep.subr.mxu0 0.0
        %2464 = vmatpush1.msra.mxu0 0.0
        %2465 = vmatprep.subr.mxu0 0.0
        %2466 = vmatpush1.msra.mxu0 0.0
        %2467 = vmatprep.subr.mxu0 0.0
        %2468 = vmatpush1.msra.mxu0 0.0
        %2469 = vmatprep.subr.mxu0 0.0
        %2470 = vmatpush1.msra.mxu0 0.0
        %2471 = vmatprep.subr.mxu0 0.0
        %2472 = vmatpush1.msra.mxu0 0.0
        %2473 = vmatprep.subr.mxu0 0.0
        %2474 = vmatpush1.msra.mxu0 0.0
        %2475 = vmatprep.subr.mxu0 0.0
        %2476 = vmatpush1.msra.mxu0 0.0
        %2477 = vmatprep.subr.mxu0 0.0
        %2478 = vmatpush1.msra.mxu0 0.0
        %2479 = vmatprep.subr.mxu0 0.0
        %2480 = vmatpush1.msra.mxu0 0.0
        %2481 = vmatprep.subr.mxu0 0.0
        %2482 = vmatpush1.msra.mxu0 0.0
        %2483 = vmatprep.subr.mxu0 0.0
        %2484 = vmatpush1.msra.mxu0 0.0
        %2485 = vmatprep.subr.mxu0 0.0
        %2486 = vmatpush1.msra.mxu0 0.0
        %2487 = vmatprep.subr.mxu0 0.0
        %2488 = vmatpush1.msra.mxu0 0.0
        %2489 = vmatprep.subr.mxu0 0.0
        %2490 = vmatpush1.msra.mxu0 0.0
        %2491 = vmatprep.subr.mxu0 0.0
        %2492 = vmatpush1.msra.mxu0 0.0
        %2493 = vmatprep.subr.mxu0 0.0
        %2494 = vmatpush1.msra.mxu0 0.0
        %2495 = vmatprep.subr.mxu0 0.0
        %2496 = vmatpush1.msra.mxu0 0.0
        %2497 = vmatprep.subr.mxu0 0.0
        %2498 = vmatpush1.msra.mxu0 0.0
        %2499 = vmatprep.subr.mxu0 0.0
        %2500 = vmatpush1.msra.mxu0 0.0
        %2501 = vmatprep.subr.mxu0 0.0
        %2502 = vmatpush1.msra.mxu0 0.0
        %2503 = vmatprep.subr.mxu0 0.0
        %2504 = vmatpush1.msra.mxu0 0.0
        %2505 = vmatprep.mubr.f32.mxu0 0.0
        %2506 = vmatmul.mubr.f32.gmra.mrb[0].mxu0 %v2359
        %v2507 = vpop.f32.mrb[0].mxu0
        %v2508 = vadd.f32 %v2351, %v2507
        %v2509 = vpop.f32.mrb[0].mxu0
        %v2510 = vadd.f32 %v2351, %v2509
        %2511 = vmatprep.mubr.f32.mxu0 0.0
        %2512 = vmatmul.mubr.f32.gmra.mrb[0].mxu0 %v2362
        %v2513 = vpop.f32.mrb[0].mxu0
        %v2514 = vadd.f32 %v2356, %v2513
        %v2515 = vpop.f32.mrb[0].mxu0
        %v2516 = vadd.f32 %v2356, %v2515
        %2517 = vdwg.mxu0
        %v2518 = vmul.f32 %v2431, 0.5263158
        %v2519 = vmul.f32 %v2433, 0.5263158
        %v2520 = vmul.f32 %v2508, 0.5263158
        %v2521 = vmul.f32 %v2510, 0.5263158
        %v2522 = vtanh.pop %v2518
        %v2523 = vtanh.pop %v2519
        %v2524 = vtanh.pop %v2520
        %v2525 = vtanh.pop %v2521
        %v2526 = vmul.f32 %v2522, 1.9
        %v2527 = vmul.f32 %v2523, 1.9
        %v2528 = vmul.f32 %v2524, 1.9
        %v2529 = vmul.f32 %v2525, 1.9
        %v2530 = vmul.f32 %v2526, 1.442695
        %v2531 = vpow.pop %v2530
        %v2532 = vmul.f32 %v2527, 1.442695
        %v2533 = vpow.pop %v2532
        %v2534 = vmul.f32 %v2528, 1.442695
        %v2535 = vpow.pop %v2534
        %v2536 = vmul.f32 %v2529, 1.442695
        %v2537 = vpow.pop %v2536
        %v2538 = vmul.f32 %v1456, %v2531
        %v2539 = vmul.f32 %v1457, %v2533
        %v2540 = vmul.f32 %v1458, %v2535
        %v2541 = vmul.f32 %v1459, %v2537
        %v2542 = vadd.f32 %v2538, %v2437
        %v2543 = vadd.f32 %v2539, %v2439
        %v2544 = vadd.f32 %v2540, %v2514
        %v2545 = vadd.f32 %v2541, %v2516
        %v2546 = vadd.f32 %v1460, %v2526
        %v2547 = vadd.f32 %v1461, %v2527
        %v2548 = vadd.f32 %v1462, %v2528
        %v2549 = vadd.f32 %v1463, %v2529
        %s2550 = scalar_lea.vmem [#allocation3], 64
        %v2551 = vld [vmem:[%s2550] sm:$0xff]
        %v2552 = vld [vmem:[%s2550 + $0x8] sm:$0xff]
        %v2553 = vld [vmem:[%s2550 + $0x10] sm:$0xff]
        %v2554 = vld [vmem:[%s2550 + $0x18] sm:$0xff]
        %s2555 = scalar_lea.vmem [#allocation5], 64
        %v2556 = vld [vmem:[%s2555] sm:$0xff]
        %v2557 = vld [vmem:[%s2555 + $0x8] sm:$0xff]
        %v2558 = vld [vmem:[%s2555 + $0x10] sm:$0xff]
        %v2559 = vld [vmem:[%s2555 + $0x18] sm:$0xff]
        %v2561 = vsel %vm390, %v2556, 0
        %v2564 = vsel %vm390, %v2557, 0
        %v2567 = vsel %vm390, %v2558, 0
        %v2570 = vsel %vm390, %v2559, 0
        %2572 = vmatprep.subr.mxu0 %v379
        %2573 = vmatpush1.msra.mxu0 %v378
        %2574 = vmatprep.subr.mxu0 0.0
        %2575 = vmatpush1.msra.mxu0 0.0
        %2576 = vmatprep.subr.mxu0 0.0
        %2577 = vmatpush1.msra.mxu0 0.0
        %2578 = vmatprep.subr.mxu0 0.0
        %2579 = vmatpush1.msra.mxu0 0.0
        %2580 = vmatprep.subr.mxu0 0.0
        %2581 = vmatpush1.msra.mxu0 0.0
        %2582 = vmatprep.subr.mxu0 0.0
        %2583 = vmatpush1.msra.mxu0 0.0
        %2584 = vmatprep.subr.mxu0 0.0
        %2585 = vmatpush1.msra.mxu0 0.0
        %2586 = vmatprep.subr.mxu0 0.0
        %2587 = vmatpush1.msra.mxu0 0.0
        %2588 = vmatprep.subr.mxu0 0.0
        %2589 = vmatpush1.msra.mxu0 0.0
        %2590 = vmatprep.subr.mxu0 0.0
        %2591 = vmatpush1.msra.mxu0 0.0
        %2592 = vmatprep.subr.mxu0 0.0
        %2593 = vmatpush1.msra.mxu0 0.0
        %2594 = vmatprep.subr.mxu0 0.0
        %2595 = vmatpush1.msra.mxu0 0.0
        %2596 = vmatprep.subr.mxu0 0.0
        %2597 = vmatpush1.msra.mxu0 0.0
        %2598 = vmatprep.subr.mxu0 0.0
        %2599 = vmatpush1.msra.mxu0 0.0
        %2600 = vmatprep.subr.mxu0 0.0
        %2601 = vmatpush1.msra.mxu0 0.0
        %2602 = vmatprep.subr.mxu0 0.0
        %2603 = vmatpush1.msra.mxu0 0.0
        %2604 = vmatprep.subr.mxu0 0.0
        %2605 = vmatpush1.msra.mxu0 0.0
        %2606 = vmatprep.subr.mxu0 0.0
        %2607 = vmatpush1.msra.mxu0 0.0
        %2608 = vmatprep.subr.mxu0 0.0
        %2609 = vmatpush1.msra.mxu0 0.0
        %2610 = vmatprep.subr.mxu0 0.0
        %2611 = vmatpush1.msra.mxu0 0.0
        %2612 = vmatprep.subr.mxu0 0.0
        %2613 = vmatpush1.msra.mxu0 0.0
        %2614 = vmatprep.subr.mxu0 0.0
        %2615 = vmatpush1.msra.mxu0 0.0
        %2616 = vmatprep.subr.mxu0 0.0
        %2617 = vmatpush1.msra.mxu0 0.0
        %2618 = vmatprep.subr.mxu0 0.0
        %2619 = vmatpush1.msra.mxu0 0.0
        %2620 = vmatprep.subr.mxu0 0.0
        %2621 = vmatpush1.msra.mxu0 0.0
        %2622 = vmatprep.subr.mxu0 0.0
        %2623 = vmatpush1.msra.mxu0 0.0
        %2624 = vmatprep.subr.mxu0 0.0
        %2625 = vmatpush1.msra.mxu0 0.0
        %2626 = vmatprep.subr.mxu0 0.0
        %2627 = vmatpush1.msra.mxu0 0.0
        %2628 = vmatprep.subr.mxu0 0.0
        %2629 = vmatpush1.msra.mxu0 0.0
        %2630 = vmatprep.subr.mxu0 0.0
        %2631 = vmatpush1.msra.mxu0 0.0
        %2632 = vmatprep.subr.mxu0 0.0
        %2633 = vmatpush1.msra.mxu0 0.0
        %2634 = vmatprep.subr.mxu0 0.0
        %2635 = vmatpush1.msra.mxu0 0.0
        %2636 = vmatprep.mubr.f32.mxu0 0.0
        %2637 = vmatmul.mubr.f32.gmra.mrb[0].mxu0 %v2561
        %v2638 = vpop.f32.mrb[0].mxu0
        %v2639 = vadd.f32 0.0, %v2638
        %v2640 = vpop.f32.mrb[0].mxu0
        %v2641 = vadd.f32 0.0, %v2640
        %2642 = vmatprep.mubr.f32.mxu0 0.0
        %2643 = vmatmul.mubr.f32.gmra.mrb[0].mxu0 %v2564
        %v2644 = vpop.f32.mrb[0].mxu0
        %v2645 = vadd.f32 0.0, %v2644
        %v2646 = vpop.f32.mrb[0].mxu0
        %v2647 = vadd.f32 0.0, %v2646
        %2648 = vmatprep.mubr.f32.mxu0 0.0
        %2649 = vmatmul.mubr.f32.gmra.mrb[0].mxu0 %v2567
        %v2650 = vpop.f32.mrb[0].mxu0
        %v2651 = vadd.f32 0.0, %v2650
        %v2652 = vpop.f32.mrb[0].mxu0
        %v2653 = vadd.f32 0.0, %v2652
        %2654 = vmatprep.mubr.f32.mxu0 0.0
        %2655 = vmatmul.mubr.f32.gmra.mrb[0].mxu0 %v2570
        %v2656 = vpop.f32.mrb[0].mxu0
        %v2657 = vadd.f32 0.0, %v2656
        %v2658 = vpop.f32.mrb[0].mxu0
        %v2659 = vadd.f32 0.0, %v2658
        %2660 = vdwg.mxu0
        %2661 = vmatprep.subr.mxu0 %v381
        %2662 = vmatpush1.msra.mxu0 %v380
        %2663 = vmatprep.subr.mxu0 0.0
        %2664 = vmatpush1.msra.mxu0 0.0
        %2665 = vmatprep.subr.mxu0 0.0
        %2666 = vmatpush1.msra.mxu0 0.0
        %2667 = vmatprep.subr.mxu0 0.0
        %2668 = vmatpush1.msra.mxu0 0.0
        %2669 = vmatprep.subr.mxu0 0.0
        %2670 = vmatpush1.msra.mxu0 0.0
        %2671 = vmatprep.subr.mxu0 0.0
        %2672 = vmatpush1.msra.mxu0 0.0
        %2673 = vmatprep.subr.mxu0 0.0
        %2674 = vmatpush1.msra.mxu0 0.0
        %2675 = vmatprep.subr.mxu0 0.0
        %2676 = vmatpush1.msra.mxu0 0.0
        %2677 = vmatprep.subr.mxu0 0.0
        %2678 = vmatpush1.msra.mxu0 0.0
        %2679 = vmatprep.subr.mxu0 0.0
        %2680 = vmatpush1.msra.mxu0 0.0
        %2681 = vmatprep.subr.mxu0 0.0
        %2682 = vmatpush1.msra.mxu0 0.0
        %2683 = vmatprep.subr.mxu0 0.0
        %2684 = vmatpush1.msra.mxu0 0.0
        %2685 = vmatprep.subr.mxu0 0.0
        %2686 = vmatpush1.msra.mxu0 0.0
        %2687 = vmatprep.subr.mxu0 0.0
        %2688 = vmatpush1.msra.mxu0 0.0
        %2689 = vmatprep.subr.mxu0 0.0
        %2690 = vmatpush1.msra.mxu0 0.0
        %2691 = vmatprep.subr.mxu0 0.0
        %2692 = vmatpush1.msra.mxu0 0.0
        %2693 = vmatprep.subr.mxu0 0.0
        %2694 = vmatpush1.msra.mxu0 0.0
        %2695 = vmatprep.subr.mxu0 0.0
        %2696 = vmatpush1.msra.mxu0 0.0
        %2697 = vmatprep.subr.mxu0 0.0
        %2698 = vmatpush1.msra.mxu0 0.0
        %2699 = vmatprep.subr.mxu0 0.0
        %2700 = vmatpush1.msra.mxu0 0.0
        %2701 = vmatprep.subr.mxu0 0.0
        %2702 = vmatpush1.msra.mxu0 0.0
        %2703 = vmatprep.subr.mxu0 0.0
        %2704 = vmatpush1.msra.mxu0 0.0
        %2705 = vmatprep.subr.mxu0 0.0
        %2706 = vmatpush1.msra.mxu0 0.0
        %2707 = vmatprep.subr.mxu0 0.0
        %2708 = vmatpush1.msra.mxu0 0.0
        %2709 = vmatprep.subr.mxu0 0.0
        %2710 = vmatpush1.msra.mxu0 0.0
        %2711 = vmatprep.subr.mxu0 0.0
        %2712 = vmatpush1.msra.mxu0 0.0
        %2713 = vmatprep.subr.mxu0 0.0
        %2714 = vmatpush1.msra.mxu0 0.0
        %2715 = vmatprep.subr.mxu0 0.0
        %2716 = vmatpush1.msra.mxu0 0.0
        %2717 = vmatprep.subr.mxu0 0.0
        %2718 = vmatpush1.msra.mxu0 0.0
        %2719 = vmatprep.subr.mxu0 0.0
        %2720 = vmatpush1.msra.mxu0 0.0
        %2721 = vmatprep.subr.mxu0 0.0
        %2722 = vmatpush1.msra.mxu0 0.0
        %2723 = vmatprep.subr.mxu0 0.0
        %2724 = vmatpush1.msra.mxu0 0.0
        %2725 = vmatprep.mubr.f32.mxu0 0.0
        %2726 = vmatmul.mubr.f32.gmra.mrb[0].mxu0 %v2561
        %v2727 = vpop.f32.mrb[0].mxu0
        %v2728 = vadd.f32 0.0, %v2727
        %v2729 = vpop.f32.mrb[0].mxu0
        %v2730 = vadd.f32 0.0, %v2729
        %2731 = vmatprep.mubr.f32.mxu0 0.0
        %2732 = vmatmul.mubr.f32.gmra.mrb[0].mxu0 %v2564
        %v2733 = vpop.f32.mrb[0].mxu0
        %v2734 = vadd.f32 0.0, %v2733
        %v2735 = vpop.f32.mrb[0].mxu0
        %v2736 = vadd.f32 0.0, %v2735
        %2737 = vmatprep.mubr.f32.mxu0 0.0
        %2738 = vmatmul.mubr.f32.gmra.mrb[0].mxu0 %v2567
        %v2739 = vpop.f32.mrb[0].mxu0
        %v2740 = vadd.f32 0.0, %v2739
        %v2741 = vpop.f32.mrb[0].mxu0
        %v2742 = vadd.f32 0.0, %v2741
        %2743 = vmatprep.mubr.f32.mxu0 0.0
        %2744 = vmatmul.mubr.f32.gmra.mrb[0].mxu0 %v2570
        %v2745 = vpop.f32.mrb[0].mxu0
        %v2746 = vadd.f32 0.0, %v2745
        %v2747 = vpop.f32.mrb[0].mxu0
        %v2748 = vadd.f32 0.0, %v2747
        %2749 = vdwg.mxu0
        %v2751 = vsel %vm390, %v2551, 0
        %v2754 = vsel %vm390, %v2552, 0
        %v2757 = vsel %vm390, %v2553, 0
        %v2760 = vsel %vm390, %v2554, 0
        %2762 = vmatprep.subr.mxu0 %v2543
        %2763 = vmatpush1.msra.mxu0 %v2542
        %2764 = vmatprep.subr.mxu0 0.0
        %2765 = vmatpush1.msra.mxu0 0.0
        %2766 = vmatprep.subr.mxu0 0.0
        %2767 = vmatpush1.msra.mxu0 0.0
        %2768 = vmatprep.subr.mxu0 0.0
        %2769 = vmatpush1.msra.mxu0 0.0
        %2770 = vmatprep.subr.mxu0 0.0
        %2771 = vmatpush1.msra.mxu0 0.0
        %2772 = vmatprep.subr.mxu0 0.0
        %2773 = vmatpush1.msra.mxu0 0.0
        %2774 = vmatprep.subr.mxu0 0.0
        %2775 = vmatpush1.msra.mxu0 0.0
        %2776 = vmatprep.subr.mxu0 0.0
        %2777 = vmatpush1.msra.mxu0 0.0
        %2778 = vmatprep.subr.mxu0 0.0
        %2779 = vmatpush1.msra.mxu0 0.0
        %2780 = vmatprep.subr.mxu0 0.0
        %2781 = vmatpush1.msra.mxu0 0.0
        %2782 = vmatprep.subr.mxu0 0.0
        %2783 = vmatpush1.msra.mxu0 0.0
        %2784 = vmatprep.subr.mxu0 0.0
        %2785 = vmatpush1.msra.mxu0 0.0
        %2786 = vmatprep.subr.mxu0 0.0
        %2787 = vmatpush1.msra.mxu0 0.0
        %2788 = vmatprep.subr.mxu0 0.0
        %2789 = vmatpush1.msra.mxu0 0.0
        %2790 = vmatprep.subr.mxu0 0.0
        %2791 = vmatpush1.msra.mxu0 0.0
        %2792 = vmatprep.subr.mxu0 0.0
        %2793 = vmatpush1.msra.mxu0 0.0
        %2794 = vmatprep.subr.mxu0 0.0
        %2795 = vmatpush1.msra.mxu0 0.0
        %2796 = vmatprep.subr.mxu0 0.0
        %2797 = vmatpush1.msra.mxu0 0.0
        %2798 = vmatprep.subr.mxu0 0.0
        %2799 = vmatpush1.msra.mxu0 0.0
        %2800 = vmatprep.subr.mxu0 0.0
        %2801 = vmatpush1.msra.mxu0 0.0
        %2802 = vmatprep.subr.mxu0 0.0
        %2803 = vmatpush1.msra.mxu0 0.0
        %2804 = vmatprep.subr.mxu0 0.0
        %2805 = vmatpush1.msra.mxu0 0.0
        %2806 = vmatprep.subr.mxu0 0.0
        %2807 = vmatpush1.msra.mxu0 0.0
        %2808 = vmatprep.subr.mxu0 0.0
        %2809 = vmatpush1.msra.mxu0 0.0
        %2810 = vmatprep.subr.mxu0 0.0
        %2811 = vmatpush1.msra.mxu0 0.0
        %2812 = vmatprep.subr.mxu0 0.0
        %2813 = vmatpush1.msra.mxu0 0.0
        %2814 = vmatprep.subr.mxu0 0.0
        %2815 = vmatpush1.msra.mxu0 0.0
        %2816 = vmatprep.subr.mxu0 0.0
        %2817 = vmatpush1.msra.mxu0 0.0
        %2818 = vmatprep.subr.mxu0 0.0
        %2819 = vmatpush1.msra.mxu0 0.0
        %2820 = vmatprep.subr.mxu0 0.0
        %2821 = vmatpush1.msra.mxu0 0.0
        %2822 = vmatprep.subr.mxu0 0.0
        %2823 = vmatpush1.msra.mxu0 0.0
        %2824 = vmatprep.subr.mxu0 0.0
        %2825 = vmatpush1.msra.mxu0 0.0
        %2826 = vmatprep.mubr.f32.mxu0 0.0
        %2827 = vmatmul.mubr.f32.gmra.mrb[0].mxu0 %v2751
        %v2828 = vpop.f32.mrb[0].mxu0
        %v2829 = vadd.f32 %v2639, %v2828
        %v2830 = vpop.f32.mrb[0].mxu0
        %v2831 = vadd.f32 %v2641, %v2830
        %2832 = vmatprep.mubr.f32.mxu0 0.0
        %2833 = vmatmul.mubr.f32.gmra.mrb[0].mxu0 %v2754
        %v2834 = vpop.f32.mrb[0].mxu0
        %v2835 = vadd.f32 %v2645, %v2834
        %v2836 = vpop.f32.mrb[0].mxu0
        %v2837 = vadd.f32 %v2647, %v2836
        %2838 = vmatprep.mubr.f32.mxu0 0.0
        %2839 = vmatmul.mubr.f32.gmra.mrb[0].mxu0 %v2757
        %v2840 = vpop.f32.mrb[0].mxu0
        %v2841 = vadd.f32 %v2651, %v2840
        %v2842 = vpop.f32.mrb[0].mxu0
        %v2843 = vadd.f32 %v2653, %v2842
        %2844 = vmatprep.mubr.f32.mxu0 0.0
        %2845 = vmatmul.mubr.f32.gmra.mrb[0].mxu0 %v2760
        %v2846 = vpop.f32.mrb[0].mxu0
        %v2847 = vadd.f32 %v2657, %v2846
        %v2848 = vpop.f32.mrb[0].mxu0
        %v2849 = vadd.f32 %v2659, %v2848
        %2850 = vdwg.mxu0
        %2851 = vmatprep.subr.mxu0 %v2545
        %2852 = vmatpush1.msra.mxu0 %v2544
        %2853 = vmatprep.subr.mxu0 0.0
        %2854 = vmatpush1.msra.mxu0 0.0
        %2855 = vmatprep.subr.mxu0 0.0
        %2856 = vmatpush1.msra.mxu0 0.0
        %2857 = vmatprep.subr.mxu0 0.0
        %2858 = vmatpush1.msra.mxu0 0.0
        %2859 = vmatprep.subr.mxu0 0.0
        %2860 = vmatpush1.msra.mxu0 0.0
        %2861 = vmatprep.subr.mxu0 0.0
        %2862 = vmatpush1.msra.mxu0 0.0
        %2863 = vmatprep.subr.mxu0 0.0
        %2864 = vmatpush1.msra.mxu0 0.0
        %2865 = vmatprep.subr.mxu0 0.0
        %2866 = vmatpush1.msra.mxu0 0.0
        %2867 = vmatprep.subr.mxu0 0.0
        %2868 = vmatpush1.msra.mxu0 0.0
        %2869 = vmatprep.subr.mxu0 0.0
        %2870 = vmatpush1.msra.mxu0 0.0
        %2871 = vmatprep.subr.mxu0 0.0
        %2872 = vmatpush1.msra.mxu0 0.0
        %2873 = vmatprep.subr.mxu0 0.0
        %2874 = vmatpush1.msra.mxu0 0.0
        %2875 = vmatprep.subr.mxu0 0.0
        %2876 = vmatpush1.msra.mxu0 0.0
        %2877 = vmatprep.subr.mxu0 0.0
        %2878 = vmatpush1.msra.mxu0 0.0
        %2879 = vmatprep.subr.mxu0 0.0
        %2880 = vmatpush1.msra.mxu0 0.0
        %2881 = vmatprep.subr.mxu0 0.0
        %2882 = vmatpush1.msra.mxu0 0.0
        %2883 = vmatprep.subr.mxu0 0.0
        %2884 = vmatpush1.msra.mxu0 0.0
        %2885 = vmatprep.subr.mxu0 0.0
        %2886 = vmatpush1.msra.mxu0 0.0
        %2887 = vmatprep.subr.mxu0 0.0
        %2888 = vmatpush1.msra.mxu0 0.0
        %2889 = vmatprep.subr.mxu0 0.0
        %2890 = vmatpush1.msra.mxu0 0.0
        %2891 = vmatprep.subr.mxu0 0.0
        %2892 = vmatpush1.msra.mxu0 0.0
        %2893 = vmatprep.subr.mxu0 0.0
        %2894 = vmatpush1.msra.mxu0 0.0
        %2895 = vmatprep.subr.mxu0 0.0
        %2896 = vmatpush1.msra.mxu0 0.0
        %2897 = vmatprep.subr.mxu0 0.0
        %2898 = vmatpush1.msra.mxu0 0.0
        %2899 = vmatprep.subr.mxu0 0.0
        %2900 = vmatpush1.msra.mxu0 0.0
        %2901 = vmatprep.subr.mxu0 0.0
        %2902 = vmatpush1.msra.mxu0 0.0
        %2903 = vmatprep.subr.mxu0 0.0
        %2904 = vmatpush1.msra.mxu0 0.0
        %2905 = vmatprep.subr.mxu0 0.0
        %2906 = vmatpush1.msra.mxu0 0.0
        %2907 = vmatprep.subr.mxu0 0.0
        %2908 = vmatpush1.msra.mxu0 0.0
        %2909 = vmatprep.subr.mxu0 0.0
        %2910 = vmatpush1.msra.mxu0 0.0
        %2911 = vmatprep.subr.mxu0 0.0
        %2912 = vmatpush1.msra.mxu0 0.0
        %2913 = vmatprep.subr.mxu0 0.0
        %2914 = vmatpush1.msra.mxu0 0.0
        %2915 = vmatprep.mubr.f32.mxu0 0.0
        %2916 = vmatmul.mubr.f32.gmra.mrb[0].mxu0 %v2751
        %v2917 = vpop.f32.mrb[0].mxu0
        %v2918 = vadd.f32 %v2728, %v2917
        %v2919 = vpop.f32.mrb[0].mxu0
        %v2920 = vadd.f32 %v2730, %v2919
        %2921 = vmatprep.mubr.f32.mxu0 0.0
        %2922 = vmatmul.mubr.f32.gmra.mrb[0].mxu0 %v2754
        %v2923 = vpop.f32.mrb[0].mxu0
        %v2924 = vadd.f32 %v2734, %v2923
        %v2925 = vpop.f32.mrb[0].mxu0
        %v2926 = vadd.f32 %v2736, %v2925
        %2927 = vmatprep.mubr.f32.mxu0 0.0
        %2928 = vmatmul.mubr.f32.gmra.mrb[0].mxu0 %v2757
        %v2929 = vpop.f32.mrb[0].mxu0
        %v2930 = vadd.f32 %v2740, %v2929
        %v2931 = vpop.f32.mrb[0].mxu0
        %v2932 = vadd.f32 %v2742, %v2931
        %2933 = vmatprep.mubr.f32.mxu0 0.0
        %2934 = vmatmul.mubr.f32.gmra.mrb[0].mxu0 %v2760
        %v2935 = vpop.f32.mrb[0].mxu0
        %v2936 = vadd.f32 %v2746, %v2935
        %v2937 = vpop.f32.mrb[0].mxu0
        %v2938 = vadd.f32 %v2748, %v2937
        %2939 = vdwg.mxu0
        %v2940 = vmax.f32 %v2829, 0.0
        %v2941 = vmax.f32 %v2831, 0.0
        %v2942 = vmax.f32 %v2918, 0.0
        %v2943 = vmax.f32 %v2920, 0.0
        %v2944 = vmax.f32 %v2835, 0.0
        %v2945 = vmax.f32 %v2837, 0.0
        %v2946 = vmax.f32 %v2924, 0.0
        %v2947 = vmax.f32 %v2926, 0.0
        %v2948 = vmax.f32 %v2841, 0.0
        %v2949 = vmax.f32 %v2843, 0.0
        %v2950 = vmax.f32 %v2930, 0.0
        %v2951 = vmax.f32 %v2932, 0.0
        %v2952 = vmax.f32 %v2847, 0.0
        %v2953 = vmax.f32 %v2849, 0.0
        %v2954 = vmax.f32 %v2936, 0.0
        %v2955 = vmax.f32 %v2938, 0.0
        %s2956 = scalar_lea.vmem %s3, 128
        %v2957 = vld [vmem:[%s2956] sm:$0xff]
        %v2958 = vld [vmem:[%s2956 + $0x8] sm:$0xff]
        %v2959 = vld [vmem:[%s2956 + $0x10] sm:$0xff]
        %v2960 = vld [vmem:[%s2956 + $0x18] sm:$0xff]
        %s2961 = scalar_lea.vmem [#allocation7], 128
        %v2962 = vld [vmem:[%s2961] sm:$0xff]
        %v2963 = vld [vmem:[%s2961 + $0x8] sm:$0xff]
        %v2964 = vld [vmem:[%s2961 + $0x10] sm:$0xff]
        %v2965 = vld [vmem:[%s2961 + $0x18] sm:$0xff]
        %2967 = vset.pattern.permute.xlu0 0
        %2968 = vperm.xlu0 %2967, %v2962
        %v2969 = vpop.permute.xlu0 %2968
        %2972 = vset.pattern.permute.xlu0 0
        %2973 = vperm.xlu0 %2972, %v2963
        %v2974 = vpop.permute.xlu0 %2973
        %2977 = vset.pattern.permute.xlu0 0
        %2978 = vperm.xlu0 %2977, %v2964
        %v2979 = vpop.permute.xlu0 %2978
        %2982 = vset.pattern.permute.xlu0 0
        %2983 = vperm.xlu0 %2982, %v2965
        %v2984 = vpop.permute.xlu0 %2983
        %v2987 = vsel %vm815, %v2957, 0
        %v2990 = vsel %vm815, %v2958, 0
        %v2993 = vsel %vm815, %v2959, 0
        %v2996 = vsel %vm815, %v2960, 0
        %2998 = vmatprep.subr.mxu0 %v2941
        %2999 = vmatpush1.msra.mxu0 %v2940
        %3000 = vmatprep.subr.mxu0 %v2945
        %3001 = vmatpush1.msra.mxu0 %v2944
        %3002 = vmatprep.subr.mxu0 %v2949
        %3003 = vmatpush1.msra.mxu0 %v2948
        %3004 = vmatprep.subr.mxu0 %v2953
        %3005 = vmatpush1.msra.mxu0 %v2952
        %3006 = vmatprep.subr.mxu0 0.0
        %3007 = vmatpush1.msra.mxu0 0.0
        %3008 = vmatprep.subr.mxu0 0.0
        %3009 = vmatpush1.msra.mxu0 0.0
        %3010 = vmatprep.subr.mxu0 0.0
        %3011 = vmatpush1.msra.mxu0 0.0
        %3012 = vmatprep.subr.mxu0 0.0
        %3013 = vmatpush1.msra.mxu0 0.0
        %3014 = vmatprep.subr.mxu0 0.0
        %3015 = vmatpush1.msra.mxu0 0.0
        %3016 = vmatprep.subr.mxu0 0.0
        %3017 = vmatpush1.msra.mxu0 0.0
        %3018 = vmatprep.subr.mxu0 0.0
        %3019 = vmatpush1.msra.mxu0 0.0
        %3020 = vmatprep.subr.mxu0 0.0
        %3021 = vmatpush1.msra.mxu0 0.0
        %3022 = vmatprep.subr.mxu0 0.0
        %3023 = vmatpush1.msra.mxu0 0.0
        %3024 = vmatprep.subr.mxu0 0.0
        %3025 = vmatpush1.msra.mxu0 0.0
        %3026 = vmatprep.subr.mxu0 0.0
        %3027 = vmatpush1.msra.mxu0 0.0
        %3028 = vmatprep.subr.mxu0 0.0
        %3029 = vmatpush1.msra.mxu0 0.0
        %3030 = vmatprep.subr.mxu0 0.0
        %3031 = vmatpush1.msra.mxu0 0.0
        %3032 = vmatprep.subr.mxu0 0.0
        %3033 = vmatpush1.msra.mxu0 0.0
        %3034 = vmatprep.subr.mxu0 0.0
        %3035 = vmatpush1.msra.mxu0 0.0
        %3036 = vmatprep.subr.mxu0 0.0
        %3037 = vmatpush1.msra.mxu0 0.0
        %3038 = vmatprep.subr.mxu0 0.0
        %3039 = vmatpush1.msra.mxu0 0.0
        %3040 = vmatprep.subr.mxu0 0.0
        %3041 = vmatpush1.msra.mxu0 0.0
        %3042 = vmatprep.subr.mxu0 0.0
        %3043 = vmatpush1.msra.mxu0 0.0
        %3044 = vmatprep.subr.mxu0 0.0
        %3045 = vmatpush1.msra.mxu0 0.0
        %3046 = vmatprep.subr.mxu0 0.0
        %3047 = vmatpush1.msra.mxu0 0.0
        %3048 = vmatprep.subr.mxu0 0.0
        %3049 = vmatpush1.msra.mxu0 0.0
        %3050 = vmatprep.subr.mxu0 0.0
        %3051 = vmatpush1.msra.mxu0 0.0
        %3052 = vmatprep.subr.mxu0 0.0
        %3053 = vmatpush1.msra.mxu0 0.0
        %3054 = vmatprep.subr.mxu0 0.0
        %3055 = vmatpush1.msra.mxu0 0.0
        %3056 = vmatprep.subr.mxu0 0.0
        %3057 = vmatpush1.msra.mxu0 0.0
        %3058 = vmatprep.subr.mxu0 0.0
        %3059 = vmatpush1.msra.mxu0 0.0
        %3060 = vmatprep.subr.mxu0 0.0
        %3061 = vmatpush1.msra.mxu0 0.0
        %3062 = vmatprep.mubr.f32.mxu0 0.0
        %3063 = vmatmul.mubr.f32.gmra.mrb[0].mxu0 %v2987
        %v3064 = vpop.f32.mrb[0].mxu0
        %v3065 = vadd.f32 %v2969, %v3064
        %v3066 = vpop.f32.mrb[0].mxu0
        %v3067 = vadd.f32 %v2969, %v3066
        %3068 = vmatprep.mubr.f32.mxu0 0.0
        %3069 = vmatmul.mubr.f32.gmra.mrb[0].mxu0 %v2990
        %v3070 = vpop.f32.mrb[0].mxu0
        %v3071 = vadd.f32 %v2974, %v3070
        %v3072 = vpop.f32.mrb[0].mxu0
        %v3073 = vadd.f32 %v2974, %v3072
        %3074 = vmatprep.mubr.f32.mxu0 0.0
        %3075 = vmatmul.mubr.f32.gmra.mrb[0].mxu0 %v2993
        %v3076 = vpop.f32.mrb[0].mxu0
        %v3077 = vadd.f32 %v2979, %v3076
        %v3078 = vpop.f32.mrb[0].mxu0
        %v3079 = vadd.f32 %v2979, %v3078
        %3080 = vmatprep.mubr.f32.mxu0 0.0
        %3081 = vmatmul.mubr.f32.gmra.mrb[0].mxu0 %v2996
        %v3082 = vpop.f32.mrb[0].mxu0
        %v3083 = vadd.f32 %v2984, %v3082
        %v3084 = vpop.f32.mrb[0].mxu0
        %v3085 = vadd.f32 %v2984, %v3084
        %3086 = vdwg.mxu0
        %3087 = vmatprep.subr.mxu0 %v2943
        %3088 = vmatpush1.msra.mxu0 %v2942
        %3089 = vmatprep.subr.mxu0 %v2947
        %3090 = vmatpush1.msra.mxu0 %v2946
        %3091 = vmatprep.subr.mxu0 %v2951
        %3092 = vmatpush1.msra.mxu0 %v2950
        %3093 = vmatprep.subr.mxu0 %v2955
        %3094 = vmatpush1.msra.mxu0 %v2954
        %3095 = vmatprep.subr.mxu0 0.0
        %3096 = vmatpush1.msra.mxu0 0.0
        %3097 = vmatprep.subr.mxu0 0.0
        %3098 = vmatpush1.msra.mxu0 0.0
        %3099 = vmatprep.subr.mxu0 0.0
        %3100 = vmatpush1.msra.mxu0 0.0
        %3101 = vmatprep.subr.mxu0 0.0
        %3102 = vmatpush1.msra.mxu0 0.0
        %3103 = vmatprep.subr.mxu0 0.0
        %3104 = vmatpush1.msra.mxu0 0.0
        %3105 = vmatprep.subr.mxu0 0.0
        %3106 = vmatpush1.msra.mxu0 0.0
        %3107 = vmatprep.subr.mxu0 0.0
        %3108 = vmatpush1.msra.mxu0 0.0
        %3109 = vmatprep.subr.mxu0 0.0
        %3110 = vmatpush1.msra.mxu0 0.0
        %3111 = vmatprep.subr.mxu0 0.0
        %3112 = vmatpush1.msra.mxu0 0.0
        %3113 = vmatprep.subr.mxu0 0.0
        %3114 = vmatpush1.msra.mxu0 0.0
        %3115 = vmatprep.subr.mxu0 0.0
        %3116 = vmatpush1.msra.mxu0 0.0
        %3117 = vmatprep.subr.mxu0 0.0
        %3118 = vmatpush1.msra.mxu0 0.0
        %3119 = vmatprep.subr.mxu0 0.0
        %3120 = vmatpush1.msra.mxu0 0.0
        %3121 = vmatprep.subr.mxu0 0.0
        %3122 = vmatpush1.msra.mxu0 0.0
        %3123 = vmatprep.subr.mxu0 0.0
        %3124 = vmatpush1.msra.mxu0 0.0
        %3125 = vmatprep.subr.mxu0 0.0
        %3126 = vmatpush1.msra.mxu0 0.0
        %3127 = vmatprep.subr.mxu0 0.0
        %3128 = vmatpush1.msra.mxu0 0.0
        %3129 = vmatprep.subr.mxu0 0.0
        %3130 = vmatpush1.msra.mxu0 0.0
        %3131 = vmatprep.subr.mxu0 0.0
        %3132 = vmatpush1.msra.mxu0 0.0
        %3133 = vmatprep.subr.mxu0 0.0
        %3134 = vmatpush1.msra.mxu0 0.0
        %3135 = vmatprep.subr.mxu0 0.0
        %3136 = vmatpush1.msra.mxu0 0.0
        %3137 = vmatprep.subr.mxu0 0.0
        %3138 = vmatpush1.msra.mxu0 0.0
        %3139 = vmatprep.subr.mxu0 0.0
        %3140 = vmatpush1.msra.mxu0 0.0
        %3141 = vmatprep.subr.mxu0 0.0
        %3142 = vmatpush1.msra.mxu0 0.0
        %3143 = vmatprep.subr.mxu0 0.0
        %3144 = vmatpush1.msra.mxu0 0.0
        %3145 = vmatprep.subr.mxu0 0.0
        %3146 = vmatpush1.msra.mxu0 0.0
        %3147 = vmatprep.subr.mxu0 0.0
        %3148 = vmatpush1.msra.mxu0 0.0
        %3149 = vmatprep.subr.mxu0 0.0
        %3150 = vmatpush1.msra.mxu0 0.0
        %3151 = vmatprep.mubr.f32.mxu0 0.0
        %3152 = vmatmul.mubr.f32.gmra.mrb[0].mxu0 %v2987
        %v3153 = vpop.f32.mrb[0].mxu0
        %v3154 = vadd.f32 %v2969, %v3153
        %v3155 = vpop.f32.mrb[0].mxu0
        %v3156 = vadd.f32 %v2969, %v3155
        %3157 = vmatprep.mubr.f32.mxu0 0.0
        %3158 = vmatmul.mubr.f32.gmra.mrb[0].mxu0 %v2990
        %v3159 = vpop.f32.mrb[0].mxu0
        %v3160 = vadd.f32 %v2974, %v3159
        %v3161 = vpop.f32.mrb[0].mxu0
        %v3162 = vadd.f32 %v2974, %v3161
        %3163 = vmatprep.mubr.f32.mxu0 0.0
        %3164 = vmatmul.mubr.f32.gmra.mrb[0].mxu0 %v2993
        %v3165 = vpop.f32.mrb[0].mxu0
        %v3166 = vadd.f32 %v2979, %v3165
        %v3167 = vpop.f32.mrb[0].mxu0
        %v3168 = vadd.f32 %v2979, %v3167
        %3169 = vmatprep.mubr.f32.mxu0 0.0
        %3170 = vmatmul.mubr.f32.gmra.mrb[0].mxu0 %v2996
        %v3171 = vpop.f32.mrb[0].mxu0
        %v3172 = vadd.f32 %v2984, %v3171
        %v3173 = vpop.f32.mrb[0].mxu0
        %v3174 = vadd.f32 %v2984, %v3173
        %3175 = vdwg.mxu0
        %v3176 = vmax.f32 %v3065, 0.0
        %v3177 = vmax.f32 %v3067, 0.0
        %v3178 = vmax.f32 %v3154, 0.0
        %v3179 = vmax.f32 %v3156, 0.0
        %v3180 = vmax.f32 %v3071, 0.0
        %v3181 = vmax.f32 %v3073, 0.0
        %v3182 = vmax.f32 %v3160, 0.0
        %v3183 = vmax.f32 %v3162, 0.0
        %v3184 = vmax.f32 %v3077, 0.0
        %v3185 = vmax.f32 %v3079, 0.0
        %v3186 = vmax.f32 %v3166, 0.0
        %v3187 = vmax.f32 %v3168, 0.0
        %v3188 = vmax.f32 %v3083, 0.0
        %v3189 = vmax.f32 %v3085, 0.0
        %v3190 = vmax.f32 %v3172, 0.0
        %v3191 = vmax.f32 %v3174, 0.0
        %s3192 = scalar_lea.vmem %s3, 160
        %v3193 = vld [vmem:[%s3192] sm:$0xff]
        %v3194 = vld [vmem:[%s3192 + $0x8] sm:$0xff]
        %v3195 = vld [vmem:[%s3192 + $0x10] sm:$0xff]
        %v3196 = vld [vmem:[%s3192 + $0x18] sm:$0xff]
        %s3197 = scalar_lea.vmem [#allocation7], 160
        %v3198 = vld [vmem:[%s3197] sm:$0xff]
        %v3199 = vld [vmem:[%s3197 + $0x8] sm:$0xff]
        %v3200 = vld [vmem:[%s3197 + $0x10] sm:$0xff]
        %v3201 = vld [vmem:[%s3197 + $0x18] sm:$0xff]
        %3203 = vset.pattern.permute.xlu0 0
        %3204 = vperm.xlu0 %3203, %v3198
        %v3205 = vpop.permute.xlu0 %3204
        %3208 = vset.pattern.permute.xlu0 0
        %3209 = vperm.xlu0 %3208, %v3199
        %v3210 = vpop.permute.xlu0 %3209
        %3213 = vset.pattern.permute.xlu0 0
        %3214 = vperm.xlu0 %3213, %v3200
        %v3215 = vpop.permute.xlu0 %3214
        %3218 = vset.pattern.permute.xlu0 0
        %3219 = vperm.xlu0 %3218, %v3201
        %v3220 = vpop.permute.xlu0 %3219
        %v3223 = vsel %vm815, %v3193, 0
        %v3226 = vsel %vm815, %v3194, 0
        %v3229 = vsel %vm815, %v3195, 0
        %v3232 = vsel %vm815, %v3196, 0
        %3234 = vmatprep.subr.mxu0 %v3177
        %3235 = vmatpush1.msra.mxu0 %v3176
        %3236 = vmatprep.subr.mxu0 %v3181
        %3237 = vmatpush1.msra.mxu0 %v3180
        %3238 = vmatprep.subr.mxu0 %v3185
        %3239 = vmatpush1.msra.mxu0 %v3184
        %3240 = vmatprep.subr.mxu0 %v3189
        %3241 = vmatpush1.msra.mxu0 %v3188
        %3242 = vmatprep.subr.mxu0 0.0
        %3243 = vmatpush1.msra.mxu0 0.0
        %3244 = vmatprep.subr.mxu0 0.0
        %3245 = vmatpush1.msra.mxu0 0.0
        %3246 = vmatprep.subr.mxu0 0.0
        %3247 = vmatpush1.msra.mxu0 0.0
        %3248 = vmatprep.subr.mxu0 0.0
        %3249 = vmatpush1.msra.mxu0 0.0
        %3250 = vmatprep.subr.mxu0 0.0
        %3251 = vmatpush1.msra.mxu0 0.0
        %3252 = vmatprep.subr.mxu0 0.0
        %3253 = vmatpush1.msra.mxu0 0.0
        %3254 = vmatprep.subr.mxu0 0.0
        %3255 = vmatpush1.msra.mxu0 0.0
        %3256 = vmatprep.subr.mxu0 0.0
        %3257 = vmatpush1.msra.mxu0 0.0
        %3258 = vmatprep.subr.mxu0 0.0
        %3259 = vmatpush1.msra.mxu0 0.0
        %3260 = vmatprep.subr.mxu0 0.0
        %3261 = vmatpush1.msra.mxu0 0.0
        %3262 = vmatprep.subr.mxu0 0.0
        %3263 = vmatpush1.msra.mxu0 0.0
        %3264 = vmatprep.subr.mxu0 0.0
        %3265 = vmatpush1.msra.mxu0 0.0
        %3266 = vmatprep.subr.mxu0 0.0
        %3267 = vmatpush1.msra.mxu0 0.0
        %3268 = vmatprep.subr.mxu0 0.0
        %3269 = vmatpush1.msra.mxu0 0.0
        %3270 = vmatprep.subr.mxu0 0.0
        %3271 = vmatpush1.msra.mxu0 0.0
        %3272 = vmatprep.subr.mxu0 0.0
        %3273 = vmatpush1.msra.mxu0 0.0
        %3274 = vmatprep.subr.mxu0 0.0
        %3275 = vmatpush1.msra.mxu0 0.0
        %3276 = vmatprep.subr.mxu0 0.0
        %3277 = vmatpush1.msra.mxu0 0.0
        %3278 = vmatprep.subr.mxu0 0.0
        %3279 = vmatpush1.msra.mxu0 0.0
        %3280 = vmatprep.subr.mxu0 0.0
        %3281 = vmatpush1.msra.mxu0 0.0
        %3282 = vmatprep.subr.mxu0 0.0
        %3283 = vmatpush1.msra.mxu0 0.0
        %3284 = vmatprep.subr.mxu0 0.0
        %3285 = vmatpush1.msra.mxu0 0.0
        %3286 = vmatprep.subr.mxu0 0.0
        %3287 = vmatpush1.msra.mxu0 0.0
        %3288 = vmatprep.subr.mxu0 0.0
        %3289 = vmatpush1.msra.mxu0 0.0
        %3290 = vmatprep.subr.mxu0 0.0
        %3291 = vmatpush1.msra.mxu0 0.0
        %3292 = vmatprep.subr.mxu0 0.0
        %3293 = vmatpush1.msra.mxu0 0.0
        %3294 = vmatprep.subr.mxu0 0.0
        %3295 = vmatpush1.msra.mxu0 0.0
        %3296 = vmatprep.subr.mxu0 0.0
        %3297 = vmatpush1.msra.mxu0 0.0
        %3298 = vmatprep.mubr.f32.mxu0 0.0
        %3299 = vmatmul.mubr.f32.gmra.mrb[0].mxu0 %v3223
        %v3300 = vpop.f32.mrb[0].mxu0
        %v3301 = vadd.f32 %v3205, %v3300
        %v3302 = vpop.f32.mrb[0].mxu0
        %v3303 = vadd.f32 %v3205, %v3302
        %3304 = vmatprep.mubr.f32.mxu0 0.0
        %3305 = vmatmul.mubr.f32.gmra.mrb[0].mxu0 %v3226
        %v3306 = vpop.f32.mrb[0].mxu0
        %v3307 = vadd.f32 %v3210, %v3306
        %v3308 = vpop.f32.mrb[0].mxu0
        %v3309 = vadd.f32 %v3210, %v3308
        %3310 = vmatprep.mubr.f32.mxu0 0.0
        %3311 = vmatmul.mubr.f32.gmra.mrb[0].mxu0 %v3229
        %v3312 = vpop.f32.mrb[0].mxu0
        %v3313 = vadd.f32 %v3215, %v3312
        %v3314 = vpop.f32.mrb[0].mxu0
        %v3315 = vadd.f32 %v3215, %v3314
        %3316 = vmatprep.mubr.f32.mxu0 0.0
        %3317 = vmatmul.mubr.f32.gmra.mrb[0].mxu0 %v3232
        %v3318 = vpop.f32.mrb[0].mxu0
        %v3319 = vadd.f32 %v3220, %v3318
        %v3320 = vpop.f32.mrb[0].mxu0
        %v3321 = vadd.f32 %v3220, %v3320
        %3322 = vdwg.mxu0
        %3323 = vmatprep.subr.mxu0 %v3179
        %3324 = vmatpush1.msra.mxu0 %v3178
        %3325 = vmatprep.subr.mxu0 %v3183
        %3326 = vmatpush1.msra.mxu0 %v3182
        %3327 = vmatprep.subr.mxu0 %v3187
        %3328 = vmatpush1.msra.mxu0 %v3186
        %3329 = vmatprep.subr.mxu0 %v3191
        %3330 = vmatpush1.msra.mxu0 %v3190
        %3331 = vmatprep.subr.mxu0 0.0
        %3332 = vmatpush1.msra.mxu0 0.0
        %3333 = vmatprep.subr.mxu0 0.0
        %3334 = vmatpush1.msra.mxu0 0.0
        %3335 = vmatprep.subr.mxu0 0.0
        %3336 = vmatpush1.msra.mxu0 0.0
        %3337 = vmatprep.subr.mxu0 0.0
        %3338 = vmatpush1.msra.mxu0 0.0
        %3339 = vmatprep.subr.mxu0 0.0
        %3340 = vmatpush1.msra.mxu0 0.0
        %3341 = vmatprep.subr.mxu0 0.0
        %3342 = vmatpush1.msra.mxu0 0.0
        %3343 = vmatprep.subr.mxu0 0.0
        %3344 = vmatpush1.msra.mxu0 0.0
        %3345 = vmatprep.subr.mxu0 0.0
        %3346 = vmatpush1.msra.mxu0 0.0
        %3347 = vmatprep.subr.mxu0 0.0
        %3348 = vmatpush1.msra.mxu0 0.0
        %3349 = vmatprep.subr.mxu0 0.0
        %3350 = vmatpush1.msra.mxu0 0.0
        %3351 = vmatprep.subr.mxu0 0.0
        %3352 = vmatpush1.msra.mxu0 0.0
        %3353 = vmatprep.subr.mxu0 0.0
        %3354 = vmatpush1.msra.mxu0 0.0
        %3355 = vmatprep.subr.mxu0 0.0
        %3356 = vmatpush1.msra.mxu0 0.0
        %3357 = vmatprep.subr.mxu0 0.0
        %3358 = vmatpush1.msra.mxu0 0.0
        %3359 = vmatprep.subr.mxu0 0.0
        %3360 = vmatpush1.msra.mxu0 0.0
        %3361 = vmatprep.subr.mxu0 0.0
        %3362 = vmatpush1.msra.mxu0 0.0
        %3363 = vmatprep.subr.mxu0 0.0
        %3364 = vmatpush1.msra.mxu0 0.0
        %3365 = vmatprep.subr.mxu0 0.0
        %3366 = vmatpush1.msra.mxu0 0.0
        %3367 = vmatprep.subr.mxu0 0.0
        %3368 = vmatpush1.msra.mxu0 0.0
        %3369 = vmatprep.subr.mxu0 0.0
        %3370 = vmatpush1.msra.mxu0 0.0
        %3371 = vmatprep.subr.mxu0 0.0
        %3372 = vmatpush1.msra.mxu0 0.0
        %3373 = vmatprep.subr.mxu0 0.0
        %3374 = vmatpush1.msra.mxu0 0.0
        %3375 = vmatprep.subr.mxu0 0.0
        %3376 = vmatpush1.msra.mxu0 0.0
        %3377 = vmatprep.subr.mxu0 0.0
        %3378 = vmatpush1.msra.mxu0 0.0
        %3379 = vmatprep.subr.mxu0 0.0
        %3380 = vmatpush1.msra.mxu0 0.0
        %3381 = vmatprep.subr.mxu0 0.0
        %3382 = vmatpush1.msra.mxu0 0.0
        %3383 = vmatprep.subr.mxu0 0.0
        %3384 = vmatpush1.msra.mxu0 0.0
        %3385 = vmatprep.subr.mxu0 0.0
        %3386 = vmatpush1.msra.mxu0 0.0
        %3387 = vmatprep.mubr.f32.mxu0 0.0
        %3388 = vmatmul.mubr.f32.gmra.mrb[0].mxu0 %v3223
        %v3389 = vpop.f32.mrb[0].mxu0
        %v3390 = vadd.f32 %v3205, %v3389
        %v3391 = vpop.f32.mrb[0].mxu0
        %v3392 = vadd.f32 %v3205, %v3391
        %3393 = vmatprep.mubr.f32.mxu0 0.0
        %3394 = vmatmul.mubr.f32.gmra.mrb[0].mxu0 %v3226
        %v3395 = vpop.f32.mrb[0].mxu0
        %v3396 = vadd.f32 %v3210, %v3395
        %v3397 = vpop.f32.mrb[0].mxu0
        %v3398 = vadd.f32 %v3210, %v3397
        %3399 = vmatprep.mubr.f32.mxu0 0.0
        %3400 = vmatmul.mubr.f32.gmra.mrb[0].mxu0 %v3229
        %v3401 = vpop.f32.mrb[0].mxu0
        %v3402 = vadd.f32 %v3215, %v3401
        %v3403 = vpop.f32.mrb[0].mxu0
        %v3404 = vadd.f32 %v3215, %v3403
        %3405 = vmatprep.mubr.f32.mxu0 0.0
        %3406 = vmatmul.mubr.f32.gmra.mrb[0].mxu0 %v3232
        %v3407 = vpop.f32.mrb[0].mxu0
        %v3408 = vadd.f32 %v3220, %v3407
        %v3409 = vpop.f32.mrb[0].mxu0
        %v3410 = vadd.f32 %v3220, %v3409
        %3411 = vdwg.mxu0
        %v3412 = vmax.f32 %v3301, 0.0
        %v3413 = vmax.f32 %v3303, 0.0
        %v3414 = vmax.f32 %v3390, 0.0
        %v3415 = vmax.f32 %v3392, 0.0
        %v3416 = vmax.f32 %v3307, 0.0
        %v3417 = vmax.f32 %v3309, 0.0
        %v3418 = vmax.f32 %v3396, 0.0
        %v3419 = vmax.f32 %v3398, 0.0
        %v3420 = vmax.f32 %v3313, 0.0
        %v3421 = vmax.f32 %v3315, 0.0
        %v3422 = vmax.f32 %v3402, 0.0
        %v3423 = vmax.f32 %v3404, 0.0
        %v3424 = vmax.f32 %v3319, 0.0
        %v3425 = vmax.f32 %v3321, 0.0
        %v3426 = vmax.f32 %v3408, 0.0
        %v3427 = vmax.f32 %v3410, 0.0
        %s3428 = scalar_lea.vmem %s5, 32
        %v3429 = vld [vmem:[%s3428] sm:$0xff]
        %v3430 = vld [vmem:[%s3428 + $0x8] sm:$0xff]
        %s3431 = scalar_lea.vmem [#allocation8], 32
        %v3432 = vld [vmem:[%s3431] sm:$0xff]
        %v3433 = vld [vmem:[%s3431 + $0x8] sm:$0xff]
        %3435 = vset.pattern.permute.xlu0 0
        %3436 = vperm.xlu0 %3435, %v3432
        %v3437 = vpop.permute.xlu0 %3436
        %3440 = vset.pattern.permute.xlu0 0
        %3441 = vperm.xlu0 %3440, %v3433
        %v3442 = vpop.permute.xlu0 %3441
        %v3445 = vsel %vm815, %v3429, 0
        %v3448 = vsel %vm815, %v3430, 0
        %3450 = vmatprep.subr.mxu0 %v3413
        %3451 = vmatpush1.msra.mxu0 %v3412
        %3452 = vmatprep.subr.mxu0 %v3417
        %3453 = vmatpush1.msra.mxu0 %v3416
        %3454 = vmatprep.subr.mxu0 %v3421
        %3455 = vmatpush1.msra.mxu0 %v3420
        %3456 = vmatprep.subr.mxu0 %v3425
        %3457 = vmatpush1.msra.mxu0 %v3424
        %3458 = vmatprep.subr.mxu0 0.0
        %3459 = vmatpush1.msra.mxu0 0.0
        %3460 = vmatprep.subr.mxu0 0.0
        %3461 = vmatpush1.msra.mxu0 0.0
        %3462 = vmatprep.subr.mxu0 0.0
        %3463 = vmatpush1.msra.mxu0 0.0
        %3464 = vmatprep.subr.mxu0 0.0
        %3465 = vmatpush1.msra.mxu0 0.0
        %3466 = vmatprep.subr.mxu0 0.0
        %3467 = vmatpush1.msra.mxu0 0.0
        %3468 = vmatprep.subr.mxu0 0.0
        %3469 = vmatpush1.msra.mxu0 0.0
        %3470 = vmatprep.subr.mxu0 0.0
        %3471 = vmatpush1.msra.mxu0 0.0
        %3472 = vmatprep.subr.mxu0 0.0
        %3473 = vmatpush1.msra.mxu0 0.0
        %3474 = vmatprep.subr.mxu0 0.0
        %3475 = vmatpush1.msra.mxu0 0.0
        %3476 = vmatprep.subr.mxu0 0.0
        %3477 = vmatpush1.msra.mxu0 0.0
        %3478 = vmatprep.subr.mxu0 0.0
        %3479 = vmatpush1.msra.mxu0 0.0
        %3480 = vmatprep.subr.mxu0 0.0
        %3481 = vmatpush1.msra.mxu0 0.0
        %3482 = vmatprep.subr.mxu0 0.0
        %3483 = vmatpush1.msra.mxu0 0.0
        %3484 = vmatprep.subr.mxu0 0.0
        %3485 = vmatpush1.msra.mxu0 0.0
        %3486 = vmatprep.subr.mxu0 0.0
        %3487 = vmatpush1.msra.mxu0 0.0
        %3488 = vmatprep.subr.mxu0 0.0
        %3489 = vmatpush1.msra.mxu0 0.0
        %3490 = vmatprep.subr.mxu0 0.0
        %3491 = vmatpush1.msra.mxu0 0.0
        %3492 = vmatprep.subr.mxu0 0.0
        %3493 = vmatpush1.msra.mxu0 0.0
        %3494 = vmatprep.subr.mxu0 0.0
        %3495 = vmatpush1.msra.mxu0 0.0
        %3496 = vmatprep.subr.mxu0 0.0
        %3497 = vmatpush1.msra.mxu0 0.0
        %3498 = vmatprep.subr.mxu0 0.0
        %3499 = vmatpush1.msra.mxu0 0.0
        %3500 = vmatprep.subr.mxu0 0.0
        %3501 = vmatpush1.msra.mxu0 0.0
        %3502 = vmatprep.subr.mxu0 0.0
        %3503 = vmatpush1.msra.mxu0 0.0
        %3504 = vmatprep.subr.mxu0 0.0
        %3505 = vmatpush1.msra.mxu0 0.0
        %3506 = vmatprep.subr.mxu0 0.0
        %3507 = vmatpush1.msra.mxu0 0.0
        %3508 = vmatprep.subr.mxu0 0.0
        %3509 = vmatpush1.msra.mxu0 0.0
        %3510 = vmatprep.subr.mxu0 0.0
        %3511 = vmatpush1.msra.mxu0 0.0
        %3512 = vmatprep.subr.mxu0 0.0
        %3513 = vmatpush1.msra.mxu0 0.0
        %3514 = vmatprep.mubr.f32.mxu0 0.0
        %3515 = vmatmul.mubr.f32.gmra.mrb[0].mxu0 %v3445
        %v3516 = vpop.f32.mrb[0].mxu0
        %v3517 = vadd.f32 %v3437, %v3516
        %v3518 = vpop.f32.mrb[0].mxu0
        %v3519 = vadd.f32 %v3437, %v3518
        %3520 = vmatprep.mubr.f32.mxu0 0.0
        %3521 = vmatmul.mubr.f32.gmra.mrb[0].mxu0 %v3448
        %v3522 = vpop.f32.mrb[0].mxu0
        %v3523 = vadd.f32 %v3442, %v3522
        %v3524 = vpop.f32.mrb[0].mxu0
        %v3525 = vadd.f32 %v3442, %v3524
        %3526 = vdwg.mxu0
        %3527 = vmatprep.subr.mxu0 %v3415
        %3528 = vmatpush1.msra.mxu0 %v3414
        %3529 = vmatprep.subr.mxu0 %v3419
        %3530 = vmatpush1.msra.mxu0 %v3418
        %3531 = vmatprep.subr.mxu0 %v3423
        %3532 = vmatpush1.msra.mxu0 %v3422
        %3533 = vmatprep.subr.mxu0 %v3427
        %3534 = vmatpush1.msra.mxu0 %v3426
        %3535 = vmatprep.subr.mxu0 0.0
        %3536 = vmatpush1.msra.mxu0 0.0
        %3537 = vmatprep.subr.mxu0 0.0
        %3538 = vmatpush1.msra.mxu0 0.0
        %3539 = vmatprep.subr.mxu0 0.0
        %3540 = vmatpush1.msra.mxu0 0.0
        %3541 = vmatprep.subr.mxu0 0.0
        %3542 = vmatpush1.msra.mxu0 0.0
        %3543 = vmatprep.subr.mxu0 0.0
        %3544 = vmatpush1.msra.mxu0 0.0
        %3545 = vmatprep.subr.mxu0 0.0
        %3546 = vmatpush1.msra.mxu0 0.0
        %3547 = vmatprep.subr.mxu0 0.0
        %3548 = vmatpush1.msra.mxu0 0.0
        %3549 = vmatprep.subr.mxu0 0.0
        %3550 = vmatpush1.msra.mxu0 0.0
        %3551 = vmatprep.subr.mxu0 0.0
        %3552 = vmatpush1.msra.mxu0 0.0
        %3553 = vmatprep.subr.mxu0 0.0
        %3554 = vmatpush1.msra.mxu0 0.0
        %3555 = vmatprep.subr.mxu0 0.0
        %3556 = vmatpush1.msra.mxu0 0.0
        %3557 = vmatprep.subr.mxu0 0.0
        %3558 = vmatpush1.msra.mxu0 0.0
        %3559 = vmatprep.subr.mxu0 0.0
        %3560 = vmatpush1.msra.mxu0 0.0
        %3561 = vmatprep.subr.mxu0 0.0
        %3562 = vmatpush1.msra.mxu0 0.0
        %3563 = vmatprep.subr.mxu0 0.0
        %3564 = vmatpush1.msra.mxu0 0.0
        %3565 = vmatprep.subr.mxu0 0.0
        %3566 = vmatpush1.msra.mxu0 0.0
        %3567 = vmatprep.subr.mxu0 0.0
        %3568 = vmatpush1.msra.mxu0 0.0
        %3569 = vmatprep.subr.mxu0 0.0
        %3570 = vmatpush1.msra.mxu0 0.0
        %3571 = vmatprep.subr.mxu0 0.0
        %3572 = vmatpush1.msra.mxu0 0.0
        %3573 = vmatprep.subr.mxu0 0.0
        %3574 = vmatpush1.msra.mxu0 0.0
        %3575 = vmatprep.subr.mxu0 0.0
        %3576 = vmatpush1.msra.mxu0 0.0
        %3577 = vmatprep.subr.mxu0 0.0
        %3578 = vmatpush1.msra.mxu0 0.0
        %3579 = vmatprep.subr.mxu0 0.0
        %3580 = vmatpush1.msra.mxu0 0.0
        %3581 = vmatprep.subr.mxu0 0.0
        %3582 = vmatpush1.msra.mxu0 0.0
        %3583 = vmatprep.subr.mxu0 0.0
        %3584 = vmatpush1.msra.mxu0 0.0
        %3585 = vmatprep.subr.mxu0 0.0
        %3586 = vmatpush1.msra.mxu0 0.0
        %3587 = vmatprep.subr.mxu0 0.0
        %3588 = vmatpush1.msra.mxu0 0.0
        %3589 = vmatprep.subr.mxu0 0.0
        %3590 = vmatpush1.msra.mxu0 0.0
        %3591 = vmatprep.mubr.f32.mxu0 0.0
        %3592 = vmatmul.mubr.f32.gmra.mrb[0].mxu0 %v3445
        %v3593 = vpop.f32.mrb[0].mxu0
        %v3594 = vadd.f32 %v3437, %v3593
        %v3595 = vpop.f32.mrb[0].mxu0
        %v3596 = vadd.f32 %v3437, %v3595
        %3597 = vmatprep.mubr.f32.mxu0 0.0
        %3598 = vmatmul.mubr.f32.gmra.mrb[0].mxu0 %v3448
        %v3599 = vpop.f32.mrb[0].mxu0
        %v3600 = vadd.f32 %v3442, %v3599
        %v3601 = vpop.f32.mrb[0].mxu0
        %v3602 = vadd.f32 %v3442, %v3601
        %3603 = vdwg.mxu0
        %v3604 = vmul.f32 %v3517, 0.5263158
        %v3605 = vmul.f32 %v3519, 0.5263158
        %v3606 = vmul.f32 %v3594, 0.5263158
        %v3607 = vmul.f32 %v3596, 0.5263158
        %v3608 = vtanh.pop %v3604
        %v3609 = vtanh.pop %v3605
        %v3610 = vtanh.pop %v3606
        %v3611 = vtanh.pop %v3607
        %v3612 = vmul.f32 %v3608, 1.9
        %v3613 = vmul.f32 %v3609, 1.9
        %v3614 = vmul.f32 %v3610, 1.9
        %v3615 = vmul.f32 %v3611, 1.9
        %v3616 = vmul.f32 %v3612, 1.442695
        %v3617 = vpow.pop %v3616
        %v3618 = vmul.f32 %v3613, 1.442695
        %v3619 = vpow.pop %v3618
        %v3620 = vmul.f32 %v3614, 1.442695
        %v3621 = vpow.pop %v3620
        %v3622 = vmul.f32 %v3615, 1.442695
        %v3623 = vpow.pop %v3622
        %v3624 = vmul.f32 %v2542, %v3617
        %v3625 = vmul.f32 %v2543, %v3619
        %v3626 = vmul.f32 %v2544, %v3621
        %v3627 = vmul.f32 %v2545, %v3623
        %v3628 = vadd.f32 %v3624, %v3523
        %v3629 = vadd.f32 %v3625, %v3525
        %v3630 = vadd.f32 %v3626, %v3600
        %v3631 = vadd.f32 %v3627, %v3602
        %v3632 = vadd.f32 %v2546, %v3612
        %v3633 = vadd.f32 %v2547, %v3613
        %v3634 = vadd.f32 %v2548, %v3614
        %v3635 = vadd.f32 %v2549, %v3615
        %s3636 = scalar_lea.vmem [#allocation3], 96
        %v3637 = vld [vmem:[%s3636] sm:$0xff]
        %v3638 = vld [vmem:[%s3636 + $0x8] sm:$0xff]
        %v3639 = vld [vmem:[%s3636 + $0x10] sm:$0xff]
        %v3640 = vld [vmem:[%s3636 + $0x18] sm:$0xff]
        %s3641 = scalar_lea.vmem [#allocation5], 96
        %v3642 = vld [vmem:[%s3641] sm:$0xff]
        %v3643 = vld [vmem:[%s3641 + $0x8] sm:$0xff]
        %v3644 = vld [vmem:[%s3641 + $0x10] sm:$0xff]
        %v3645 = vld [vmem:[%s3641 + $0x18] sm:$0xff]
        %v3647 = vsel %vm390, %v3642, 0
        %v3650 = vsel %vm390, %v3643, 0
        %v3653 = vsel %vm390, %v3644, 0
        %v3656 = vsel %vm390, %v3645, 0
        %3658 = vmatprep.subr.mxu0 %v379
        %3659 = vmatpush1.msra.mxu0 %v378
        %3660 = vmatprep.subr.mxu0 0.0
        %3661 = vmatpush1.msra.mxu0 0.0
        %3662 = vmatprep.subr.mxu0 0.0
        %3663 = vmatpush1.msra.mxu0 0.0
        %3664 = vmatprep.subr.mxu0 0.0
        %3665 = vmatpush1.msra.mxu0 0.0
        %3666 = vmatprep.subr.mxu0 0.0
        %3667 = vmatpush1.msra.mxu0 0.0
        %3668 = vmatprep.subr.mxu0 0.0
        %3669 = vmatpush1.msra.mxu0 0.0
        %3670 = vmatprep.subr.mxu0 0.0
        %3671 = vmatpush1.msra.mxu0 0.0
        %3672 = vmatprep.subr.mxu0 0.0
        %3673 = vmatpush1.msra.mxu0 0.0
        %3674 = vmatprep.subr.mxu0 0.0
        %3675 = vmatpush1.msra.mxu0 0.0
        %3676 = vmatprep.subr.mxu0 0.0
        %3677 = vmatpush1.msra.mxu0 0.0
        %3678 = vmatprep.subr.mxu0 0.0
        %3679 = vmatpush1.msra.mxu0 0.0
        %3680 = vmatprep.subr.mxu0 0.0
        %3681 = vmatpush1.msra.mxu0 0.0
        %3682 = vmatprep.subr.mxu0 0.0
        %3683 = vmatpush1.msra.mxu0 0.0
        %3684 = vmatprep.subr.mxu0 0.0
        %3685 = vmatpush1.msra.mxu0 0.0
        %3686 = vmatprep.subr.mxu0 0.0
        %3687 = vmatpush1.msra.mxu0 0.0
        %3688 = vmatprep.subr.mxu0 0.0
        %3689 = vmatpush1.msra.mxu0 0.0
        %3690 = vmatprep.subr.mxu0 0.0
        %3691 = vmatpush1.msra.mxu0 0.0
        %3692 = vmatprep.subr.mxu0 0.0
        %3693 = vmatpush1.msra.mxu0 0.0
        %3694 = vmatprep.subr.mxu0 0.0
        %3695 = vmatpush1.msra.mxu0 0.0
        %3696 = vmatprep.subr.mxu0 0.0
        %3697 = vmatpush1.msra.mxu0 0.0
        %3698 = vmatprep.subr.mxu0 0.0
        %3699 = vmatpush1.msra.mxu0 0.0
        %3700 = vmatprep.subr.mxu0 0.0
        %3701 = vmatpush1.msra.mxu0 0.0
        %3702 = vmatprep.subr.mxu0 0.0
        %3703 = vmatpush1.msra.mxu0 0.0
        %3704 = vmatprep.subr.mxu0 0.0
        %3705 = vmatpush1.msra.mxu0 0.0
        %3706 = vmatprep.subr.mxu0 0.0
        %3707 = vmatpush1.msra.mxu0 0.0
        %3708 = vmatprep.subr.mxu0 0.0
        %3709 = vmatpush1.msra.mxu0 0.0
        %3710 = vmatprep.subr.mxu0 0.0
        %3711 = vmatpush1.msra.mxu0 0.0
        %3712 = vmatprep.subr.mxu0 0.0
        %3713 = vmatpush1.msra.mxu0 0.0
        %3714 = vmatprep.subr.mxu0 0.0
        %3715 = vmatpush1.msra.mxu0 0.0
        %3716 = vmatprep.subr.mxu0 0.0
        %3717 = vmatpush1.msra.mxu0 0.0
        %3718 = vmatprep.subr.mxu0 0.0
        %3719 = vmatpush1.msra.mxu0 0.0
        %3720 = vmatprep.subr.mxu0 0.0
        %3721 = vmatpush1.msra.mxu0 0.0
        %3722 = vmatprep.mubr.f32.mxu0 0.0
        %3723 = vmatmul.mubr.f32.gmra.mrb[0].mxu0 %v3647
        %v3724 = vpop.f32.mrb[0].mxu0
        %v3725 = vadd.f32 0.0, %v3724
        %v3726 = vpop.f32.mrb[0].mxu0
        %v3727 = vadd.f32 0.0, %v3726
        %3728 = vmatprep.mubr.f32.mxu0 0.0
        %3729 = vmatmul.mubr.f32.gmra.mrb[0].mxu0 %v3650
        %v3730 = vpop.f32.mrb[0].mxu0
        %v3731 = vadd.f32 0.0, %v3730
        %v3732 = vpop.f32.mrb[0].mxu0
        %v3733 = vadd.f32 0.0, %v3732
        %3734 = vmatprep.mubr.f32.mxu0 0.0
        %3735 = vmatmul.mubr.f32.gmra.mrb[0].mxu0 %v3653
        %v3736 = vpop.f32.mrb[0].mxu0
        %v3737 = vadd.f32 0.0, %v3736
        %v3738 = vpop.f32.mrb[0].mxu0
        %v3739 = vadd.f32 0.0, %v3738
        %3740 = vmatprep.mubr.f32.mxu0 0.0
        %3741 = vmatmul.mubr.f32.gmra.mrb[0].mxu0 %v3656
        %v3742 = vpop.f32.mrb[0].mxu0
        %v3743 = vadd.f32 0.0, %v3742
        %v3744 = vpop.f32.mrb[0].mxu0
        %v3745 = vadd.f32 0.0, %v3744
        %3746 = vdwg.mxu0
        %3747 = vmatprep.subr.mxu0 %v381
        %3748 = vmatpush1.msra.mxu0 %v380
        %3749 = vmatprep.subr.mxu0 0.0
        %3750 = vmatpush1.msra.mxu0 0.0
        %3751 = vmatprep.subr.mxu0 0.0
        %3752 = vmatpush1.msra.mxu0 0.0
        %3753 = vmatprep.subr.mxu0 0.0
        %3754 = vmatpush1.msra.mxu0 0.0
        %3755 = vmatprep.subr.mxu0 0.0
        %3756 = vmatpush1.msra.mxu0 0.0
        %3757 = vmatprep.subr.mxu0 0.0
        %3758 = vmatpush1.msra.mxu0 0.0
        %3759 = vmatprep.subr.mxu0 0.0
        %3760 = vmatpush1.msra.mxu0 0.0
        %3761 = vmatprep.subr.mxu0 0.0
        %3762 = vmatpush1.msra.mxu0 0.0
        %3763 = vmatprep.subr.mxu0 0.0
        %3764 = vmatpush1.msra.mxu0 0.0
        %3765 = vmatprep.subr.mxu0 0.0
        %3766 = vmatpush1.msra.mxu0 0.0
        %3767 = vmatprep.subr.mxu0 0.0
        %3768 = vmatpush1.msra.mxu0 0.0
        %3769 = vmatprep.subr.mxu0 0.0
        %3770 = vmatpush1.msra.mxu0 0.0
        %3771 = vmatprep.subr.mxu0 0.0
        %3772 = vmatpush1.msra.mxu0 0.0
        %3773 = vmatprep.subr.mxu0 0.0
        %3774 = vmatpush1.msra.mxu0 0.0
        %3775 = vmatprep.subr.mxu0 0.0
        %3776 = vmatpush1.msra.mxu0 0.0
        %3777 = vmatprep.subr.mxu0 0.0
        %3778 = vmatpush1.msra.mxu0 0.0
        %3779 = vmatprep.subr.mxu0 0.0
        %3780 = vmatpush1.msra.mxu0 0.0
        %3781 = vmatprep.subr.mxu0 0.0
        %3782 = vmatpush1.msra.mxu0 0.0
        %3783 = vmatprep.subr.mxu0 0.0
        %3784 = vmatpush1.msra.mxu0 0.0
        %3785 = vmatprep.subr.mxu0 0.0
        %3786 = vmatpush1.msra.mxu0 0.0
        %3787 = vmatprep.subr.mxu0 0.0
        %3788 = vmatpush1.msra.mxu0 0.0
        %3789 = vmatprep.subr.mxu0 0.0
        %3790 = vmatpush1.msra.mxu0 0.0
        %3791 = vmatprep.subr.mxu0 0.0
        %3792 = vmatpush1.msra.mxu0 0.0
        %3793 = vmatprep.subr.mxu0 0.0
        %3794 = vmatpush1.msra.mxu0 0.0
        %3795 = vmatprep.subr.mxu0 0.0
        %3796 = vmatpush1.msra.mxu0 0.0
        %3797 = vmatprep.subr.mxu0 0.0
        %3798 = vmatpush1.msra.mxu0 0.0
        %3799 = vmatprep.subr.mxu0 0.0
        %3800 = vmatpush1.msra.mxu0 0.0
        %3801 = vmatprep.subr.mxu0 0.0
        %3802 = vmatpush1.msra.mxu0 0.0
        %3803 = vmatprep.subr.mxu0 0.0
        %3804 = vmatpush1.msra.mxu0 0.0
        %3805 = vmatprep.subr.mxu0 0.0
        %3806 = vmatpush1.msra.mxu0 0.0
        %3807 = vmatprep.subr.mxu0 0.0
        %3808 = vmatpush1.msra.mxu0 0.0
        %3809 = vmatprep.subr.mxu0 0.0
        %3810 = vmatpush1.msra.mxu0 0.0
        %3811 = vmatprep.mubr.f32.mxu0 0.0
        %3812 = vmatmul.mubr.f32.gmra.mrb[0].mxu0 %v3647
        %v3813 = vpop.f32.mrb[0].mxu0
        %v3814 = vadd.f32 0.0, %v3813
        %v3815 = vpop.f32.mrb[0].mxu0
        %v3816 = vadd.f32 0.0, %v3815
        %3817 = vmatprep.mubr.f32.mxu0 0.0
        %3818 = vmatmul.mubr.f32.gmra.mrb[0].mxu0 %v3650
        %v3819 = vpop.f32.mrb[0].mxu0
        %v3820 = vadd.f32 0.0, %v3819
        %v3821 = vpop.f32.mrb[0].mxu0
        %v3822 = vadd.f32 0.0, %v3821
        %3823 = vmatprep.mubr.f32.mxu0 0.0
        %3824 = vmatmul.mubr.f32.gmra.mrb[0].mxu0 %v3653
        %v3825 = vpop.f32.mrb[0].mxu0
        %v3826 = vadd.f32 0.0, %v3825
        %v3827 = vpop.f32.mrb[0].mxu0
        %v3828 = vadd.f32 0.0, %v3827
        %3829 = vmatprep.mubr.f32.mxu0 0.0
        %3830 = vmatmul.mubr.f32.gmra.mrb[0].mxu0 %v3656
        %v3831 = vpop.f32.mrb[0].mxu0
        %v3832 = vadd.f32 0.0, %v3831
        %v3833 = vpop.f32.mrb[0].mxu0
        %v3834 = vadd.f32 0.0, %v3833
        %3835 = vdwg.mxu0
        %v3837 = vsel %vm390, %v3637, 0
        %v3840 = vsel %vm390, %v3638, 0
        %v3843 = vsel %vm390, %v3639, 0
        %v3846 = vsel %vm390, %v3640, 0
        %3848 = vmatprep.subr.mxu0 %v3629
        %3849 = vmatpush1.msra.mxu0 %v3628
        %3850 = vmatprep.subr.mxu0 0.0
        %3851 = vmatpush1.msra.mxu0 0.0
        %3852 = vmatprep.subr.mxu0 0.0
        %3853 = vmatpush1.msra.mxu0 0.0
        %3854 = vmatprep.subr.mxu0 0.0
        %3855 = vmatpush1.msra.mxu0 0.0
        %3856 = vmatprep.subr.mxu0 0.0
        %3857 = vmatpush1.msra.mxu0 0.0
        %3858 = vmatprep.subr.mxu0 0.0
        %3859 = vmatpush1.msra.mxu0 0.0
        %3860 = vmatprep.subr.mxu0 0.0
        %3861 = vmatpush1.msra.mxu0 0.0
        %3862 = vmatprep.subr.mxu0 0.0
        %3863 = vmatpush1.msra.mxu0 0.0
        %3864 = vmatprep.subr.mxu0 0.0
        %3865 = vmatpush1.msra.mxu0 0.0
        %3866 = vmatprep.subr.mxu0 0.0
        %3867 = vmatpush1.msra.mxu0 0.0
        %3868 = vmatprep.subr.mxu0 0.0
        %3869 = vmatpush1.msra.mxu0 0.0
        %3870 = vmatprep.subr.mxu0 0.0
        %3871 = vmatpush1.msra.mxu0 0.0
        %3872 = vmatprep.subr.mxu0 0.0
        %3873 = vmatpush1.msra.mxu0 0.0
        %3874 = vmatprep.subr.mxu0 0.0
        %3875 = vmatpush1.msra.mxu0 0.0
        %3876 = vmatprep.subr.mxu0 0.0
        %3877 = vmatpush1.msra.mxu0 0.0
        %3878 = vmatprep.subr.mxu0 0.0
        %3879 = vmatpush1.msra.mxu0 0.0
        %3880 = vmatprep.subr.mxu0 0.0
        %3881 = vmatpush1.msra.mxu0 0.0
        %3882 = vmatprep.subr.mxu0 0.0
        %3883 = vmatpush1.msra.mxu0 0.0
        %3884 = vmatprep.subr.mxu0 0.0
        %3885 = vmatpush1.msra.mxu0 0.0
        %3886 = vmatprep.subr.mxu0 0.0
        %3887 = vmatpush1.msra.mxu0 0.0
        %3888 = vmatprep.subr.mxu0 0.0
        %3889 = vmatpush1.msra.mxu0 0.0
        %3890 = vmatprep.subr.mxu0 0.0
        %3891 = vmatpush1.msra.mxu0 0.0
        %3892 = vmatprep.subr.mxu0 0.0
        %3893 = vmatpush1.msra.mxu0 0.0
        %3894 = vmatprep.subr.mxu0 0.0
        %3895 = vmatpush1.msra.mxu0 0.0
        %3896 = vmatprep.subr.mxu0 0.0
        %3897 = vmatpush1.msra.mxu0 0.0
        %3898 = vmatprep.subr.mxu0 0.0
        %3899 = vmatpush1.msra.mxu0 0.0
        %3900 = vmatprep.subr.mxu0 0.0
        %3901 = vmatpush1.msra.mxu0 0.0
        %3902 = vmatprep.subr.mxu0 0.0
        %3903 = vmatpush1.msra.mxu0 0.0
        %3904 = vmatprep.subr.mxu0 0.0
        %3905 = vmatpush1.msra.mxu0 0.0
        %3906 = vmatprep.subr.mxu0 0.0
        %3907 = vmatpush1.msra.mxu0 0.0
        %3908 = vmatprep.subr.mxu0 0.0
        %3909 = vmatpush1.msra.mxu0 0.0
        %3910 = vmatprep.subr.mxu0 0.0
        %3911 = vmatpush1.msra.mxu0 0.0
        %3912 = vmatprep.mubr.f32.mxu0 0.0
        %3913 = vmatmul.mubr.f32.gmra.mrb[0].mxu0 %v3837
        %v3914 = vpop.f32.mrb[0].mxu0
        %v3915 = vadd.f32 %v3725, %v3914
        %v3916 = vpop.f32.mrb[0].mxu0
        %v3917 = vadd.f32 %v3727, %v3916
        %3918 = vmatprep.mubr.f32.mxu0 0.0
        %3919 = vmatmul.mubr.f32.gmra.mrb[0].mxu0 %v3840
        %v3920 = vpop.f32.mrb[0].mxu0
        %v3921 = vadd.f32 %v3731, %v3920
        %v3922 = vpop.f32.mrb[0].mxu0
        %v3923 = vadd.f32 %v3733, %v3922
        %3924 = vmatprep.mubr.f32.mxu0 0.0
        %3925 = vmatmul.mubr.f32.gmra.mrb[0].mxu0 %v3843
        %v3926 = vpop.f32.mrb[0].mxu0
        %v3927 = vadd.f32 %v3737, %v3926
        %v3928 = vpop.f32.mrb[0].mxu0
        %v3929 = vadd.f32 %v3739, %v3928
        %3930 = vmatprep.mubr.f32.mxu0 0.0
        %3931 = vmatmul.mubr.f32.gmra.mrb[0].mxu0 %v3846
        %v3932 = vpop.f32.mrb[0].mxu0
        %v3933 = vadd.f32 %v3743, %v3932
        %v3934 = vpop.f32.mrb[0].mxu0
        %v3935 = vadd.f32 %v3745, %v3934
        %3936 = vdwg.mxu0
        %3937 = vmatprep.subr.mxu0 %v3631
        %3938 = vmatpush1.msra.mxu0 %v3630
        %3939 = vmatprep.subr.mxu0 0.0
        %3940 = vmatpush1.msra.mxu0 0.0
        %3941 = vmatprep.subr.mxu0 0.0
        %3942 = vmatpush1.msra.mxu0 0.0
        %3943 = vmatprep.subr.mxu0 0.0
        %3944 = vmatpush1.msra.mxu0 0.0
        %3945 = vmatprep.subr.mxu0 0.0
        %3946 = vmatpush1.msra.mxu0 0.0
        %3947 = vmatprep.subr.mxu0 0.0
        %3948 = vmatpush1.msra.mxu0 0.0
        %3949 = vmatprep.subr.mxu0 0.0
        %3950 = vmatpush1.msra.mxu0 0.0
        %3951 = vmatprep.subr.mxu0 0.0
        %3952 = vmatpush1.msra.mxu0 0.0
        %3953 = vmatprep.subr.mxu0 0.0
        %3954 = vmatpush1.msra.mxu0 0.0
        %3955 = vmatprep.subr.mxu0 0.0
        %3956 = vmatpush1.msra.mxu0 0.0
        %3957 = vmatprep.subr.mxu0 0.0
        %3958 = vmatpush1.msra.mxu0 0.0
        %3959 = vmatprep.subr.mxu0 0.0
        %3960 = vmatpush1.msra.mxu0 0.0
        %3961 = vmatprep.subr.mxu0 0.0
        %3962 = vmatpush1.msra.mxu0 0.0
        %3963 = vmatprep.subr.mxu0 0.0
        %3964 = vmatpush1.msra.mxu0 0.0
        %3965 = vmatprep.subr.mxu0 0.0
        %3966 = vmatpush1.msra.mxu0 0.0
        %3967 = vmatprep.subr.mxu0 0.0
        %3968 = vmatpush1.msra.mxu0 0.0
        %3969 = vmatprep.subr.mxu0 0.0
        %3970 = vmatpush1.msra.mxu0 0.0
        %3971 = vmatprep.subr.mxu0 0.0
        %3972 = vmatpush1.msra.mxu0 0.0
        %3973 = vmatprep.subr.mxu0 0.0
        %3974 = vmatpush1.msra.mxu0 0.0
        %3975 = vmatprep.subr.mxu0 0.0
        %3976 = vmatpush1.msra.mxu0 0.0
        %3977 = vmatprep.subr.mxu0 0.0
        %3978 = vmatpush1.msra.mxu0 0.0
        %3979 = vmatprep.subr.mxu0 0.0
        %3980 = vmatpush1.msra.mxu0 0.0
        %3981 = vmatprep.subr.mxu0 0.0
        %3982 = vmatpush1.msra.mxu0 0.0
        %3983 = vmatprep.subr.mxu0 0.0
        %3984 = vmatpush1.msra.mxu0 0.0
        %3985 = vmatprep.subr.mxu0 0.0
        %3986 = vmatpush1.msra.mxu0 0.0
        %3987 = vmatprep.subr.mxu0 0.0
        %3988 = vmatpush1.msra.mxu0 0.0
        %3989 = vmatprep.subr.mxu0 0.0
        %3990 = vmatpush1.msra.mxu0 0.0
        %3991 = vmatprep.subr.mxu0 0.0
        %3992 = vmatpush1.msra.mxu0 0.0
        %3993 = vmatprep.subr.mxu0 0.0
        %3994 = vmatpush1.msra.mxu0 0.0
        %3995 = vmatprep.subr.mxu0 0.0
        %3996 = vmatpush1.msra.mxu0 0.0
        %3997 = vmatprep.subr.mxu0 0.0
        %3998 = vmatpush1.msra.mxu0 0.0
        %3999 = vmatprep.subr.mxu0 0.0
        %4000 = vmatpush1.msra.mxu0 0.0
        %4001 = vmatprep.mubr.f32.mxu0 0.0
        %4002 = vmatmul.mubr.f32.gmra.mrb[0].mxu0 %v3837
        %v4003 = vpop.f32.mrb[0].mxu0
        %v4004 = vadd.f32 %v3814, %v4003
        %v4005 = vpop.f32.mrb[0].mxu0
        %v4006 = vadd.f32 %v3816, %v4005
        %4007 = vmatprep.mubr.f32.mxu0 0.0
        %4008 = vmatmul.mubr.f32.gmra.mrb[0].mxu0 %v3840
        %v4009 = vpop.f32.mrb[0].mxu0
        %v4010 = vadd.f32 %v3820, %v4009
        %v4011 = vpop.f32.mrb[0].mxu0
        %v4012 = vadd.f32 %v3822, %v4011
        %4013 = vmatprep.mubr.f32.mxu0 0.0
        %4014 = vmatmul.mubr.f32.gmra.mrb[0].mxu0 %v3843
        %v4015 = vpop.f32.mrb[0].mxu0
        %v4016 = vadd.f32 %v3826, %v4015
        %v4017 = vpop.f32.mrb[0].mxu0
        %v4018 = vadd.f32 %v3828, %v4017
        %4019 = vmatprep.mubr.f32.mxu0 0.0
        %4020 = vmatmul.mubr.f32.gmra.mrb[0].mxu0 %v3846
        %v4021 = vpop.f32.mrb[0].mxu0
        %v4022 = vadd.f32 %v3832, %v4021
        %v4023 = vpop.f32.mrb[0].mxu0
        %v4024 = vadd.f32 %v3834, %v4023
        %4025 = vdwg.mxu0
        %v4026 = vmax.f32 %v3915, 0.0
        %v4027 = vmax.f32 %v3917, 0.0
        %v4028 = vmax.f32 %v4004, 0.0
        %v4029 = vmax.f32 %v4006, 0.0
        %v4030 = vmax.f32 %v3921, 0.0
        %v4031 = vmax.f32 %v3923, 0.0
        %v4032 = vmax.f32 %v4010, 0.0
        %v4033 = vmax.f32 %v4012, 0.0
        %v4034 = vmax.f32 %v3927, 0.0
        %v4035 = vmax.f32 %v3929, 0.0
        %v4036 = vmax.f32 %v4016, 0.0
        %v4037 = vmax.f32 %v4018, 0.0
        %v4038 = vmax.f32 %v3933, 0.0
        %v4039 = vmax.f32 %v3935, 0.0
        %v4040 = vmax.f32 %v4022, 0.0
        %v4041 = vmax.f32 %v4024, 0.0
        %s4042 = scalar_lea.vmem %s3, 192
        %v4043 = vld [vmem:[%s4042] sm:$0xff]
        %v4044 = vld [vmem:[%s4042 + $0x8] sm:$0xff]
        %v4045 = vld [vmem:[%s4042 + $0x10] sm:$0xff]
        %v4046 = vld [vmem:[%s4042 + $0x18] sm:$0xff]
        %s4047 = scalar_lea.vmem [#allocation7], 192
        %v4048 = vld [vmem:[%s4047] sm:$0xff]
        %v4049 = vld [vmem:[%s4047 + $0x8] sm:$0xff]
        %v4050 = vld [vmem:[%s4047 + $0x10] sm:$0xff]
        %v4051 = vld [vmem:[%s4047 + $0x18] sm:$0xff]
        %4053 = vset.pattern.permute.xlu0 0
        %4054 = vperm.xlu0 %4053, %v4048
        %v4055 = vpop.permute.xlu0 %4054
        %4058 = vset.pattern.permute.xlu0 0
        %4059 = vperm.xlu0 %4058, %v4049
        %v4060 = vpop.permute.xlu0 %4059
        %4063 = vset.pattern.permute.xlu0 0
        %4064 = vperm.xlu0 %4063, %v4050
        %v4065 = vpop.permute.xlu0 %4064
        %4068 = vset.pattern.permute.xlu0 0
        %4069 = vperm.xlu0 %4068, %v4051
        %v4070 = vpop.permute.xlu0 %4069
        %v4073 = vsel %vm815, %v4043, 0
        %v4076 = vsel %vm815, %v4044, 0
        %v4079 = vsel %vm815, %v4045, 0
        %v4082 = vsel %vm815, %v4046, 0
        %4084 = vmatprep.subr.mxu0 %v4027
        %4085 = vmatpush1.msra.mxu0 %v4026
        %4086 = vmatprep.subr.mxu0 %v4031
        %4087 = vmatpush1.msra.mxu0 %v4030
        %4088 = vmatprep.subr.mxu0 %v4035
        %4089 = vmatpush1.msra.mxu0 %v4034
        %4090 = vmatprep.subr.mxu0 %v4039
        %4091 = vmatpush1.msra.mxu0 %v4038
        %4092 = vmatprep.subr.mxu0 0.0
        %4093 = vmatpush1.msra.mxu0 0.0
        %4094 = vmatprep.subr.mxu0 0.0
        %4095 = vmatpush1.msra.mxu0 0.0
        %4096 = vmatprep.subr.mxu0 0.0
        %4097 = vmatpush1.msra.mxu0 0.0
        %4098 = vmatprep.subr.mxu0 0.0
        %4099 = vmatpush1.msra.mxu0 0.0
        %4100 = vmatprep.subr.mxu0 0.0
        %4101 = vmatpush1.msra.mxu0 0.0
        %4102 = vmatprep.subr.mxu0 0.0
        %4103 = vmatpush1.msra.mxu0 0.0
        %4104 = vmatprep.subr.mxu0 0.0
        %4105 = vmatpush1.msra.mxu0 0.0
        %4106 = vmatprep.subr.mxu0 0.0
        %4107 = vmatpush1.msra.mxu0 0.0
        %4108 = vmatprep.subr.mxu0 0.0
        %4109 = vmatpush1.msra.mxu0 0.0
        %4110 = vmatprep.subr.mxu0 0.0
        %4111 = vmatpush1.msra.mxu0 0.0
        %4112 = vmatprep.subr.mxu0 0.0
        %4113 = vmatpush1.msra.mxu0 0.0
        %4114 = vmatprep.subr.mxu0 0.0
        %4115 = vmatpush1.msra.mxu0 0.0
        %4116 = vmatprep.subr.mxu0 0.0
        %4117 = vmatpush1.msra.mxu0 0.0
        %4118 = vmatprep.subr.mxu0 0.0
        %4119 = vmatpush1.msra.mxu0 0.0
        %4120 = vmatprep.subr.mxu0 0.0
        %4121 = vmatpush1.msra.mxu0 0.0
        %4122 = vmatprep.subr.mxu0 0.0
        %4123 = vmatpush1.msra.mxu0 0.0
        %4124 = vmatprep.subr.mxu0 0.0
        %4125 = vmatpush1.msra.mxu0 0.0
        %4126 = vmatprep.subr.mxu0 0.0
        %4127 = vmatpush1.msra.mxu0 0.0
        %4128 = vmatprep.subr.mxu0 0.0
        %4129 = vmatpush1.msra.mxu0 0.0
        %4130 = vmatprep.subr.mxu0 0.0
        %4131 = vmatpush1.msra.mxu0 0.0
        %4132 = vmatprep.subr.mxu0 0.0
        %4133 = vmatpush1.msra.mxu0 0.0
        %4134 = vmatprep.subr.mxu0 0.0
        %4135 = vmatpush1.msra.mxu0 0.0
        %4136 = vmatprep.subr.mxu0 0.0
        %4137 = vmatpush1.msra.mxu0 0.0
        %4138 = vmatprep.subr.mxu0 0.0
        %4139 = vmatpush1.msra.mxu0 0.0
        %4140 = vmatprep.subr.mxu0 0.0
        %4141 = vmatpush1.msra.mxu0 0.0
        %4142 = vmatprep.subr.mxu0 0.0
        %4143 = vmatpush1.msra.mxu0 0.0
        %4144 = vmatprep.subr.mxu0 0.0
        %4145 = vmatpush1.msra.mxu0 0.0
        %4146 = vmatprep.subr.mxu0 0.0
        %4147 = vmatpush1.msra.mxu0 0.0
        %4148 = vmatprep.mubr.f32.mxu0 0.0
        %4149 = vmatmul.mubr.f32.gmra.mrb[0].mxu0 %v4073
        %v4150 = vpop.f32.mrb[0].mxu0
        %v4151 = vadd.f32 %v4055, %v4150
        %v4152 = vpop.f32.mrb[0].mxu0
        %v4153 = vadd.f32 %v4055, %v4152
        %4154 = vmatprep.mubr.f32.mxu0 0.0
        %4155 = vmatmul.mubr.f32.gmra.mrb[0].mxu0 %v4076
        %v4156 = vpop.f32.mrb[0].mxu0
        %v4157 = vadd.f32 %v4060, %v4156
        %v4158 = vpop.f32.mrb[0].mxu0
        %v4159 = vadd.f32 %v4060, %v4158
        %4160 = vmatprep.mubr.f32.mxu0 0.0
        %4161 = vmatmul.mubr.f32.gmra.mrb[0].mxu0 %v4079
        %v4162 = vpop.f32.mrb[0].mxu0
        %v4163 = vadd.f32 %v4065, %v4162
        %v4164 = vpop.f32.mrb[0].mxu0
        %v4165 = vadd.f32 %v4065, %v4164
        %4166 = vmatprep.mubr.f32.mxu0 0.0
        %4167 = vmatmul.mubr.f32.gmra.mrb[0].mxu0 %v4082
        %v4168 = vpop.f32.mrb[0].mxu0
        %v4169 = vadd.f32 %v4070, %v4168
        %v4170 = vpop.f32.mrb[0].mxu0
        %v4171 = vadd.f32 %v4070, %v4170
        %4172 = vdwg.mxu0
        %4173 = vmatprep.subr.mxu0 %v4029
        %4174 = vmatpush1.msra.mxu0 %v4028
        %4175 = vmatprep.subr.mxu0 %v4033
        %4176 = vmatpush1.msra.mxu0 %v4032
        %4177 = vmatprep.subr.mxu0 %v4037
        %4178 = vmatpush1.msra.mxu0 %v4036
        %4179 = vmatprep.subr.mxu0 %v4041
        %4180 = vmatpush1.msra.mxu0 %v4040
        %4181 = vmatprep.subr.mxu0 0.0
        %4182 = vmatpush1.msra.mxu0 0.0
        %4183 = vmatprep.subr.mxu0 0.0
        %4184 = vmatpush1.msra.mxu0 0.0
        %4185 = vmatprep.subr.mxu0 0.0
        %4186 = vmatpush1.msra.mxu0 0.0
        %4187 = vmatprep.subr.mxu0 0.0
        %4188 = vmatpush1.msra.mxu0 0.0
        %4189 = vmatprep.subr.mxu0 0.0
        %4190 = vmatpush1.msra.mxu0 0.0
        %4191 = vmatprep.subr.mxu0 0.0
        %4192 = vmatpush1.msra.mxu0 0.0
        %4193 = vmatprep.subr.mxu0 0.0
        %4194 = vmatpush1.msra.mxu0 0.0
        %4195 = vmatprep.subr.mxu0 0.0
        %4196 = vmatpush1.msra.mxu0 0.0
        %4197 = vmatprep.subr.mxu0 0.0
        %4198 = vmatpush1.msra.mxu0 0.0
        %4199 = vmatprep.subr.mxu0 0.0
        %4200 = vmatpush1.msra.mxu0 0.0
        %4201 = vmatprep.subr.mxu0 0.0
        %4202 = vmatpush1.msra.mxu0 0.0
        %4203 = vmatprep.subr.mxu0 0.0
        %4204 = vmatpush1.msra.mxu0 0.0
        %4205 = vmatprep.subr.mxu0 0.0
        %4206 = vmatpush1.msra.mxu0 0.0
        %4207 = vmatprep.subr.mxu0 0.0
        %4208 = vmatpush1.msra.mxu0 0.0
        %4209 = vmatprep.subr.mxu0 0.0
        %4210 = vmatpush1.msra.mxu0 0.0
        %4211 = vmatprep.subr.mxu0 0.0
        %4212 = vmatpush1.msra.mxu0 0.0
        %4213 = vmatprep.subr.mxu0 0.0
        %4214 = vmatpush1.msra.mxu0 0.0
        %4215 = vmatprep.subr.mxu0 0.0
        %4216 = vmatpush1.msra.mxu0 0.0
        %4217 = vmatprep.subr.mxu0 0.0
        %4218 = vmatpush1.msra.mxu0 0.0
        %4219 = vmatprep.subr.mxu0 0.0
        %4220 = vmatpush1.msra.mxu0 0.0
        %4221 = vmatprep.subr.mxu0 0.0
        %4222 = vmatpush1.msra.mxu0 0.0
        %4223 = vmatprep.subr.mxu0 0.0
        %4224 = vmatpush1.msra.mxu0 0.0
        %4225 = vmatprep.subr.mxu0 0.0
        %4226 = vmatpush1.msra.mxu0 0.0
        %4227 = vmatprep.subr.mxu0 0.0
        %4228 = vmatpush1.msra.mxu0 0.0
        %4229 = vmatprep.subr.mxu0 0.0
        %4230 = vmatpush1.msra.mxu0 0.0
        %4231 = vmatprep.subr.mxu0 0.0
        %4232 = vmatpush1.msra.mxu0 0.0
        %4233 = vmatprep.subr.mxu0 0.0
        %4234 = vmatpush1.msra.mxu0 0.0
        %4235 = vmatprep.subr.mxu0 0.0
        %4236 = vmatpush1.msra.mxu0 0.0
        %4237 = vmatprep.mubr.f32.mxu0 0.0
        %4238 = vmatmul.mubr.f32.gmra.mrb[0].mxu0 %v4073
        %v4239 = vpop.f32.mrb[0].mxu0
        %v4240 = vadd.f32 %v4055, %v4239
        %v4241 = vpop.f32.mrb[0].mxu0
        %v4242 = vadd.f32 %v4055, %v4241
        %4243 = vmatprep.mubr.f32.mxu0 0.0
        %4244 = vmatmul.mubr.f32.gmra.mrb[0].mxu0 %v4076
        %v4245 = vpop.f32.mrb[0].mxu0
        %v4246 = vadd.f32 %v4060, %v4245
        %v4247 = vpop.f32.mrb[0].mxu0
        %v4248 = vadd.f32 %v4060, %v4247
        %4249 = vmatprep.mubr.f32.mxu0 0.0
        %4250 = vmatmul.mubr.f32.gmra.mrb[0].mxu0 %v4079
        %v4251 = vpop.f32.mrb[0].mxu0
        %v4252 = vadd.f32 %v4065, %v4251
        %v4253 = vpop.f32.mrb[0].mxu0
        %v4254 = vadd.f32 %v4065, %v4253
        %4255 = vmatprep.mubr.f32.mxu0 0.0
        %4256 = vmatmul.mubr.f32.gmra.mrb[0].mxu0 %v4082
        %v4257 = vpop.f32.mrb[0].mxu0
        %v4258 = vadd.f32 %v4070, %v4257
        %v4259 = vpop.f32.mrb[0].mxu0
        %v4260 = vadd.f32 %v4070, %v4259
        %4261 = vdwg.mxu0
        %v4262 = vmax.f32 %v4151, 0.0
        %v4263 = vmax.f32 %v4153, 0.0
        %v4264 = vmax.f32 %v4240, 0.0
        %v4265 = vmax.f32 %v4242, 0.0
        %v4266 = vmax.f32 %v4157, 0.0
        %v4267 = vmax.f32 %v4159, 0.0
        %v4268 = vmax.f32 %v4246, 0.0
        %v4269 = vmax.f32 %v4248, 0.0
        %v4270 = vmax.f32 %v4163, 0.0
        %v4271 = vmax.f32 %v4165, 0.0
        %v4272 = vmax.f32 %v4252, 0.0
        %v4273 = vmax.f32 %v4254, 0.0
        %v4274 = vmax.f32 %v4169, 0.0
        %v4275 = vmax.f32 %v4171, 0.0
        %v4276 = vmax.f32 %v4258, 0.0
        %v4277 = vmax.f32 %v4260, 0.0
        %s4278 = scalar_lea.vmem %s3, 224
        %v4279 = vld [vmem:[%s4278] sm:$0xff]
        %v4280 = vld [vmem:[%s4278 + $0x8] sm:$0xff]
        %v4281 = vld [vmem:[%s4278 + $0x10] sm:$0xff]
        %v4282 = vld [vmem:[%s4278 + $0x18] sm:$0xff]
        %s4283 = scalar_lea.vmem [#allocation7], 224
        %v4284 = vld [vmem:[%s4283] sm:$0xff]
        %v4285 = vld [vmem:[%s4283 + $0x8] sm:$0xff]
        %v4286 = vld [vmem:[%s4283 + $0x10] sm:$0xff]
        %v4287 = vld [vmem:[%s4283 + $0x18] sm:$0xff]
        %4289 = vset.pattern.permute.xlu0 0
        %4290 = vperm.xlu0 %4289, %v4284
        %v4291 = vpop.permute.xlu0 %4290
        %4294 = vset.pattern.permute.xlu0 0
        %4295 = vperm.xlu0 %4294, %v4285
        %v4296 = vpop.permute.xlu0 %4295
        %4299 = vset.pattern.permute.xlu0 0
        %4300 = vperm.xlu0 %4299, %v4286
        %v4301 = vpop.permute.xlu0 %4300
        %4304 = vset.pattern.permute.xlu0 0
        %4305 = vperm.xlu0 %4304, %v4287
        %v4306 = vpop.permute.xlu0 %4305
        %v4309 = vsel %vm815, %v4279, 0
        %v4312 = vsel %vm815, %v4280, 0
        %v4315 = vsel %vm815, %v4281, 0
        %v4318 = vsel %vm815, %v4282, 0
        %4320 = vmatprep.subr.mxu0 %v4263
        %4321 = vmatpush1.msra.mxu0 %v4262
        %4322 = vmatprep.subr.mxu0 %v4267
        %4323 = vmatpush1.msra.mxu0 %v4266
        %4324 = vmatprep.subr.mxu0 %v4271
        %4325 = vmatpush1.msra.mxu0 %v4270
        %4326 = vmatprep.subr.mxu0 %v4275
        %4327 = vmatpush1.msra.mxu0 %v4274
        %4328 = vmatprep.subr.mxu0 0.0
        %4329 = vmatpush1.msra.mxu0 0.0
        %4330 = vmatprep.subr.mxu0 0.0
        %4331 = vmatpush1.msra.mxu0 0.0
        %4332 = vmatprep.subr.mxu0 0.0
        %4333 = vmatpush1.msra.mxu0 0.0
        %4334 = vmatprep.subr.mxu0 0.0
        %4335 = vmatpush1.msra.mxu0 0.0
        %4336 = vmatprep.subr.mxu0 0.0
        %4337 = vmatpush1.msra.mxu0 0.0
        %4338 = vmatprep.subr.mxu0 0.0
        %4339 = vmatpush1.msra.mxu0 0.0
        %4340 = vmatprep.subr.mxu0 0.0
        %4341 = vmatpush1.msra.mxu0 0.0
        %4342 = vmatprep.subr.mxu0 0.0
        %4343 = vmatpush1.msra.mxu0 0.0
        %4344 = vmatprep.subr.mxu0 0.0
        %4345 = vmatpush1.msra.mxu0 0.0
        %4346 = vmatprep.subr.mxu0 0.0
        %4347 = vmatpush1.msra.mxu0 0.0
        %4348 = vmatprep.subr.mxu0 0.0
        %4349 = vmatpush1.msra.mxu0 0.0
        %4350 = vmatprep.subr.mxu0 0.0
        %4351 = vmatpush1.msra.mxu0 0.0
        %4352 = vmatprep.subr.mxu0 0.0
        %4353 = vmatpush1.msra.mxu0 0.0
        %4354 = vmatprep.subr.mxu0 0.0
        %4355 = vmatpush1.msra.mxu0 0.0
        %4356 = vmatprep.subr.mxu0 0.0
        %4357 = vmatpush1.msra.mxu0 0.0
        %4358 = vmatprep.subr.mxu0 0.0
        %4359 = vmatpush1.msra.mxu0 0.0
        %4360 = vmatprep.subr.mxu0 0.0
        %4361 = vmatpush1.msra.mxu0 0.0
        %4362 = vmatprep.subr.mxu0 0.0
        %4363 = vmatpush1.msra.mxu0 0.0
        %4364 = vmatprep.subr.mxu0 0.0
        %4365 = vmatpush1.msra.mxu0 0.0
        %4366 = vmatprep.subr.mxu0 0.0
        %4367 = vmatpush1.msra.mxu0 0.0
        %4368 = vmatprep.subr.mxu0 0.0
        %4369 = vmatpush1.msra.mxu0 0.0
        %4370 = vmatprep.subr.mxu0 0.0
        %4371 = vmatpush1.msra.mxu0 0.0
        %4372 = vmatprep.subr.mxu0 0.0
        %4373 = vmatpush1.msra.mxu0 0.0
        %4374 = vmatprep.subr.mxu0 0.0
        %4375 = vmatpush1.msra.mxu0 0.0
        %4376 = vmatprep.subr.mxu0 0.0
        %4377 = vmatpush1.msra.mxu0 0.0
        %4378 = vmatprep.subr.mxu0 0.0
        %4379 = vmatpush1.msra.mxu0 0.0
        %4380 = vmatprep.subr.mxu0 0.0
        %4381 = vmatpush1.msra.mxu0 0.0
        %4382 = vmatprep.subr.mxu0 0.0
        %4383 = vmatpush1.msra.mxu0 0.0
        %4384 = vmatprep.mubr.f32.mxu0 0.0
        %4385 = vmatmul.mubr.f32.gmra.mrb[0].mxu0 %v4309
        %v4386 = vpop.f32.mrb[0].mxu0
        %v4387 = vadd.f32 %v4291, %v4386
        %v4388 = vpop.f32.mrb[0].mxu0
        %v4389 = vadd.f32 %v4291, %v4388
        %4390 = vmatprep.mubr.f32.mxu0 0.0
        %4391 = vmatmul.mubr.f32.gmra.mrb[0].mxu0 %v4312
        %v4392 = vpop.f32.mrb[0].mxu0
        %v4393 = vadd.f32 %v4296, %v4392
        %v4394 = vpop.f32.mrb[0].mxu0
        %v4395 = vadd.f32 %v4296, %v4394
        %4396 = vmatprep.mubr.f32.mxu0 0.0
        %4397 = vmatmul.mubr.f32.gmra.mrb[0].mxu0 %v4315
        %v4398 = vpop.f32.mrb[0].mxu0
        %v4399 = vadd.f32 %v4301, %v4398
        %v4400 = vpop.f32.mrb[0].mxu0
        %v4401 = vadd.f32 %v4301, %v4400
        %4402 = vmatprep.mubr.f32.mxu0 0.0
        %4403 = vmatmul.mubr.f32.gmra.mrb[0].mxu0 %v4318
        %v4404 = vpop.f32.mrb[0].mxu0
        %v4405 = vadd.f32 %v4306, %v4404
        %v4406 = vpop.f32.mrb[0].mxu0
        %v4407 = vadd.f32 %v4306, %v4406
        %4408 = vdwg.mxu0
        %4409 = vmatprep.subr.mxu0 %v4265
        %4410 = vmatpush1.msra.mxu0 %v4264
        %4411 = vmatprep.subr.mxu0 %v4269
        %4412 = vmatpush1.msra.mxu0 %v4268
        %4413 = vmatprep.subr.mxu0 %v4273
        %4414 = vmatpush1.msra.mxu0 %v4272
        %4415 = vmatprep.subr.mxu0 %v4277
        %4416 = vmatpush1.msra.mxu0 %v4276
        %4417 = vmatprep.subr.mxu0 0.0
        %4418 = vmatpush1.msra.mxu0 0.0
        %4419 = vmatprep.subr.mxu0 0.0
        %4420 = vmatpush1.msra.mxu0 0.0
        %4421 = vmatprep.subr.mxu0 0.0
        %4422 = vmatpush1.msra.mxu0 0.0
        %4423 = vmatprep.subr.mxu0 0.0
        %4424 = vmatpush1.msra.mxu0 0.0
        %4425 = vmatprep.subr.mxu0 0.0
        %4426 = vmatpush1.msra.mxu0 0.0
        %4427 = vmatprep.subr.mxu0 0.0
        %4428 = vmatpush1.msra.mxu0 0.0
        %4429 = vmatprep.subr.mxu0 0.0
        %4430 = vmatpush1.msra.mxu0 0.0
        %4431 = vmatprep.subr.mxu0 0.0
        %4432 = vmatpush1.msra.mxu0 0.0
        %4433 = vmatprep.subr.mxu0 0.0
        %4434 = vmatpush1.msra.mxu0 0.0
        %4435 = vmatprep.subr.mxu0 0.0
        %4436 = vmatpush1.msra.mxu0 0.0
        %4437 = vmatprep.subr.mxu0 0.0
        %4438 = vmatpush1.msra.mxu0 0.0
        %4439 = vmatprep.subr.mxu0 0.0
        %4440 = vmatpush1.msra.mxu0 0.0
        %4441 = vmatprep.subr.mxu0 0.0
        %4442 = vmatpush1.msra.mxu0 0.0
        %4443 = vmatprep.subr.mxu0 0.0
        %4444 = vmatpush1.msra.mxu0 0.0
        %4445 = vmatprep.subr.mxu0 0.0
        %4446 = vmatpush1.msra.mxu0 0.0
        %4447 = vmatprep.subr.mxu0 0.0
        %4448 = vmatpush1.msra.mxu0 0.0
        %4449 = vmatprep.subr.mxu0 0.0
        %4450 = vmatpush1.msra.mxu0 0.0
        %4451 = vmatprep.subr.mxu0 0.0
        %4452 = vmatpush1.msra.mxu0 0.0
        %4453 = vmatprep.subr.mxu0 0.0
        %4454 = vmatpush1.msra.mxu0 0.0
        %4455 = vmatprep.subr.mxu0 0.0
        %4456 = vmatpush1.msra.mxu0 0.0
        %4457 = vmatprep.subr.mxu0 0.0
        %4458 = vmatpush1.msra.mxu0 0.0
        %4459 = vmatprep.subr.mxu0 0.0
        %4460 = vmatpush1.msra.mxu0 0.0
        %4461 = vmatprep.subr.mxu0 0.0
        %4462 = vmatpush1.msra.mxu0 0.0
        %4463 = vmatprep.subr.mxu0 0.0
        %4464 = vmatpush1.msra.mxu0 0.0
        %4465 = vmatprep.subr.mxu0 0.0
        %4466 = vmatpush1.msra.mxu0 0.0
        %4467 = vmatprep.subr.mxu0 0.0
        %4468 = vmatpush1.msra.mxu0 0.0
        %4469 = vmatprep.subr.mxu0 0.0
        %4470 = vmatpush1.msra.mxu0 0.0
        %4471 = vmatprep.subr.mxu0 0.0
        %4472 = vmatpush1.msra.mxu0 0.0
        %4473 = vmatprep.mubr.f32.mxu0 0.0
        %4474 = vmatmul.mubr.f32.gmra.mrb[0].mxu0 %v4309
        %v4475 = vpop.f32.mrb[0].mxu0
        %v4476 = vadd.f32 %v4291, %v4475
        %v4477 = vpop.f32.mrb[0].mxu0
        %v4478 = vadd.f32 %v4291, %v4477
        %4479 = vmatprep.mubr.f32.mxu0 0.0
        %4480 = vmatmul.mubr.f32.gmra.mrb[0].mxu0 %v4312
        %v4481 = vpop.f32.mrb[0].mxu0
        %v4482 = vadd.f32 %v4296, %v4481
        %v4483 = vpop.f32.mrb[0].mxu0
        %v4484 = vadd.f32 %v4296, %v4483
        %4485 = vmatprep.mubr.f32.mxu0 0.0
        %4486 = vmatmul.mubr.f32.gmra.mrb[0].mxu0 %v4315
        %v4487 = vpop.f32.mrb[0].mxu0
        %v4488 = vadd.f32 %v4301, %v4487
        %v4489 = vpop.f32.mrb[0].mxu0
        %v4490 = vadd.f32 %v4301, %v4489
        %4491 = vmatprep.mubr.f32.mxu0 0.0
        %4492 = vmatmul.mubr.f32.gmra.mrb[0].mxu0 %v4318
        %v4493 = vpop.f32.mrb[0].mxu0
        %v4494 = vadd.f32 %v4306, %v4493
        %v4495 = vpop.f32.mrb[0].mxu0
        %v4496 = vadd.f32 %v4306, %v4495
        %4497 = vdwg.mxu0
        %v4498 = vmax.f32 %v4387, 0.0
        %v4499 = vmax.f32 %v4389, 0.0
        %v4500 = vmax.f32 %v4476, 0.0
        %v4501 = vmax.f32 %v4478, 0.0
        %v4502 = vmax.f32 %v4393, 0.0
        %v4503 = vmax.f32 %v4395, 0.0
        %v4504 = vmax.f32 %v4482, 0.0
        %v4505 = vmax.f32 %v4484, 0.0
        %v4506 = vmax.f32 %v4399, 0.0
        %v4507 = vmax.f32 %v4401, 0.0
        %v4508 = vmax.f32 %v4488, 0.0
        %v4509 = vmax.f32 %v4490, 0.0
        %v4510 = vmax.f32 %v4405, 0.0
        %v4511 = vmax.f32 %v4407, 0.0
        %v4512 = vmax.f32 %v4494, 0.0
        %v4513 = vmax.f32 %v4496, 0.0
        %s4514 = scalar_lea.vmem %s5, 48
        %v4515 = vld [vmem:[%s4514] sm:$0xff]
        %v4516 = vld [vmem:[%s4514 + $0x8] sm:$0xff]
        %s4517 = scalar_lea.vmem [#allocation8], 48
        %v4518 = vld [vmem:[%s4517] sm:$0xff]
        %v4519 = vld [vmem:[%s4517 + $0x8] sm:$0xff]
        %4521 = vset.pattern.permute.xlu0 0
        %4522 = vperm.xlu0 %4521, %v4518
        %v4523 = vpop.permute.xlu0 %4522
        %4526 = vset.pattern.permute.xlu0 0
        %4527 = vperm.xlu0 %4526, %v4519
        %v4528 = vpop.permute.xlu0 %4527
        %v4531 = vsel %vm815, %v4515, 0
        %v4534 = vsel %vm815, %v4516, 0
        %4536 = vmatprep.subr.mxu0 %v4499
        %4537 = vmatpush1.msra.mxu0 %v4498
        %4538 = vmatprep.subr.mxu0 %v4503
        %4539 = vmatpush1.msra.mxu0 %v4502
        %4540 = vmatprep.subr.mxu0 %v4507
        %4541 = vmatpush1.msra.mxu0 %v4506
        %4542 = vmatprep.subr.mxu0 %v4511
        %4543 = vmatpush1.msra.mxu0 %v4510
        %4544 = vmatprep.subr.mxu0 0.0
        %4545 = vmatpush1.msra.mxu0 0.0
        %4546 = vmatprep.subr.mxu0 0.0
        %4547 = vmatpush1.msra.mxu0 0.0
        %4548 = vmatprep.subr.mxu0 0.0
        %4549 = vmatpush1.msra.mxu0 0.0
        %4550 = vmatprep.subr.mxu0 0.0
        %4551 = vmatpush1.msra.mxu0 0.0
        %4552 = vmatprep.subr.mxu0 0.0
        %4553 = vmatpush1.msra.mxu0 0.0
        %4554 = vmatprep.subr.mxu0 0.0
        %4555 = vmatpush1.msra.mxu0 0.0
        %4556 = vmatprep.subr.mxu0 0.0
        %4557 = vmatpush1.msra.mxu0 0.0
        %4558 = vmatprep.subr.mxu0 0.0
        %4559 = vmatpush1.msra.mxu0 0.0
        %4560 = vmatprep.subr.mxu0 0.0
        %4561 = vmatpush1.msra.mxu0 0.0
        %4562 = vmatprep.subr.mxu0 0.0
        %4563 = vmatpush1.msra.mxu0 0.0
        %4564 = vmatprep.subr.mxu0 0.0
        %4565 = vmatpush1.msra.mxu0 0.0
        %4566 = vmatprep.subr.mxu0 0.0
        %4567 = vmatpush1.msra.mxu0 0.0
        %4568 = vmatprep.subr.mxu0 0.0
        %4569 = vmatpush1.msra.mxu0 0.0
        %4570 = vmatprep.subr.mxu0 0.0
        %4571 = vmatpush1.msra.mxu0 0.0
        %4572 = vmatprep.subr.mxu0 0.0
        %4573 = vmatpush1.msra.mxu0 0.0
        %4574 = vmatprep.subr.mxu0 0.0
        %4575 = vmatpush1.msra.mxu0 0.0
        %4576 = vmatprep.subr.mxu0 0.0
        %4577 = vmatpush1.msra.mxu0 0.0
        %4578 = vmatprep.subr.mxu0 0.0
        %4579 = vmatpush1.msra.mxu0 0.0
        %4580 = vmatprep.subr.mxu0 0.0
        %4581 = vmatpush1.msra.mxu0 0.0
        %4582 = vmatprep.subr.mxu0 0.0
        %4583 = vmatpush1.msra.mxu0 0.0
        %4584 = vmatprep.subr.mxu0 0.0
        %4585 = vmatpush1.msra.mxu0 0.0
        %4586 = vmatprep.subr.mxu0 0.0
        %4587 = vmatpush1.msra.mxu0 0.0
        %4588 = vmatprep.subr.mxu0 0.0
        %4589 = vmatpush1.msra.mxu0 0.0
        %4590 = vmatprep.subr.mxu0 0.0
        %4591 = vmatpush1.msra.mxu0 0.0
        %4592 = vmatprep.subr.mxu0 0.0
        %4593 = vmatpush1.msra.mxu0 0.0
        %4594 = vmatprep.subr.mxu0 0.0
        %4595 = vmatpush1.msra.mxu0 0.0
        %4596 = vmatprep.subr.mxu0 0.0
        %4597 = vmatpush1.msra.mxu0 0.0
        %4598 = vmatprep.subr.mxu0 0.0
        %4599 = vmatpush1.msra.mxu0 0.0
        %4600 = vmatprep.mubr.f32.mxu0 0.0
        %4601 = vmatmul.mubr.f32.gmra.mrb[0].mxu0 %v4531
        %v4602 = vpop.f32.mrb[0].mxu0
        %v4603 = vadd.f32 %v4523, %v4602
        %v4604 = vpop.f32.mrb[0].mxu0
        %v4605 = vadd.f32 %v4523, %v4604
        %4606 = vmatprep.mubr.f32.mxu0 0.0
        %4607 = vmatmul.mubr.f32.gmra.mrb[0].mxu0 %v4534
        %v4608 = vpop.f32.mrb[0].mxu0
        %v4609 = vadd.f32 %v4528, %v4608
        %v4610 = vpop.f32.mrb[0].mxu0
        %v4611 = vadd.f32 %v4528, %v4610
        %4612 = vdwg.mxu0
        %4613 = vmatprep.subr.mxu0 %v4501
        %4614 = vmatpush1.msra.mxu0 %v4500
        %4615 = vmatprep.subr.mxu0 %v4505
        %4616 = vmatpush1.msra.mxu0 %v4504
        %4617 = vmatprep.subr.mxu0 %v4509
        %4618 = vmatpush1.msra.mxu0 %v4508
        %4619 = vmatprep.subr.mxu0 %v4513
        %4620 = vmatpush1.msra.mxu0 %v4512
        %4621 = vmatprep.subr.mxu0 0.0
        %4622 = vmatpush1.msra.mxu0 0.0
        %4623 = vmatprep.subr.mxu0 0.0
        %4624 = vmatpush1.msra.mxu0 0.0
        %4625 = vmatprep.subr.mxu0 0.0
        %4626 = vmatpush1.msra.mxu0 0.0
        %4627 = vmatprep.subr.mxu0 0.0
        %4628 = vmatpush1.msra.mxu0 0.0
        %4629 = vmatprep.subr.mxu0 0.0
        %4630 = vmatpush1.msra.mxu0 0.0
        %4631 = vmatprep.subr.mxu0 0.0
        %4632 = vmatpush1.msra.mxu0 0.0
        %4633 = vmatprep.subr.mxu0 0.0
        %4634 = vmatpush1.msra.mxu0 0.0
        %4635 = vmatprep.subr.mxu0 0.0
        %4636 = vmatpush1.msra.mxu0 0.0
        %4637 = vmatprep.subr.mxu0 0.0
        %4638 = vmatpush1.msra.mxu0 0.0
        %4639 = vmatprep.subr.mxu0 0.0
        %4640 = vmatpush1.msra.mxu0 0.0
        %4641 = vmatprep.subr.mxu0 0.0
        %4642 = vmatpush1.msra.mxu0 0.0
        %4643 = vmatprep.subr.mxu0 0.0
        %4644 = vmatpush1.msra.mxu0 0.0
        %4645 = vmatprep.subr.mxu0 0.0
        %4646 = vmatpush1.msra.mxu0 0.0
        %4647 = vmatprep.subr.mxu0 0.0
        %4648 = vmatpush1.msra.mxu0 0.0
        %4649 = vmatprep.subr.mxu0 0.0
        %4650 = vmatpush1.msra.mxu0 0.0
        %4651 = vmatprep.subr.mxu0 0.0
        %4652 = vmatpush1.msra.mxu0 0.0
        %4653 = vmatprep.subr.mxu0 0.0
        %4654 = vmatpush1.msra.mxu0 0.0
        %4655 = vmatprep.subr.mxu0 0.0
        %4656 = vmatpush1.msra.mxu0 0.0
        %4657 = vmatprep.subr.mxu0 0.0
        %4658 = vmatpush1.msra.mxu0 0.0
        %4659 = vmatprep.subr.mxu0 0.0
        %4660 = vmatpush1.msra.mxu0 0.0
        %4661 = vmatprep.subr.mxu0 0.0
        %4662 = vmatpush1.msra.mxu0 0.0
        %4663 = vmatprep.subr.mxu0 0.0
        %4664 = vmatpush1.msra.mxu0 0.0
        %4665 = vmatprep.subr.mxu0 0.0
        %4666 = vmatpush1.msra.mxu0 0.0
        %4667 = vmatprep.subr.mxu0 0.0
        %4668 = vmatpush1.msra.mxu0 0.0
        %4669 = vmatprep.subr.mxu0 0.0
        %4670 = vmatpush1.msra.mxu0 0.0
        %4671 = vmatprep.subr.mxu0 0.0
        %4672 = vmatpush1.msra.mxu0 0.0
        %4673 = vmatprep.subr.mxu0 0.0
        %4674 = vmatpush1.msra.mxu0 0.0
        %4675 = vmatprep.subr.mxu0 0.0
        %4676 = vmatpush1.msra.mxu0 0.0
        %4677 = vmatprep.mubr.f32.mxu0 0.0
        %4678 = vmatmul.mubr.f32.gmra.mrb[0].mxu0 %v4531
        %v4679 = vpop.f32.mrb[0].mxu0
        %v4680 = vadd.f32 %v4523, %v4679
        %v4681 = vpop.f32.mrb[0].mxu0
        %v4682 = vadd.f32 %v4523, %v4681
        %4683 = vmatprep.mubr.f32.mxu0 0.0
        %4684 = vmatmul.mubr.f32.gmra.mrb[0].mxu0 %v4534
        %v4685 = vpop.f32.mrb[0].mxu0
        %v4686 = vadd.f32 %v4528, %v4685
        %v4687 = vpop.f32.mrb[0].mxu0
        %v4688 = vadd.f32 %v4528, %v4687
        %4689 = vdwg.mxu0
        %v4690 = vmul.f32 %v4603, 0.5263158
        %v4691 = vmul.f32 %v4605, 0.5263158
        %v4692 = vmul.f32 %v4680, 0.5263158
        %v4693 = vmul.f32 %v4682, 0.5263158
        %v4694 = vtanh.pop %v4690
        %v4695 = vtanh.pop %v4691
        %v4696 = vtanh.pop %v4692
        %v4697 = vtanh.pop %v4693
        %v4698 = vmul.f32 %v4694, 1.9
        %v4699 = vmul.f32 %v4695, 1.9
        %v4700 = vmul.f32 %v4696, 1.9
        %v4701 = vmul.f32 %v4697, 1.9
        %v4702 = vmul.f32 %v4698, 1.442695
        %v4703 = vpow.pop %v4702
        %v4704 = vmul.f32 %v4699, 1.442695
        %v4705 = vpow.pop %v4704
        %v4706 = vmul.f32 %v4700, 1.442695
        %v4707 = vpow.pop %v4706
        %v4708 = vmul.f32 %v4701, 1.442695
        %v4709 = vpow.pop %v4708
        %v4710 = vmul.f32 %v3628, %v4703
        %v4711 = vmul.f32 %v3629, %v4705
        %v4712 = vmul.f32 %v3630, %v4707
        %v4713 = vmul.f32 %v3631, %v4709
        %v4714 = vadd.f32 %v4710, %v4609
        %v4715 = vadd.f32 %v4711, %v4611
        %v4716 = vadd.f32 %v4712, %v4686
        %v4717 = vadd.f32 %v4713, %v4688
        %v4718 = vadd.f32 %v3632, %v4698
        %v4719 = vadd.f32 %v3633, %v4699
        %v4720 = vadd.f32 %v3634, %v4700
        %v4721 = vadd.f32 %v3635, %v4701
        %v4722 = vrot.slane %v4718, 4
        %v4723 = vadd.f32 %v4718, %v4722
        %v4724 = vrot.slane %v4723, 2
        %v4725 = vadd.f32 %v4723, %v4724
        %v4726 = vrot.slane %v4725, 1
        %v4727 = vadd.f32 %v4725, %v4726
        %v4728 = vrot.slane %v4719, 4
        %v4729 = vadd.f32 %v4719, %v4728
        %v4730 = vrot.slane %v4729, 2
        %v4731 = vadd.f32 %v4729, %v4730
        %v4732 = vrot.slane %v4731, 1
        %v4733 = vadd.f32 %v4731, %v4732
        %v4734 = vrot.slane %v4720, 4
        %v4735 = vadd.f32 %v4720, %v4734
        %v4736 = vrot.slane %v4735, 2
        %v4737 = vadd.f32 %v4735, %v4736
        %v4738 = vrot.slane %v4737, 1
        %v4739 = vadd.f32 %v4737, %v4738
        %v4740 = vrot.slane %v4721, 4
        %v4741 = vadd.f32 %v4721, %v4740
        %v4742 = vrot.slane %v4741, 2
        %v4743 = vadd.f32 %v4741, %v4742
        %v4744 = vrot.slane %v4743, 1
        %v4745 = vadd.f32 %v4743, %v4744
        %v4746 = vlaneseq
        %v4747 = vshrl.u32 %v4746, 7
        %vm4748 = vcmp.eq.s32.totalorder %v4747, 4
        %v4749 = vsel %vm4748, %v4727, %v4714
        %v4750 = vsel %vm4748, %v4733, %v4715
        %v4751 = vsel %vm4748, %v4739, %v4716
        %v4752 = vsel %vm4748, %v4745, %v4717
        %4753 = vst [vmem:[%s372] sm:$0xff] %v4749
        %4754 = vst [vmem:[%s372 + $0x8] sm:$0xff] %v4750
        %4755 = vst [vmem:[%s372 + $0x10] sm:$0xff] %v4751
        %4756 = vst [vmem:[%s372 + $0x18] sm:$0xff] %v4752
        %s4757 = smul.u32 4, %s21
        %p4758 = scmp.lt.s32.totalorder %s4757, 7
        %s4759 = scalar_select %p4758, %s4757, 7
        %s4760 = smul.addr %s4759, 8
        %s4761 = scalar_lea.vmem %s7, %s4760
        // Predicated region
        $region88: #{posterior_sampler_forward.1} parent=66 // pred_check
          %p4762 = pneg %p191
        $region89: #{posterior_sampler_forward.1} parent=66 // pred_check_branch
          %4764 = sbr.rel (%p4762) target = $region91
        $region90: #{posterior_sampler_forward.1} parent=66 // pred_region
          %s4765 = smul.u32 4, %s21
        $region91: #{posterior_sampler_forward.1} parent=66 // pred_fallthru
          _
      $region67: #{posterior_sampler_forward.1} parent=5 // pred_fallthru
        _
      %p4766 = scmp.le.s32.totalorder 2, %s16
      // Predicated region
      $region92: #{posterior_sampler_forward.1} parent=5 // pred_check
        %p4767 = pneg %p4766
      $region93: #{posterior_sampler_forward.1} parent=5 // pred_check_branch
        %4769 = sbr.rel (%p4767) target = $region95
      $region94: #{posterior_sampler_forward.1} parent=5 // pred_region
        %s4770 = ssub.s32 %s16, 2
        // Predicated region
        $region96: #{posterior_sampler_forward.1} parent=94 // pred_check
          %p4771 = pneg %p197
        $region97: #{posterior_sampler_forward.1} parent=94 // pred_check_branch
          %4773 = sbr.rel (%p4771) target = $region99
        $region98: #{posterior_sampler_forward.1} parent=94 // pred_region
          %s4774 = smul.u32 4, %s22
          %p4775 = scmp.lt.s32.totalorder %s4774, 7
          %s4776 = scalar_select %p4775, %s4774, 7
          %s4777 = smul.addr %s4776, 8
          %s4778 = scalar_lea.vmem %s7, %s4777
        $region99: #{posterior_sampler_forward.1} parent=94 // pred_fallthru
          _
      $region95: #{posterior_sampler_forward.1} parent=5 // pred_fallthru
        _
    $region6: #{posterior_sampler_forward.1} parent=1 // loop_footer
      %s20 = sadd.s32 1, %s16
    $region7: #{posterior_sampler_forward.1} parent=1 // loop_footer_branch
      %15 = sbr.rel target = $region3
    $region8: #{posterior_sampler_forward.1} parent=1 // loop_exit
      _
    %4779 = vsyncpa [#allocation4], 1
    %s4780 = scalar_lea.sflag [#allocation4], 1
    %4781 = vsyncpa %s4780, 1
    %4782 = vsyncpa [#allocation6], 1
    %4783 = vsyncpa [#allocation9], 1

</llo_original>
